<compile_context>
chip_gen: v7x
topology: tpu7x:2x2x1
jax: 0.10.0
libtpu: 0.0.40
codegen_flags: <defaults>
</compile_context>

<pallas_src>
import functools
import math

import jax
import jax.numpy as jnp
from jax.experimental import pallas as pl
from jax.experimental.pallas import tpu as pltpu


# ----------------------------------------------------------------------------
# padding helper (port of calculate_conv2d_padding)
# ----------------------------------------------------------------------------
def calculate_conv2d_padding(stride, kernel_size, d_in, d_out, dilation=1):
    if isinstance(stride, int):
        stride = (stride, stride)
    if isinstance(kernel_size, int):
        kernel_size = (kernel_size, kernel_size)
    if isinstance(dilation, int):
        dilation = (dilation, dilation)
    h_in, w_in = d_in
    h_out, w_out = d_out
    h_k, w_k = kernel_size
    h_s, w_s = stride
    h_d, w_d = dilation
    padding_h = math.ceil(((h_out - 1) * h_s + h_k - h_in + (h_k - 1) * (h_d - 1)) / 2)
    padding_w = math.ceil(((w_out - 1) * w_s + w_k - w_in + (w_k - 1) * (w_d - 1)) / 2)
    assert padding_h >= 0 and padding_w >= 0
    return (padding_h, padding_w)


# ----------------------------------------------------------------------------
# fused ResBlock_2d kernel (one batch element per grid step)
# ----------------------------------------------------------------------------
def _resblock_kernel(x_ref, w1_ref, b1_ref, w2_ref, b2_ref, o_ref, hpad_ref,
                     *, H, W, ph, pw, KH, KW, rows_per_chunk):
    # x_ref : (H*W, C)  f32   one batch element, NHWC flattened over (H, W)
    # w1_ref: (C, C//2) bf16  1x1 conv weight, BN scale folded in
    # b1_ref: (1, C//2) f32   folded conv+BN bias
    # w2_ref: (KH*KW, C//2, C) bf16
    # b2_ref: (1, C)    f32
    # o_ref : (H*W, C)  f32   out = x + relu(bn2(conv2(relu(bn1(conv1(x))))))
    # hpad_ref: VMEM scratch ((Hp+1)*Wp, C//2) bf16 -- zero-padded intermediate h
    Wp = W + 2 * pw

    # ---- zero the padded intermediate buffer (padding ring must be 0 for conv2) ----
    hpad_ref[...] = jnp.zeros_like(hpad_ref)

    # ---- stage 1: 1x1 Conv + BN + ReLU (bf16 MXU, f32 accumulate / epilogue) ----
    xb = x_ref[...].astype(jnp.bfloat16)                                    # (H*W, C)
    h = jnp.dot(xb, w1_ref[...], preferred_element_type=jnp.float32)
    h = jnp.maximum(h + b1_ref[...], 0.0).astype(jnp.bfloat16)              # (H*W, C//2)
    # scatter image rows into the zero-padded (Hp+1, Wp)-flattened layout
    for i in range(H):
        dst = (i + ph) * Wp + pw
        hpad_ref[dst:dst + W, :] = h[i * W:(i + 1) * W, :]

    # ---- stage 2: kxk Conv + BN + ReLU + residual add, chunked over output image rows ----
    b2 = b2_ref[...]
    cout = b2.shape[1]
    for i0 in range(0, H, rows_per_chunk):
        rc = min(rows_per_chunk, H - i0)
        m = rc * Wp                 # flat rows computed (Wp-stride layout; the < 2*pw
        acc = jnp.zeros((m, cout), jnp.float32)   # wrap columns/row are dropped below)
        t = 0
        for kh in range(KH):
            for kw in range(KW):
                off = (i0 + kh) * Wp + kw
                acc = acc + jnp.dot(hpad_ref[off:off + m, :], w2_ref[t],
                                    preferred_element_type=jnp.float32)
                t += 1
        y = jnp.maximum(acc + b2, 0.0)
        # residual add + lane-dense store of the W valid columns of each image row
        for i in range(rc):
            src = i * Wp
            dst = (i0 + i) * W
            o_ref[dst:dst + W, :] = x_ref[dst:dst + W, :] + y[src:src + W, :]


def _build_resblock_call(B, H, W, C, KH, KW, ph, pw, rows_per_chunk):
    C2 = C // 2
    Hp, Wp = H + 2 * ph, W + 2 * pw
    kernel = functools.partial(_resblock_kernel, H=H, W=W, ph=ph, pw=pw,
                               KH=KH, KW=KW, rows_per_chunk=rows_per_chunk)
    flops = 2 * B * (H * W * C * C2 + H * Wp * KH * KW * C2 * C)
    bytes_accessed = (2 * B * H * W * C * 4                 # x in, out
                      + (C * C2 + KH * KW * C2 * C) * 2     # bf16 weights
                      + (C2 + C) * 4)                       # biases
    return pl.pallas_call(
        kernel,
        out_shape=jax.ShapeDtypeStruct((B, H * W, C), jnp.float32),
        grid=(B,),
        in_specs=[
            pl.BlockSpec((None, H * W, C), lambda b: (b, 0, 0)),     # x (f32)
            pl.BlockSpec((C, C2), lambda b: (0, 0)),                 # w1 (bf16, BN folded)
            pl.BlockSpec((1, C2), lambda b: (0, 0)),                 # b1 (f32)
            pl.BlockSpec((KH * KW, C2, C), lambda b: (0, 0, 0)),     # w2 (bf16, BN folded)
            pl.BlockSpec((1, C), lambda b: (0, 0)),                  # b2 (f32)
        ],
        out_specs=pl.BlockSpec((None, H * W, C), lambda b: (b, 0, 0)),
        scratch_shapes=[pltpu.VMEM(((Hp + 1) * Wp, C2), jnp.bfloat16)],
        compiler_params=pltpu.CompilerParams(dimension_semantics=("parallel",)),
        cost_estimate=pl.CostEstimate(flops=flops, transcendentals=0,
                                      bytes_accessed=bytes_accessed),
    )


@functools.partial(jax.jit, static_argnames=("kernel_size", "padding", "rows_per_chunk"))
def resblock_2d_forward(params, x_nchw, *, kernel_size, padding, rows_per_chunk=8):
    """Eval-mode ResBlock_2d forward: x + relu(bn2(conv2(relu(bn1(conv1(x))))))."""
    # TODO(synk): stride/dilation != 1 and training-mode DropPath (stochastic depth) are not
    # implemented; this is the eval-mode forward with the module defaults stride=1, dilation=1.
    B, C, H, W = x_nchw.shape
    KH = KW = kernel_size
    ph, pw = padding
    assert C % 2 == 0, "in_channel must be even (conv1 halves the channel count)"
    assert 2 * ph == KH - 1 and 2 * pw == KW - 1, "odd kernel / 'same' padding expected"
    x = jnp.transpose(x_nchw, (0, 2, 3, 1)).astype(jnp.float32)      # NCHW -> NHWC
    call = _build_resblock_call(B, H, W, C, KH, KW, ph, pw, rows_per_chunk)
    y = call(x.reshape(B, H * W, C),
             params["w1"], params["b1"], params["w2"], params["b2"])
    return jnp.transpose(y.reshape(B, H, W, C), (0, 3, 1, 2))        # NHWC -> NCHW


# ----------------------------------------------------------------------------
# deterministic parameter construction (Conv + eval-mode BatchNorm, folded)
# ----------------------------------------------------------------------------
def make_resblock_params(key, in_channel, kernel_size, in_dim, eps=1e-5):
    C, C2, K = in_channel, in_channel // 2, kernel_size
    k1, k2, k3, k4 = jax.random.split(key, 4)
    # Conv weights built directly in (KH, KW, Cin, Cout) layout; a real PyTorch
    # (Cout, Cin, KH, KW) weight maps here via .transpose(2, 3, 1, 0).
    w1 = jax.random.normal(k1, (C, C2), jnp.float32) * math.sqrt(2.0 / C)
    b1 = jax.random.uniform(k2, (C2,), jnp.float32, -1.0, 1.0) / math.sqrt(C)
    w2 = jax.random.normal(k3, (K, K, C2, C), jnp.float32) * math.sqrt(2.0 / (C2 * K * K))
    b2 = jax.random.uniform(k4, (C,), jnp.float32, -1.0, 1.0) / math.sqrt(C2 * K * K)
    # BatchNorm eval fold (gamma=1, beta=0, running_mean=0, running_var=1):
    #   bn(conv(x) + b) = s * conv(x) + s * b   with   s = gamma / sqrt(var + eps)
    s = 1.0 / math.sqrt(1.0 + eps)
    pad = calculate_conv2d_padding(1, K, in_dim, in_dim, 1)
    params = {
        "w1": (w1 * s).astype(jnp.bfloat16),                          # (C, C//2)
        "b1": (b1 * s).reshape(1, C2).astype(jnp.float32),
        "w2": (w2 * s).reshape(K * K, C2, C).astype(jnp.bfloat16),    # (KH*KW, C//2, C)
        "b2": (b2 * s).reshape(1, C).astype(jnp.float32),
    }
    return params, pad


# ----------------------------------------------------------------------------
# pure-JAX f32 reference (same folded weights) for a correctness check
# ----------------------------------------------------------------------------
def _resblock_reference(params, x_nchw, kernel_size, padding):
    B, C, H, W = x_nchw.shape
    K, (ph, pw), C2 = kernel_size, padding, C // 2
    x = jnp.transpose(x_nchw, (0, 2, 3, 1)).astype(jnp.float32)
    w1 = params["w1"].astype(jnp.float32)
    w2 = params["w2"].astype(jnp.float32).reshape(K, K, C2, C)
    h = jnp.maximum(jnp.einsum("bhwc,cd->bhwd", x, w1) + params["b1"][0], 0.0)
    hp = jnp.pad(h, ((0, 0), (ph, ph), (pw, pw), (0, 0)))
    y = jnp.zeros((B, H, W, C), jnp.float32)
    for kh in range(K):
        for kw in range(K):
            y = y + jnp.einsum("bhwd,dc->bhwc", hp[:, kh:kh + H, kw:kw + W, :], w2[kh, kw])
    y = jnp.maximum(y + params["b2"][0], 0.0)
    return jnp.transpose(x + y, (0, 3, 1, 2))


# ----------------------------------------------------------------------------
if __name__ == "__main__":
    B, C_IN, H, W = 2, 128, 16, 16      # in_channel must be even (conv1 outputs C//2)
    KSIZE = 3
    key = jax.random.PRNGKey(0)
    kx, kp = jax.random.split(key)
    x = jax.random.normal(kx, (B, C_IN, H, W), jnp.float32)   # NCHW, like the PyTorch module

    params, pad = make_resblock_params(kp, C_IN, KSIZE, (H, W))
    out = resblock_2d_forward(params, x, kernel_size=KSIZE, padding=pad)
    out = jax.block_until_ready(out)

    assert out.shape == (B, C_IN, H, W), out.shape
    assert out.dtype == jnp.float32

    ref = _resblock_reference(params, x, KSIZE, pad)
    max_err = float(jnp.max(jnp.abs(out - ref)))
    assert max_err < 1e-1, f"max abs err {max_err}"   # bf16-MXU kernel vs f32 reference
    print("KERNEL_OK")
</pallas_src>

<mosaic_0001>
module attributes {stable_mosaic.version = 11 : i64} {
  func.func @_resblock_kernel(%arg0: i32, %arg1: memref<1x256x128xf32, #tpu.memory_space<vmem>>, %arg2: memref<128x64xbf16, #tpu.memory_space<vmem>>, %arg3: memref<1x64xf32, #tpu.memory_space<vmem>>, %arg4: memref<9x64x128xbf16, #tpu.memory_space<vmem>>, %arg5: memref<1x128xf32, #tpu.memory_space<vmem>>, %arg6: memref<1x256x128xf32, #tpu.memory_space<vmem>>, %arg7: memref<342x64xbf16, #tpu.memory_space<vmem>>) attributes {dimension_semantics = [#tpu.dimension_semantics<parallel>], iteration_bounds = array<i64: 2>, scalar_prefetch = 0 : i64, scratch_operands = 1 : i64, tpu.core_type = #tpu.core_type<tc>, window_params = [{transform_indices = @transform_0, window_bounds = array<i64: 1, 256, 128>}, {pipeline_mode = #tpu.pipeline_mode<synchronous>, transform_indices = @transform_1, window_bounds = array<i64: 128, 64>}, {pipeline_mode = #tpu.pipeline_mode<synchronous>, transform_indices = @transform_2, window_bounds = array<i64: 1, 64>}, {pipeline_mode = #tpu.pipeline_mode<synchronous>, transform_indices = @transform_3, window_bounds = array<i64: 9, 64, 128>}, {pipeline_mode = #tpu.pipeline_mode<synchronous>, transform_indices = @transform_4, window_bounds = array<i64: 1, 128>}, {transform_indices = @transform_5, window_bounds = array<i64: 1, 256, 128>}]} {
    %cst = arith.constant 0.000000e+00 : bf16
    %0 = vector.broadcast %cst : bf16 to vector<342x64xbf16>
    %c0 = arith.constant 0 : index
    %c0_0 = arith.constant 0 : index
    %1 = vector.load %arg7[%c0, %c0_0] : memref<342x64xbf16, #tpu.memory_space<vmem>>, vector<342x64xbf16>
    tpu.vector_store %arg7[%c0, %c0_0], %0 {strides = array<i32>} : memref<342x64xbf16, #tpu.memory_space<vmem>>, vector<342x64xbf16>,
    %c0_1 = arith.constant 0 : index
    %c0_2 = arith.constant 0 : index
    %c0_3 = arith.constant 0 : index
    %2 = vector.load %arg1[%c0_1, %c0_2, %c0_3] : memref<1x256x128xf32, #tpu.memory_space<vmem>>, vector<1x256x128xf32>
    %3 = vector.shape_cast %2 : vector<1x256x128xf32> to vector<256x128xf32>
    %4 = arith.truncf %3 : vector<256x128xf32> to vector<256x128xbf16>
    %c0_4 = arith.constant 0 : index
    %c0_5 = arith.constant 0 : index
    %5 = vector.load %arg2[%c0_4, %c0_5] : memref<128x64xbf16, #tpu.memory_space<vmem>>, vector<128x64xbf16>
    %cst_6 = arith.constant dense<0.000000e+00> : vector<256x64xf32>
    %6 = tpu.matmul %4, %5, %cst_6 {dimension_numbers = #tpu.dot_dimension_numbers<[1], [0], [0], [1], [0, 0, 1, 1], [], []>} : vector<256x128xbf16>, vector<128x64xbf16>, vector<256x64xf32> -> vector<256x64xf32>
    %c0_7 = arith.constant 0 : index
    %c0_8 = arith.constant 0 : index
    %7 = vector.load %arg3[%c0_7, %c0_8] : memref<1x64xf32, #tpu.memory_space<vmem>>, vector<1x64xf32>
    %8 = vector.broadcast %7 : vector<1x64xf32> to vector<256x64xf32>
    %9 = arith.addf %6, %8 : vector<256x64xf32>
    %cst_9 = arith.constant 0.000000e+00 : f32
    %10 = vector.broadcast %cst_9 : f32 to vector<256x64xf32>
    %11 = arith.maximumf %9, %10 : vector<256x64xf32>
    %12 = arith.truncf %11 : vector<256x64xf32> to vector<256x64xbf16>
    %13 = vector.extract_strided_slice %12 {offsets = [0, 0], sizes = [16, 64], strides = [1, 1]} : vector<256x64xbf16> to vector<16x64xbf16>
    %c19 = arith.constant 19 : index
    %c0_10 = arith.constant 0 : index
    %14 = vector.load %arg7[%c19, %c0_10] : memref<342x64xbf16, #tpu.memory_space<vmem>>, vector<16x64xbf16>
    tpu.vector_store %arg7[%c19, %c0_10], %13 {strides = array<i32>} : memref<342x64xbf16, #tpu.memory_space<vmem>>, vector<16x64xbf16>,
    %15 = vector.extract_strided_slice %12 {offsets = [16, 0], sizes = [16, 64], strides = [1, 1]} : vector<256x64xbf16> to vector<16x64xbf16>
    %c37 = arith.constant 37 : index
    %c0_11 = arith.constant 0 : index
    %16 = vector.load %arg7[%c37, %c0_11] : memref<342x64xbf16, #tpu.memory_space<vmem>>, vector<16x64xbf16>
    tpu.vector_store %arg7[%c37, %c0_11], %15 {strides = array<i32>} : memref<342x64xbf16, #tpu.memory_space<vmem>>, vector<16x64xbf16>,
    %17 = vector.extract_strided_slice %12 {offsets = [32, 0], sizes = [16, 64], strides = [1, 1]} : vector<256x64xbf16> to vector<16x64xbf16>
    %c55 = arith.constant 55 : index
    %c0_12 = arith.constant 0 : index
    %18 = vector.load %arg7[%c55, %c0_12] : memref<342x64xbf16, #tpu.memory_space<vmem>>, vector<16x64xbf16>
    tpu.vector_store %arg7[%c55, %c0_12], %17 {strides = array<i32>} : memref<342x64xbf16, #tpu.memory_space<vmem>>, vector<16x64xbf16>,
    %19 = vector.extract_strided_slice %12 {offsets = [48, 0], sizes = [16, 64], strides = [1, 1]} : vector<256x64xbf16> to vector<16x64xbf16>
    %c73 = arith.constant 73 : index
    %c0_13 = arith.constant 0 : index
    %20 = vector.load %arg7[%c73, %c0_13] : memref<342x64xbf16, #tpu.memory_space<vmem>>, vector<16x64xbf16>
    tpu.vector_store %arg7[%c73, %c0_13], %19 {strides = array<i32>} : memref<342x64xbf16, #tpu.memory_space<vmem>>, vector<16x64xbf16>,
    %21 = vector.extract_strided_slice %12 {offsets = [64, 0], sizes = [16, 64], strides = [1, 1]} : vector<256x64xbf16> to vector<16x64xbf16>
    %c91 = arith.constant 91 : index
    %c0_14 = arith.constant 0 : index
    %22 = vector.load %arg7[%c91, %c0_14] : memref<342x64xbf16, #tpu.memory_space<vmem>>, vector<16x64xbf16>
    tpu.vector_store %arg7[%c91, %c0_14], %21 {strides = array<i32>} : memref<342x64xbf16, #tpu.memory_space<vmem>>, vector<16x64xbf16>,
    %23 = vector.extract_strided_slice %12 {offsets = [80, 0], sizes = [16, 64], strides = [1, 1]} : vector<256x64xbf16> to vector<16x64xbf16>
    %c109 = arith.constant 109 : index
    %c0_15 = arith.constant 0 : index
    %24 = vector.load %arg7[%c109, %c0_15] : memref<342x64xbf16, #tpu.memory_space<vmem>>, vector<16x64xbf16>
    tpu.vector_store %arg7[%c109, %c0_15], %23 {strides = array<i32>} : memref<342x64xbf16, #tpu.memory_space<vmem>>, vector<16x64xbf16>,
    %25 = vector.extract_strided_slice %12 {offsets = [96, 0], sizes = [16, 64], strides = [1, 1]} : vector<256x64xbf16> to vector<16x64xbf16>
    %c127 = arith.constant 127 : index
    %c0_16 = arith.constant 0 : index
    %26 = vector.load %arg7[%c127, %c0_16] : memref<342x64xbf16, #tpu.memory_space<vmem>>, vector<16x64xbf16>
    tpu.vector_store %arg7[%c127, %c0_16], %25 {strides = array<i32>} : memref<342x64xbf16, #tpu.memory_space<vmem>>, vector<16x64xbf16>,
    %27 = vector.extract_strided_slice %12 {offsets = [112, 0], sizes = [16, 64], strides = [1, 1]} : vector<256x64xbf16> to vector<16x64xbf16>
    %c145 = arith.constant 145 : index
    %c0_17 = arith.constant 0 : index
    %28 = vector.load %arg7[%c145, %c0_17] : memref<342x64xbf16, #tpu.memory_space<vmem>>, vector<16x64xbf16>
    tpu.vector_store %arg7[%c145, %c0_17], %27 {strides = array<i32>} : memref<342x64xbf16, #tpu.memory_space<vmem>>, vector<16x64xbf16>,
    %29 = vector.extract_strided_slice %12 {offsets = [128, 0], sizes = [16, 64], strides = [1, 1]} : vector<256x64xbf16> to vector<16x64xbf16>
    %c163 = arith.constant 163 : index
    %c0_18 = arith.constant 0 : index
    %30 = vector.load %arg7[%c163, %c0_18] : memref<342x64xbf16, #tpu.memory_space<vmem>>, vector<16x64xbf16>
    tpu.vector_store %arg7[%c163, %c0_18], %29 {strides = array<i32>} : memref<342x64xbf16, #tpu.memory_space<vmem>>, vector<16x64xbf16>,
    %31 = vector.extract_strided_slice %12 {offsets = [144, 0], sizes = [16, 64], strides = [1, 1]} : vector<256x64xbf16> to vector<16x64xbf16>
    %c181 = arith.constant 181 : index
    %c0_19 = arith.constant 0 : index
    %32 = vector.load %arg7[%c181, %c0_19] : memref<342x64xbf16, #tpu.memory_space<vmem>>, vector<16x64xbf16>
    tpu.vector_store %arg7[%c181, %c0_19], %31 {strides = array<i32>} : memref<342x64xbf16, #tpu.memory_space<vmem>>, vector<16x64xbf16>,
    %33 = vector.extract_strided_slice %12 {offsets = [160, 0], sizes = [16, 64], strides = [1, 1]} : vector<256x64xbf16> to vector<16x64xbf16>
    %c199 = arith.constant 199 : index
    %c0_20 = arith.constant 0 : index
    %34 = vector.load %arg7[%c199, %c0_20] : memref<342x64xbf16, #tpu.memory_space<vmem>>, vector<16x64xbf16>
    tpu.vector_store %arg7[%c199, %c0_20], %33 {strides = array<i32>} : memref<342x64xbf16, #tpu.memory_space<vmem>>, vector<16x64xbf16>,
    %35 = vector.extract_strided_slice %12 {offsets = [176, 0], sizes = [16, 64], strides = [1, 1]} : vector<256x64xbf16> to vector<16x64xbf16>
    %c217 = arith.constant 217 : index
    %c0_21 = arith.constant 0 : index
    %36 = vector.load %arg7[%c217, %c0_21] : memref<342x64xbf16, #tpu.memory_space<vmem>>, vector<16x64xbf16>
    tpu.vector_store %arg7[%c217, %c0_21], %35 {strides = array<i32>} : memref<342x64xbf16, #tpu.memory_space<vmem>>, vector<16x64xbf16>,
    %37 = vector.extract_strided_slice %12 {offsets = [192, 0], sizes = [16, 64], strides = [1, 1]} : vector<256x64xbf16> to vector<16x64xbf16>
    %c235 = arith.constant 235 : index
    %c0_22 = arith.constant 0 : index
    %38 = vector.load %arg7[%c235, %c0_22] : memref<342x64xbf16, #tpu.memory_space<vmem>>, vector<16x64xbf16>
    tpu.vector_store %arg7[%c235, %c0_22], %37 {strides = array<i32>} : memref<342x64xbf16, #tpu.memory_space<vmem>>, vector<16x64xbf16>,
    %39 = vector.extract_strided_slice %12 {offsets = [208, 0], sizes = [16, 64], strides = [1, 1]} : vector<256x64xbf16> to vector<16x64xbf16>
    %c253 = arith.constant 253 : index
    %c0_23 = arith.constant 0 : index
    %40 = vector.load %arg7[%c253, %c0_23] : memref<342x64xbf16, #tpu.memory_space<vmem>>, vector<16x64xbf16>
    tpu.vector_store %arg7[%c253, %c0_23], %39 {strides = array<i32>} : memref<342x64xbf16, #tpu.memory_space<vmem>>, vector<16x64xbf16>,
    %41 = vector.extract_strided_slice %12 {offsets = [224, 0], sizes = [16, 64], strides = [1, 1]} : vector<256x64xbf16> to vector<16x64xbf16>
    %c271 = arith.constant 271 : index
    %c0_24 = arith.constant 0 : index
    %42 = vector.load %arg7[%c271, %c0_24] : memref<342x64xbf16, #tpu.memory_space<vmem>>, vector<16x64xbf16>
    tpu.vector_store %arg7[%c271, %c0_24], %41 {strides = array<i32>} : memref<342x64xbf16, #tpu.memory_space<vmem>>, vector<16x64xbf16>,
    %43 = vector.extract_strided_slice %12 {offsets = [240, 0], sizes = [16, 64], strides = [1, 1]} : vector<256x64xbf16> to vector<16x64xbf16>
    %c289 = arith.constant 289 : index
    %c0_25 = arith.constant 0 : index
    %44 = vector.load %arg7[%c289, %c0_25] : memref<342x64xbf16, #tpu.memory_space<vmem>>, vector<16x64xbf16>
    tpu.vector_store %arg7[%c289, %c0_25], %43 {strides = array<i32>} : memref<342x64xbf16, #tpu.memory_space<vmem>>, vector<16x64xbf16>,
    %c0_26 = arith.constant 0 : index
    %c0_27 = arith.constant 0 : index
    %45 = vector.load %arg5[%c0_26, %c0_27] : memref<1x128xf32, #tpu.memory_space<vmem>>, vector<1x128xf32>
    %cst_28 = arith.constant 0.000000e+00 : f32
    %46 = vector.broadcast %cst_28 : f32 to vector<144x128xf32>
    %c0_29 = arith.constant 0 : index
    %c0_30 = arith.constant 0 : index
    %47 = vector.load %arg7[%c0_29, %c0_30] : memref<342x64xbf16, #tpu.memory_space<vmem>>, vector<144x64xbf16>
    %c0_31 = arith.constant 0 : index
    %c0_32 = arith.constant 0 : index
    %c0_33 = arith.constant 0 : index
    %48 = vector.load %arg4[%c0_31, %c0_32, %c0_33] : memref<9x64x128xbf16, #tpu.memory_space<vmem>>, vector<1x64x128xbf16>
    %49 = vector.shape_cast %48 : vector<1x64x128xbf16> to vector<64x128xbf16>
    %cst_34 = arith.constant dense<0.000000e+00> : vector<144x128xf32>
    %50 = tpu.matmul %47, %49, %cst_34 {dimension_numbers = #tpu.dot_dimension_numbers<[1], [0], [0], [1], [0, 0, 1, 1], [], []>} : vector<144x64xbf16>, vector<64x128xbf16>, vector<144x128xf32> -> vector<144x128xf32>
    %51 = arith.addf %46, %50 : vector<144x128xf32>
    %c1 = arith.constant 1 : index
    %c0_35 = arith.constant 0 : index
    %52 = vector.load %arg7[%c1, %c0_35] : memref<342x64xbf16, #tpu.memory_space<vmem>>, vector<144x64xbf16>
    %c1_36 = arith.constant 1 : index
    %c0_37 = arith.constant 0 : index
    %c0_38 = arith.constant 0 : index
    %53 = vector.load %arg4[%c1_36, %c0_37, %c0_38] : memref<9x64x128xbf16, #tpu.memory_space<vmem>>, vector<1x64x128xbf16>
    %54 = vector.shape_cast %53 : vector<1x64x128xbf16> to vector<64x128xbf16>
    %cst_39 = arith.constant dense<0.000000e+00> : vector<144x128xf32>
    %55 = tpu.matmul %52, %54, %cst_39 {dimension_numbers = #tpu.dot_dimension_numbers<[1], [0], [0], [1], [0, 0, 1, 1], [], []>} : vector<144x64xbf16>, vector<64x128xbf16>, vector<144x128xf32> -> vector<144x128xf32>
    %56 = arith.addf %51, %55 : vector<144x128xf32>
    %c2 = arith.constant 2 : index
    %c0_40 = arith.constant 0 : index
    %57 = vector.load %arg7[%c2, %c0_40] : memref<342x64xbf16, #tpu.memory_space<vmem>>, vector<144x64xbf16>
    %c2_41 = arith.constant 2 : index
    %c0_42 = arith.constant 0 : index
    %c0_43 = arith.constant 0 : index
    %58 = vector.load %arg4[%c2_41, %c0_42, %c0_43] : memref<9x64x128xbf16, #tpu.memory_space<vmem>>, vector<1x64x128xbf16>
    %59 = vector.shape_cast %58 : vector<1x64x128xbf16> to vector<64x128xbf16>
    %cst_44 = arith.constant dense<0.000000e+00> : vector<144x128xf32>
    %60 = tpu.matmul %57, %59, %cst_44 {dimension_numbers = #tpu.dot_dimension_numbers<[1], [0], [0], [1], [0, 0, 1, 1], [], []>} : vector<144x64xbf16>, vector<64x128xbf16>, vector<144x128xf32> -> vector<144x128xf32>
    %61 = arith.addf %56, %60 : vector<144x128xf32>
    %c18 = arith.constant 18 : index
    %c0_45 = arith.constant 0 : index
    %62 = vector.load %arg7[%c18, %c0_45] : memref<342x64xbf16, #tpu.memory_space<vmem>>, vector<144x64xbf16>
    %c3 = arith.constant 3 : index
    %c0_46 = arith.constant 0 : index
    %c0_47 = arith.constant 0 : index
    %63 = vector.load %arg4[%c3, %c0_46, %c0_47] : memref<9x64x128xbf16, #tpu.memory_space<vmem>>, vector<1x64x128xbf16>
    %64 = vector.shape_cast %63 : vector<1x64x128xbf16> to vector<64x128xbf16>
    %cst_48 = arith.constant dense<0.000000e+00> : vector<144x128xf32>
    %65 = tpu.matmul %62, %64, %cst_48 {dimension_numbers = #tpu.dot_dimension_numbers<[1], [0], [0], [1], [0, 0, 1, 1], [], []>} : vector<144x64xbf16>, vector<64x128xbf16>, vector<144x128xf32> -> vector<144x128xf32>
    %66 = arith.addf %61, %65 : vector<144x128xf32>
    %c19_49 = arith.constant 19 : index
    %c0_50 = arith.constant 0 : index
    %67 = vector.load %arg7[%c19_49, %c0_50] : memref<342x64xbf16, #tpu.memory_space<vmem>>, vector<144x64xbf16>
    %c4 = arith.constant 4 : index
    %c0_51 = arith.constant 0 : index
    %c0_52 = arith.constant 0 : index
    %68 = vector.load %arg4[%c4, %c0_51, %c0_52] : memref<9x64x128xbf16, #tpu.memory_space<vmem>>, vector<1x64x128xbf16>
    %69 = vector.shape_cast %68 : vector<1x64x128xbf16> to vector<64x128xbf16>
    %cst_53 = arith.constant dense<0.000000e+00> : vector<144x128xf32>
    %70 = tpu.matmul %67, %69, %cst_53 {dimension_numbers = #tpu.dot_dimension_numbers<[1], [0], [0], [1], [0, 0, 1, 1], [], []>} : vector<144x64xbf16>, vector<64x128xbf16>, vector<144x128xf32> -> vector<144x128xf32>
    %71 = arith.addf %66, %70 : vector<144x128xf32>
    %c20 = arith.constant 20 : index
    %c0_54 = arith.constant 0 : index
    %72 = vector.load %arg7[%c20, %c0_54] : memref<342x64xbf16, #tpu.memory_space<vmem>>, vector<144x64xbf16>
    %c5 = arith.constant 5 : index
    %c0_55 = arith.constant 0 : index
    %c0_56 = arith.constant 0 : index
    %73 = vector.load %arg4[%c5, %c0_55, %c0_56] : memref<9x64x128xbf16, #tpu.memory_space<vmem>>, vector<1x64x128xbf16>
    %74 = vector.shape_cast %73 : vector<1x64x128xbf16> to vector<64x128xbf16>
    %cst_57 = arith.constant dense<0.000000e+00> : vector<144x128xf32>
    %75 = tpu.matmul %72, %74, %cst_57 {dimension_numbers = #tpu.dot_dimension_numbers<[1], [0], [0], [1], [0, 0, 1, 1], [], []>} : vector<144x64xbf16>, vector<64x128xbf16>, vector<144x128xf32> -> vector<144x128xf32>
    %76 = arith.addf %71, %75 : vector<144x128xf32>
    %c36 = arith.constant 36 : index
    %c0_58 = arith.constant 0 : index
    %77 = vector.load %arg7[%c36, %c0_58] : memref<342x64xbf16, #tpu.memory_space<vmem>>, vector<144x64xbf16>
    %c6 = arith.constant 6 : index
    %c0_59 = arith.constant 0 : index
    %c0_60 = arith.constant 0 : index
    %78 = vector.load %arg4[%c6, %c0_59, %c0_60] : memref<9x64x128xbf16, #tpu.memory_space<vmem>>, vector<1x64x128xbf16>
    %79 = vector.shape_cast %78 : vector<1x64x128xbf16> to vector<64x128xbf16>
    %cst_61 = arith.constant dense<0.000000e+00> : vector<144x128xf32>
    %80 = tpu.matmul %77, %79, %cst_61 {dimension_numbers = #tpu.dot_dimension_numbers<[1], [0], [0], [1], [0, 0, 1, 1], [], []>} : vector<144x64xbf16>, vector<64x128xbf16>, vector<144x128xf32> -> vector<144x128xf32>
    %81 = arith.addf %76, %80 : vector<144x128xf32>
    %c37_62 = arith.constant 37 : index
    %c0_63 = arith.constant 0 : index
    %82 = vector.load %arg7[%c37_62, %c0_63] : memref<342x64xbf16, #tpu.memory_space<vmem>>, vector<144x64xbf16>
    %c7 = arith.constant 7 : index
    %c0_64 = arith.constant 0 : index
    %c0_65 = arith.constant 0 : index
    %83 = vector.load %arg4[%c7, %c0_64, %c0_65] : memref<9x64x128xbf16, #tpu.memory_space<vmem>>, vector<1x64x128xbf16>
    %84 = vector.shape_cast %83 : vector<1x64x128xbf16> to vector<64x128xbf16>
    %cst_66 = arith.constant dense<0.000000e+00> : vector<144x128xf32>
    %85 = tpu.matmul %82, %84, %cst_66 {dimension_numbers = #tpu.dot_dimension_numbers<[1], [0], [0], [1], [0, 0, 1, 1], [], []>} : vector<144x64xbf16>, vector<64x128xbf16>, vector<144x128xf32> -> vector<144x128xf32>
    %86 = arith.addf %81, %85 : vector<144x128xf32>
    %c38 = arith.constant 38 : index
    %c0_67 = arith.constant 0 : index
    %87 = vector.load %arg7[%c38, %c0_67] : memref<342x64xbf16, #tpu.memory_space<vmem>>, vector<144x64xbf16>
    %c8 = arith.constant 8 : index
    %c0_68 = arith.constant 0 : index
    %c0_69 = arith.constant 0 : index
    %88 = vector.load %arg4[%c8, %c0_68, %c0_69] : memref<9x64x128xbf16, #tpu.memory_space<vmem>>, vector<1x64x128xbf16>
    %89 = vector.shape_cast %88 : vector<1x64x128xbf16> to vector<64x128xbf16>
    %cst_70 = arith.constant dense<0.000000e+00> : vector<144x128xf32>
    %90 = tpu.matmul %87, %89, %cst_70 {dimension_numbers = #tpu.dot_dimension_numbers<[1], [0], [0], [1], [0, 0, 1, 1], [], []>} : vector<144x64xbf16>, vector<64x128xbf16>, vector<144x128xf32> -> vector<144x128xf32>
    %91 = arith.addf %86, %90 : vector<144x128xf32>
    %92 = vector.broadcast %45 : vector<1x128xf32> to vector<144x128xf32>
    %93 = arith.addf %91, %92 : vector<144x128xf32>
    %cst_71 = arith.constant 0.000000e+00 : f32
    %94 = vector.broadcast %cst_71 : f32 to vector<144x128xf32>
    %95 = arith.maximumf %93, %94 : vector<144x128xf32>
    %c0_72 = arith.constant 0 : index
    %c0_73 = arith.constant 0 : index
    %c0_74 = arith.constant 0 : index
    %96 = vector.load %arg1[%c0_72, %c0_73, %c0_74] : memref<1x256x128xf32, #tpu.memory_space<vmem>>, vector<1x16x128xf32>
    %97 = vector.shape_cast %96 : vector<1x16x128xf32> to vector<16x128xf32>
    %98 = vector.extract_strided_slice %95 {offsets = [0, 0], sizes = [16, 128], strides = [1, 1]} : vector<144x128xf32> to vector<16x128xf32>
    %99 = arith.addf %97, %98 : vector<16x128xf32>
    %c0_75 = arith.constant 0 : index
    %c0_76 = arith.constant 0 : index
    %c0_77 = arith.constant 0 : index
    %100 = vector.load %arg6[%c0_75, %c0_76, %c0_77] : memref<1x256x128xf32, #tpu.memory_space<vmem>>, vector<1x16x128xf32>
    %101 = vector.shape_cast %100 : vector<1x16x128xf32> to vector<16x128xf32>
    %102 = vector.shape_cast %99 : vector<16x128xf32> to vector<1x16x128xf32>
    tpu.vector_store %arg6[%c0_75, %c0_76, %c0_77], %102 {strides = array<i32>} : memref<1x256x128xf32, #tpu.memory_space<vmem>>, vector<1x16x128xf32>,
    %c0_78 = arith.constant 0 : index
    %c16 = arith.constant 16 : index
    %c0_79 = arith.constant 0 : index
    %103 = vector.load %arg1[%c0_78, %c16, %c0_79] : memref<1x256x128xf32, #tpu.memory_space<vmem>>, vector<1x16x128xf32>
    %104 = vector.shape_cast %103 : vector<1x16x128xf32> to vector<16x128xf32>
    %105 = vector.extract_strided_slice %95 {offsets = [18, 0], sizes = [16, 128], strides = [1, 1]} : vector<144x128xf32> to vector<16x128xf32>
    %106 = arith.addf %104, %105 : vector<16x128xf32>
    %c0_80 = arith.constant 0 : index
    %c16_81 = arith.constant 16 : index
    %c0_82 = arith.constant 0 : index
    %107 = vector.load %arg6[%c0_80, %c16_81, %c0_82] : memref<1x256x128xf32, #tpu.memory_space<vmem>>, vector<1x16x128xf32>
    %108 = vector.shape_cast %107 : vector<1x16x128xf32> to vector<16x128xf32>
    %109 = vector.shape_cast %106 : vector<16x128xf32> to vector<1x16x128xf32>
    tpu.vector_store %arg6[%c0_80, %c16_81, %c0_82], %109 {strides = array<i32>} : memref<1x256x128xf32, #tpu.memory_space<vmem>>, vector<1x16x128xf32>,
    %c0_83 = arith.constant 0 : index
    %c32 = arith.constant 32 : index
    %c0_84 = arith.constant 0 : index
    %110 = vector.load %arg1[%c0_83, %c32, %c0_84] : memref<1x256x128xf32, #tpu.memory_space<vmem>>, vector<1x16x128xf32>
    %111 = vector.shape_cast %110 : vector<1x16x128xf32> to vector<16x128xf32>
    %112 = vector.extract_strided_slice %95 {offsets = [36, 0], sizes = [16, 128], strides = [1, 1]} : vector<144x128xf32> to vector<16x128xf32>
    %113 = arith.addf %111, %112 : vector<16x128xf32>
    %c0_85 = arith.constant 0 : index
    %c32_86 = arith.constant 32 : index
    %c0_87 = arith.constant 0 : index
    %114 = vector.load %arg6[%c0_85, %c32_86, %c0_87] : memref<1x256x128xf32, #tpu.memory_space<vmem>>, vector<1x16x128xf32>
    %115 = vector.shape_cast %114 : vector<1x16x128xf32> to vector<16x128xf32>
    %116 = vector.shape_cast %113 : vector<16x128xf32> to vector<1x16x128xf32>
    tpu.vector_store %arg6[%c0_85, %c32_86, %c0_87], %116 {strides = array<i32>} : memref<1x256x128xf32, #tpu.memory_space<vmem>>, vector<1x16x128xf32>,
    %c0_88 = arith.constant 0 : index
    %c48 = arith.constant 48 : index
    %c0_89 = arith.constant 0 : index
    %117 = vector.load %arg1[%c0_88, %c48, %c0_89] : memref<1x256x128xf32, #tpu.memory_space<vmem>>, vector<1x16x128xf32>
    %118 = vector.shape_cast %117 : vector<1x16x128xf32> to vector<16x128xf32>
    %119 = vector.extract_strided_slice %95 {offsets = [54, 0], sizes = [16, 128], strides = [1, 1]} : vector<144x128xf32> to vector<16x128xf32>
    %120 = arith.addf %118, %119 : vector<16x128xf32>
    %c0_90 = arith.constant 0 : index
    %c48_91 = arith.constant 48 : index
    %c0_92 = arith.constant 0 : index
    %121 = vector.load %arg6[%c0_90, %c48_91, %c0_92] : memref<1x256x128xf32, #tpu.memory_space<vmem>>, vector<1x16x128xf32>
    %122 = vector.shape_cast %121 : vector<1x16x128xf32> to vector<16x128xf32>
    %123 = vector.shape_cast %120 : vector<16x128xf32> to vector<1x16x128xf32>
    tpu.vector_store %arg6[%c0_90, %c48_91, %c0_92], %123 {strides = array<i32>} : memref<1x256x128xf32, #tpu.memory_space<vmem>>, vector<1x16x128xf32>,
    %c0_93 = arith.constant 0 : index
    %c64 = arith.constant 64 : index
    %c0_94 = arith.constant 0 : index
    %124 = vector.load %arg1[%c0_93, %c64, %c0_94] : memref<1x256x128xf32, #tpu.memory_space<vmem>>, vector<1x16x128xf32>
    %125 = vector.shape_cast %124 : vector<1x16x128xf32> to vector<16x128xf32>
    %126 = vector.extract_strided_slice %95 {offsets = [72, 0], sizes = [16, 128], strides = [1, 1]} : vector<144x128xf32> to vector<16x128xf32>
    %127 = arith.addf %125, %126 : vector<16x128xf32>
    %c0_95 = arith.constant 0 : index
    %c64_96 = arith.constant 64 : index
    %c0_97 = arith.constant 0 : index
    %128 = vector.load %arg6[%c0_95, %c64_96, %c0_97] : memref<1x256x128xf32, #tpu.memory_space<vmem>>, vector<1x16x128xf32>
    %129 = vector.shape_cast %128 : vector<1x16x128xf32> to vector<16x128xf32>
    %130 = vector.shape_cast %127 : vector<16x128xf32> to vector<1x16x128xf32>
    tpu.vector_store %arg6[%c0_95, %c64_96, %c0_97], %130 {strides = array<i32>} : memref<1x256x128xf32, #tpu.memory_space<vmem>>, vector<1x16x128xf32>,
    %c0_98 = arith.constant 0 : index
    %c80 = arith.constant 80 : index
    %c0_99 = arith.constant 0 : index
    %131 = vector.load %arg1[%c0_98, %c80, %c0_99] : memref<1x256x128xf32, #tpu.memory_space<vmem>>, vector<1x16x128xf32>
    %132 = vector.shape_cast %131 : vector<1x16x128xf32> to vector<16x128xf32>
    %133 = vector.extract_strided_slice %95 {offsets = [90, 0], sizes = [16, 128], strides = [1, 1]} : vector<144x128xf32> to vector<16x128xf32>
    %134 = arith.addf %132, %133 : vector<16x128xf32>
    %c0_100 = arith.constant 0 : index
    %c80_101 = arith.constant 80 : index
    %c0_102 = arith.constant 0 : index
    %135 = vector.load %arg6[%c0_100, %c80_101, %c0_102] : memref<1x256x128xf32, #tpu.memory_space<vmem>>, vector<1x16x128xf32>
    %136 = vector.shape_cast %135 : vector<1x16x128xf32> to vector<16x128xf32>
    %137 = vector.shape_cast %134 : vector<16x128xf32> to vector<1x16x128xf32>
    tpu.vector_store %arg6[%c0_100, %c80_101, %c0_102], %137 {strides = array<i32>} : memref<1x256x128xf32, #tpu.memory_space<vmem>>, vector<1x16x128xf32>,
    %c0_103 = arith.constant 0 : index
    %c96 = arith.constant 96 : index
    %c0_104 = arith.constant 0 : index
    %138 = vector.load %arg1[%c0_103, %c96, %c0_104] : memref<1x256x128xf32, #tpu.memory_space<vmem>>, vector<1x16x128xf32>
    %139 = vector.shape_cast %138 : vector<1x16x128xf32> to vector<16x128xf32>
    %140 = vector.extract_strided_slice %95 {offsets = [108, 0], sizes = [16, 128], strides = [1, 1]} : vector<144x128xf32> to vector<16x128xf32>
    %141 = arith.addf %139, %140 : vector<16x128xf32>
    %c0_105 = arith.constant 0 : index
    %c96_106 = arith.constant 96 : index
    %c0_107 = arith.constant 0 : index
    %142 = vector.load %arg6[%c0_105, %c96_106, %c0_107] : memref<1x256x128xf32, #tpu.memory_space<vmem>>, vector<1x16x128xf32>
    %143 = vector.shape_cast %142 : vector<1x16x128xf32> to vector<16x128xf32>
    %144 = vector.shape_cast %141 : vector<16x128xf32> to vector<1x16x128xf32>
    tpu.vector_store %arg6[%c0_105, %c96_106, %c0_107], %144 {strides = array<i32>} : memref<1x256x128xf32, #tpu.memory_space<vmem>>, vector<1x16x128xf32>,
    %c0_108 = arith.constant 0 : index
    %c112 = arith.constant 112 : index
    %c0_109 = arith.constant 0 : index
    %145 = vector.load %arg1[%c0_108, %c112, %c0_109] : memref<1x256x128xf32, #tpu.memory_space<vmem>>, vector<1x16x128xf32>
    %146 = vector.shape_cast %145 : vector<1x16x128xf32> to vector<16x128xf32>
    %147 = vector.extract_strided_slice %95 {offsets = [126, 0], sizes = [16, 128], strides = [1, 1]} : vector<144x128xf32> to vector<16x128xf32>
    %148 = arith.addf %146, %147 : vector<16x128xf32>
    %c0_110 = arith.constant 0 : index
    %c112_111 = arith.constant 112 : index
    %c0_112 = arith.constant 0 : index
    %149 = vector.load %arg6[%c0_110, %c112_111, %c0_112] : memref<1x256x128xf32, #tpu.memory_space<vmem>>, vector<1x16x128xf32>
    %150 = vector.shape_cast %149 : vector<1x16x128xf32> to vector<16x128xf32>
    %151 = vector.shape_cast %148 : vector<16x128xf32> to vector<1x16x128xf32>
    tpu.vector_store %arg6[%c0_110, %c112_111, %c0_112], %151 {strides = array<i32>} : memref<1x256x128xf32, #tpu.memory_space<vmem>>, vector<1x16x128xf32>,
    %cst_113 = arith.constant 0.000000e+00 : f32
    %152 = vector.broadcast %cst_113 : f32 to vector<144x128xf32>
    %c144 = arith.constant 144 : index
    %c0_114 = arith.constant 0 : index
    %153 = vector.load %arg7[%c144, %c0_114] : memref<342x64xbf16, #tpu.memory_space<vmem>>, vector<144x64xbf16>
    %c0_115 = arith.constant 0 : index
    %c0_116 = arith.constant 0 : index
    %c0_117 = arith.constant 0 : index
    %154 = vector.load %arg4[%c0_115, %c0_116, %c0_117] : memref<9x64x128xbf16, #tpu.memory_space<vmem>>, vector<1x64x128xbf16>
    %155 = vector.shape_cast %154 : vector<1x64x128xbf16> to vector<64x128xbf16>
    %cst_118 = arith.constant dense<0.000000e+00> : vector<144x128xf32>
    %156 = tpu.matmul %153, %155, %cst_118 {dimension_numbers = #tpu.dot_dimension_numbers<[1], [0], [0], [1], [0, 0, 1, 1], [], []>} : vector<144x64xbf16>, vector<64x128xbf16>, vector<144x128xf32> -> vector<144x128xf32>
    %157 = arith.addf %152, %156 : vector<144x128xf32>
    %c145_119 = arith.constant 145 : index
    %c0_120 = arith.constant 0 : index
    %158 = vector.load %arg7[%c145_119, %c0_120] : memref<342x64xbf16, #tpu.memory_space<vmem>>, vector<144x64xbf16>
    %c1_121 = arith.constant 1 : index
    %c0_122 = arith.constant 0 : index
    %c0_123 = arith.constant 0 : index
    %159 = vector.load %arg4[%c1_121, %c0_122, %c0_123] : memref<9x64x128xbf16, #tpu.memory_space<vmem>>, vector<1x64x128xbf16>
    %160 = vector.shape_cast %159 : vector<1x64x128xbf16> to vector<64x128xbf16>
    %cst_124 = arith.constant dense<0.000000e+00> : vector<144x128xf32>
    %161 = tpu.matmul %158, %160, %cst_124 {dimension_numbers = #tpu.dot_dimension_numbers<[1], [0], [0], [1], [0, 0, 1, 1], [], []>} : vector<144x64xbf16>, vector<64x128xbf16>, vector<144x128xf32> -> vector<144x128xf32>
    %162 = arith.addf %157, %161 : vector<144x128xf32>
    %c146 = arith.constant 146 : index
    %c0_125 = arith.constant 0 : index
    %163 = vector.load %arg7[%c146, %c0_125] : memref<342x64xbf16, #tpu.memory_space<vmem>>, vector<144x64xbf16>
    %c2_126 = arith.constant 2 : index
    %c0_127 = arith.constant 0 : index
    %c0_128 = arith.constant 0 : index
    %164 = vector.load %arg4[%c2_126, %c0_127, %c0_128] : memref<9x64x128xbf16, #tpu.memory_space<vmem>>, vector<1x64x128xbf16>
    %165 = vector.shape_cast %164 : vector<1x64x128xbf16> to vector<64x128xbf16>
    %cst_129 = arith.constant dense<0.000000e+00> : vector<144x128xf32>
    %166 = tpu.matmul %163, %165, %cst_129 {dimension_numbers = #tpu.dot_dimension_numbers<[1], [0], [0], [1], [0, 0, 1, 1], [], []>} : vector<144x64xbf16>, vector<64x128xbf16>, vector<144x128xf32> -> vector<144x128xf32>
    %167 = arith.addf %162, %166 : vector<144x128xf32>
    %c162 = arith.constant 162 : index
    %c0_130 = arith.constant 0 : index
    %168 = vector.load %arg7[%c162, %c0_130] : memref<342x64xbf16, #tpu.memory_space<vmem>>, vector<144x64xbf16>
    %c3_131 = arith.constant 3 : index
    %c0_132 = arith.constant 0 : index
    %c0_133 = arith.constant 0 : index
    %169 = vector.load %arg4[%c3_131, %c0_132, %c0_133] : memref<9x64x128xbf16, #tpu.memory_space<vmem>>, vector<1x64x128xbf16>
    %170 = vector.shape_cast %169 : vector<1x64x128xbf16> to vector<64x128xbf16>
    %cst_134 = arith.constant dense<0.000000e+00> : vector<144x128xf32>
    %171 = tpu.matmul %168, %170, %cst_134 {dimension_numbers = #tpu.dot_dimension_numbers<[1], [0], [0], [1], [0, 0, 1, 1], [], []>} : vector<144x64xbf16>, vector<64x128xbf16>, vector<144x128xf32> -> vector<144x128xf32>
    %172 = arith.addf %167, %171 : vector<144x128xf32>
    %c163_135 = arith.constant 163 : index
    %c0_136 = arith.constant 0 : index
    %173 = vector.load %arg7[%c163_135, %c0_136] : memref<342x64xbf16, #tpu.memory_space<vmem>>, vector<144x64xbf16>
    %c4_137 = arith.constant 4 : index
    %c0_138 = arith.constant 0 : index
    %c0_139 = arith.constant 0 : index
    %174 = vector.load %arg4[%c4_137, %c0_138, %c0_139] : memref<9x64x128xbf16, #tpu.memory_space<vmem>>, vector<1x64x128xbf16>
    %175 = vector.shape_cast %174 : vector<1x64x128xbf16> to vector<64x128xbf16>
    %cst_140 = arith.constant dense<0.000000e+00> : vector<144x128xf32>
    %176 = tpu.matmul %173, %175, %cst_140 {dimension_numbers = #tpu.dot_dimension_numbers<[1], [0], [0], [1], [0, 0, 1, 1], [], []>} : vector<144x64xbf16>, vector<64x128xbf16>, vector<144x128xf32> -> vector<144x128xf32>
    %177 = arith.addf %172, %176 : vector<144x128xf32>
    %c164 = arith.constant 164 : index
    %c0_141 = arith.constant 0 : index
    %178 = vector.load %arg7[%c164, %c0_141] : memref<342x64xbf16, #tpu.memory_space<vmem>>, vector<144x64xbf16>
    %c5_142 = arith.constant 5 : index
    %c0_143 = arith.constant 0 : index
    %c0_144 = arith.constant 0 : index
    %179 = vector.load %arg4[%c5_142, %c0_143, %c0_144] : memref<9x64x128xbf16, #tpu.memory_space<vmem>>, vector<1x64x128xbf16>
    %180 = vector.shape_cast %179 : vector<1x64x128xbf16> to vector<64x128xbf16>
    %cst_145 = arith.constant dense<0.000000e+00> : vector<144x128xf32>
    %181 = tpu.matmul %178, %180, %cst_145 {dimension_numbers = #tpu.dot_dimension_numbers<[1], [0], [0], [1], [0, 0, 1, 1], [], []>} : vector<144x64xbf16>, vector<64x128xbf16>, vector<144x128xf32> -> vector<144x128xf32>
    %182 = arith.addf %177, %181 : vector<144x128xf32>
    %c180 = arith.constant 180 : index
    %c0_146 = arith.constant 0 : index
    %183 = vector.load %arg7[%c180, %c0_146] : memref<342x64xbf16, #tpu.memory_space<vmem>>, vector<144x64xbf16>
    %c6_147 = arith.constant 6 : index
    %c0_148 = arith.constant 0 : index
    %c0_149 = arith.constant 0 : index
    %184 = vector.load %arg4[%c6_147, %c0_148, %c0_149] : memref<9x64x128xbf16, #tpu.memory_space<vmem>>, vector<1x64x128xbf16>
    %185 = vector.shape_cast %184 : vector<1x64x128xbf16> to vector<64x128xbf16>
    %cst_150 = arith.constant dense<0.000000e+00> : vector<144x128xf32>
    %186 = tpu.matmul %183, %185, %cst_150 {dimension_numbers = #tpu.dot_dimension_numbers<[1], [0], [0], [1], [0, 0, 1, 1], [], []>} : vector<144x64xbf16>, vector<64x128xbf16>, vector<144x128xf32> -> vector<144x128xf32>
    %187 = arith.addf %182, %186 : vector<144x128xf32>
    %c181_151 = arith.constant 181 : index
    %c0_152 = arith.constant 0 : index
    %188 = vector.load %arg7[%c181_151, %c0_152] : memref<342x64xbf16, #tpu.memory_space<vmem>>, vector<144x64xbf16>
    %c7_153 = arith.constant 7 : index
    %c0_154 = arith.constant 0 : index
    %c0_155 = arith.constant 0 : index
    %189 = vector.load %arg4[%c7_153, %c0_154, %c0_155] : memref<9x64x128xbf16, #tpu.memory_space<vmem>>, vector<1x64x128xbf16>
    %190 = vector.shape_cast %189 : vector<1x64x128xbf16> to vector<64x128xbf16>
    %cst_156 = arith.constant dense<0.000000e+00> : vector<144x128xf32>
    %191 = tpu.matmul %188, %190, %cst_156 {dimension_numbers = #tpu.dot_dimension_numbers<[1], [0], [0], [1], [0, 0, 1, 1], [], []>} : vector<144x64xbf16>, vector<64x128xbf16>, vector<144x128xf32> -> vector<144x128xf32>
    %192 = arith.addf %187, %191 : vector<144x128xf32>
    %c182 = arith.constant 182 : index
    %c0_157 = arith.constant 0 : index
    %193 = vector.load %arg7[%c182, %c0_157] : memref<342x64xbf16, #tpu.memory_space<vmem>>, vector<144x64xbf16>
    %c8_158 = arith.constant 8 : index
    %c0_159 = arith.constant 0 : index
    %c0_160 = arith.constant 0 : index
    %194 = vector.load %arg4[%c8_158, %c0_159, %c0_160] : memref<9x64x128xbf16, #tpu.memory_space<vmem>>, vector<1x64x128xbf16>
    %195 = vector.shape_cast %194 : vector<1x64x128xbf16> to vector<64x128xbf16>
    %cst_161 = arith.constant dense<0.000000e+00> : vector<144x128xf32>
    %196 = tpu.matmul %193, %195, %cst_161 {dimension_numbers = #tpu.dot_dimension_numbers<[1], [0], [0], [1], [0, 0, 1, 1], [], []>} : vector<144x64xbf16>, vector<64x128xbf16>, vector<144x128xf32> -> vector<144x128xf32>
    %197 = arith.addf %192, %196 : vector<144x128xf32>
    %198 = vector.broadcast %45 : vector<1x128xf32> to vector<144x128xf32>
    %199 = arith.addf %197, %198 : vector<144x128xf32>
    %cst_162 = arith.constant 0.000000e+00 : f32
    %200 = vector.broadcast %cst_162 : f32 to vector<144x128xf32>
    %201 = arith.maximumf %199, %200 : vector<144x128xf32>
    %c0_163 = arith.constant 0 : index
    %c128 = arith.constant 128 : index
    %c0_164 = arith.constant 0 : index
    %202 = vector.load %arg1[%c0_163, %c128, %c0_164] : memref<1x256x128xf32, #tpu.memory_space<vmem>>, vector<1x16x128xf32>
    %203 = vector.shape_cast %202 : vector<1x16x128xf32> to vector<16x128xf32>
    %204 = vector.extract_strided_slice %201 {offsets = [0, 0], sizes = [16, 128], strides = [1, 1]} : vector<144x128xf32> to vector<16x128xf32>
    %205 = arith.addf %203, %204 : vector<16x128xf32>
    %c0_165 = arith.constant 0 : index
    %c128_166 = arith.constant 128 : index
    %c0_167 = arith.constant 0 : index
    %206 = vector.load %arg6[%c0_165, %c128_166, %c0_167] : memref<1x256x128xf32, #tpu.memory_space<vmem>>, vector<1x16x128xf32>
    %207 = vector.shape_cast %206 : vector<1x16x128xf32> to vector<16x128xf32>
    %208 = vector.shape_cast %205 : vector<16x128xf32> to vector<1x16x128xf32>
    tpu.vector_store %arg6[%c0_165, %c128_166, %c0_167], %208 {strides = array<i32>} : memref<1x256x128xf32, #tpu.memory_space<vmem>>, vector<1x16x128xf32>,
    %c0_168 = arith.constant 0 : index
    %c144_169 = arith.constant 144 : index
    %c0_170 = arith.constant 0 : index
    %209 = vector.load %arg1[%c0_168, %c144_169, %c0_170] : memref<1x256x128xf32, #tpu.memory_space<vmem>>, vector<1x16x128xf32>
    %210 = vector.shape_cast %209 : vector<1x16x128xf32> to vector<16x128xf32>
    %211 = vector.extract_strided_slice %201 {offsets = [18, 0], sizes = [16, 128], strides = [1, 1]} : vector<144x128xf32> to vector<16x128xf32>
    %212 = arith.addf %210, %211 : vector<16x128xf32>
    %c0_171 = arith.constant 0 : index
    %c144_172 = arith.constant 144 : index
    %c0_173 = arith.constant 0 : index
    %213 = vector.load %arg6[%c0_171, %c144_172, %c0_173] : memref<1x256x128xf32, #tpu.memory_space<vmem>>, vector<1x16x128xf32>
    %214 = vector.shape_cast %213 : vector<1x16x128xf32> to vector<16x128xf32>
    %215 = vector.shape_cast %212 : vector<16x128xf32> to vector<1x16x128xf32>
    tpu.vector_store %arg6[%c0_171, %c144_172, %c0_173], %215 {strides = array<i32>} : memref<1x256x128xf32, #tpu.memory_space<vmem>>, vector<1x16x128xf32>,
    %c0_174 = arith.constant 0 : index
    %c160 = arith.constant 160 : index
    %c0_175 = arith.constant 0 : index
    %216 = vector.load %arg1[%c0_174, %c160, %c0_175] : memref<1x256x128xf32, #tpu.memory_space<vmem>>, vector<1x16x128xf32>
    %217 = vector.shape_cast %216 : vector<1x16x128xf32> to vector<16x128xf32>
    %218 = vector.extract_strided_slice %201 {offsets = [36, 0], sizes = [16, 128], strides = [1, 1]} : vector<144x128xf32> to vector<16x128xf32>
    %219 = arith.addf %217, %218 : vector<16x128xf32>
    %c0_176 = arith.constant 0 : index
    %c160_177 = arith.constant 160 : index
    %c0_178 = arith.constant 0 : index
    %220 = vector.load %arg6[%c0_176, %c160_177, %c0_178] : memref<1x256x128xf32, #tpu.memory_space<vmem>>, vector<1x16x128xf32>
    %221 = vector.shape_cast %220 : vector<1x16x128xf32> to vector<16x128xf32>
    %222 = vector.shape_cast %219 : vector<16x128xf32> to vector<1x16x128xf32>
    tpu.vector_store %arg6[%c0_176, %c160_177, %c0_178], %222 {strides = array<i32>} : memref<1x256x128xf32, #tpu.memory_space<vmem>>, vector<1x16x128xf32>,
    %c0_179 = arith.constant 0 : index
    %c176 = arith.constant 176 : index
    %c0_180 = arith.constant 0 : index
    %223 = vector.load %arg1[%c0_179, %c176, %c0_180] : memref<1x256x128xf32, #tpu.memory_space<vmem>>, vector<1x16x128xf32>
    %224 = vector.shape_cast %223 : vector<1x16x128xf32> to vector<16x128xf32>
    %225 = vector.extract_strided_slice %201 {offsets = [54, 0], sizes = [16, 128], strides = [1, 1]} : vector<144x128xf32> to vector<16x128xf32>
    %226 = arith.addf %224, %225 : vector<16x128xf32>
    %c0_181 = arith.constant 0 : index
    %c176_182 = arith.constant 176 : index
    %c0_183 = arith.constant 0 : index
    %227 = vector.load %arg6[%c0_181, %c176_182, %c0_183] : memref<1x256x128xf32, #tpu.memory_space<vmem>>, vector<1x16x128xf32>
    %228 = vector.shape_cast %227 : vector<1x16x128xf32> to vector<16x128xf32>
    %229 = vector.shape_cast %226 : vector<16x128xf32> to vector<1x16x128xf32>
    tpu.vector_store %arg6[%c0_181, %c176_182, %c0_183], %229 {strides = array<i32>} : memref<1x256x128xf32, #tpu.memory_space<vmem>>, vector<1x16x128xf32>,
    %c0_184 = arith.constant 0 : index
    %c192 = arith.constant 192 : index
    %c0_185 = arith.constant 0 : index
    %230 = vector.load %arg1[%c0_184, %c192, %c0_185] : memref<1x256x128xf32, #tpu.memory_space<vmem>>, vector<1x16x128xf32>
    %231 = vector.shape_cast %230 : vector<1x16x128xf32> to vector<16x128xf32>
    %232 = vector.extract_strided_slice %201 {offsets = [72, 0], sizes = [16, 128], strides = [1, 1]} : vector<144x128xf32> to vector<16x128xf32>
    %233 = arith.addf %231, %232 : vector<16x128xf32>
    %c0_186 = arith.constant 0 : index
    %c192_187 = arith.constant 192 : index
    %c0_188 = arith.constant 0 : index
    %234 = vector.load %arg6[%c0_186, %c192_187, %c0_188] : memref<1x256x128xf32, #tpu.memory_space<vmem>>, vector<1x16x128xf32>
    %235 = vector.shape_cast %234 : vector<1x16x128xf32> to vector<16x128xf32>
    %236 = vector.shape_cast %233 : vector<16x128xf32> to vector<1x16x128xf32>
    tpu.vector_store %arg6[%c0_186, %c192_187, %c0_188], %236 {strides = array<i32>} : memref<1x256x128xf32, #tpu.memory_space<vmem>>, vector<1x16x128xf32>,
    %c0_189 = arith.constant 0 : index
    %c208 = arith.constant 208 : index
    %c0_190 = arith.constant 0 : index
    %237 = vector.load %arg1[%c0_189, %c208, %c0_190] : memref<1x256x128xf32, #tpu.memory_space<vmem>>, vector<1x16x128xf32>
    %238 = vector.shape_cast %237 : vector<1x16x128xf32> to vector<16x128xf32>
    %239 = vector.extract_strided_slice %201 {offsets = [90, 0], sizes = [16, 128], strides = [1, 1]} : vector<144x128xf32> to vector<16x128xf32>
    %240 = arith.addf %238, %239 : vector<16x128xf32>
    %c0_191 = arith.constant 0 : index
    %c208_192 = arith.constant 208 : index
    %c0_193 = arith.constant 0 : index
    %241 = vector.load %arg6[%c0_191, %c208_192, %c0_193] : memref<1x256x128xf32, #tpu.memory_space<vmem>>, vector<1x16x128xf32>
    %242 = vector.shape_cast %241 : vector<1x16x128xf32> to vector<16x128xf32>
    %243 = vector.shape_cast %240 : vector<16x128xf32> to vector<1x16x128xf32>
    tpu.vector_store %arg6[%c0_191, %c208_192, %c0_193], %243 {strides = array<i32>} : memref<1x256x128xf32, #tpu.memory_space<vmem>>, vector<1x16x128xf32>,
    %c0_194 = arith.constant 0 : index
    %c224 = arith.constant 224 : index
    %c0_195 = arith.constant 0 : index
    %244 = vector.load %arg1[%c0_194, %c224, %c0_195] : memref<1x256x128xf32, #tpu.memory_space<vmem>>, vector<1x16x128xf32>
    %245 = vector.shape_cast %244 : vector<1x16x128xf32> to vector<16x128xf32>
    %246 = vector.extract_strided_slice %201 {offsets = [108, 0], sizes = [16, 128], strides = [1, 1]} : vector<144x128xf32> to vector<16x128xf32>
    %247 = arith.addf %245, %246 : vector<16x128xf32>
    %c0_196 = arith.constant 0 : index
    %c224_197 = arith.constant 224 : index
    %c0_198 = arith.constant 0 : index
    %248 = vector.load %arg6[%c0_196, %c224_197, %c0_198] : memref<1x256x128xf32, #tpu.memory_space<vmem>>, vector<1x16x128xf32>
    %249 = vector.shape_cast %248 : vector<1x16x128xf32> to vector<16x128xf32>
    %250 = vector.shape_cast %247 : vector<16x128xf32> to vector<1x16x128xf32>
    tpu.vector_store %arg6[%c0_196, %c224_197, %c0_198], %250 {strides = array<i32>} : memref<1x256x128xf32, #tpu.memory_space<vmem>>, vector<1x16x128xf32>,
    %c0_199 = arith.constant 0 : index
    %c240 = arith.constant 240 : index
    %c0_200 = arith.constant 0 : index
    %251 = vector.load %arg1[%c0_199, %c240, %c0_200] : memref<1x256x128xf32, #tpu.memory_space<vmem>>, vector<1x16x128xf32>
    %252 = vector.shape_cast %251 : vector<1x16x128xf32> to vector<16x128xf32>
    %253 = vector.extract_strided_slice %201 {offsets = [126, 0], sizes = [16, 128], strides = [1, 1]} : vector<144x128xf32> to vector<16x128xf32>
    %254 = arith.addf %252, %253 : vector<16x128xf32>
    %c0_201 = arith.constant 0 : index
    %c240_202 = arith.constant 240 : index
    %c0_203 = arith.constant 0 : index
    %255 = vector.load %arg6[%c0_201, %c240_202, %c0_203] : memref<1x256x128xf32, #tpu.memory_space<vmem>>, vector<1x16x128xf32>
    %256 = vector.shape_cast %255 : vector<1x16x128xf32> to vector<16x128xf32>
    %257 = vector.shape_cast %254 : vector<16x128xf32> to vector<1x16x128xf32>
    tpu.vector_store %arg6[%c0_201, %c240_202, %c0_203], %257 {strides = array<i32>} : memref<1x256x128xf32, #tpu.memory_space<vmem>>, vector<1x16x128xf32>,
    return
  }
  func.func @transform_0(%arg0: i32) -> (i32, i32, i32) {
    %c0_i32 = arith.constant 0 : i32
    %c0_i32_0 = arith.constant 0 : i32
    %c0_i32_1 = arith.constant 0 : i32
    return %arg0, %c0_i32, %c0_i32_0 : i32, i32, i32
  }
  func.func @transform_1(%arg0: i32) -> (i32, i32) {
    %c0_i32 = arith.constant 0 : i32
    %c0_i32_0 = arith.constant 0 : i32
    %c0_i32_1 = arith.constant 0 : i32
    return %c0_i32, %c0_i32_0 : i32, i32
  }
  func.func @transform_2(%arg0: i32) -> (i32, i32) {
    %c0_i32 = arith.constant 0 : i32
    %c0_i32_0 = arith.constant 0 : i32
    %c0_i32_1 = arith.constant 0 : i32
    return %c0_i32, %c0_i32_0 : i32, i32
  }
  func.func @transform_3(%arg0: i32) -> (i32, i32, i32) {
    %c0_i32 = arith.constant 0 : i32
    %c0_i32_0 = arith.constant 0 : i32
    %c0_i32_1 = arith.constant 0 : i32
    %c0_i32_2 = arith.constant 0 : i32
    return %c0_i32, %c0_i32_0, %c0_i32_1 : i32, i32, i32
  }
  func.func @transform_4(%arg0: i32) -> (i32, i32) {
    %c0_i32 = arith.constant 0 : i32
    %c0_i32_0 = arith.constant 0 : i32
    %c0_i32_1 = arith.constant 0 : i32
    return %c0_i32, %c0_i32_0 : i32, i32
  }
  func.func @transform_5(%arg0: i32) -> (i32, i32, i32) {
    %c0_i32 = arith.constant 0 : i32
    %c0_i32_0 = arith.constant 0 : i32
    %c0_i32_1 = arith.constant 0 : i32
    return %arg0, %c0_i32, %c0_i32_0 : i32, i32, i32
  }
}

</mosaic_0001>

<llo_original>
// kernel: resblock_2d_forward.1
$region0: #{resblock_2d_forward.1}
  #allocation0 [shape = 'u32[]', space=smem, size = 0x4, offset = 0x4, fixed_abs, tag = 'smem constant byte address 0x4 - core index']
  #allocation1 [shape = 'u32[144,128]{1,0:T(1,128)}', space=vmem, size = 0x12000, scoped, tag = 'internal scratch']
  #allocation2 [shape = 'bf16[342,64]{1,0:T(8,128)(2,1)}', space=vmem, size = 0x15800, scoped, tag = 'scratch operand']
  %s0 = inlined_call_operand.hbm [shape: f32[2,256,128], index: 0, kind: input, shape index: {}]
  %s1 = inlined_call_operand.vmem [shape: bf16[128,64], index: 1, kind: input, shape index: {}]
  %s2 = inlined_call_operand.vmem [shape: f32[1,64], index: 2, kind: input, shape index: {}]
  %s3 = inlined_call_operand.hbm [shape: bf16[9,64,128], index: 3, kind: input, shape index: {}]
  %s4 = inlined_call_operand.vmem [shape: f32[1,128], index: 4, kind: input, shape index: {}]
  %s5 = inlined_call_operand.hbm [shape: f32[2,256,128], index: 5, kind: output, shape index: {}]
  %s6 = sld [smem:[#allocation0]]
  $region61: #{resblock_2d_forward.1} parent=0
    _
  %s8 = ssub.s32 1, %s6
  %s9 = scalar_select 0, %s8, %s6
  $region1: #{resblock_2d_forward.1} parent=0
    #allocation3 [shape = 'u8[262144]{0}', space=vmem, size = 0x40000, scoped, tag = 'input window, operand 0']
    #allocation4 [shape = 's32[2]{0}', space=sflag, size = 0x8, scoped, tag = 'scoped memory for resblock_2d_forward.1']
    #allocation5 [shape = 's32[2]{0}', space=sflag, size = 0x8, scoped, tag = 'scoped memory for resblock_2d_forward.1']
    #allocation6 [shape = 'u8[147456]{0}', space=vmem, size = 0x24000, scoped, tag = 'input window, operand 3, single buffered']
    #allocation7 [shape = 's32[1]{0}', space=sflag, size = 0x4, scoped, tag = 'scoped memory for resblock_2d_forward.1']
    #allocation8 [shape = 'u8[262144]{0}', space=vmem, size = 0x40000, scoped, tag = 'output window, operand 0']
    %10 = vsyncpa [#allocation4], 0
    %s11 = scalar_lea.sflag [#allocation4], 1
    %12 = vsyncpa %s11, 0
    %13 = vsyncpa [#allocation7], 0
    %14 = vsyncpa [#allocation5], 0
    %s15 = scalar_lea.sflag [#allocation5], 1
    %16 = vsyncpa %s15, 0
    loop: start=0, step=1, limit=4
    $region2: #{resblock_2d_forward.1} parent=1 // loop_pre_header
      _
    $region3: #{resblock_2d_forward.1} parent=1 // loop_header
      %s18 = sphi 0, %s22
      %p19 = scmp.ge.s32.totalorder %s18, 4
      %s28 = sphi 0, %s30
      %s31 = sphi 0, %s28
      %s32 = sphi 0, %s31
      %s48 = sphi 0, %s32
      %s52 = sphi 0, %s52
      %s54 = sphi 0, %s52
      %s55 = sphi 0, %s54
      %s69 = sphi 0, %s55
      %s73 = sphi 0, %s73
      %s75 = sphi 0, %s73
      %s76 = sphi 0, %s75
      %s90 = sphi 0, %s76
      %s94 = sphi 0, %s94
      %s96 = sphi 0, %s94
      %s97 = sphi 0, %s96
      %s111 = sphi 0, %s97
      %s115 = sphi 0, %s115
      %s117 = sphi 0, %s115
      %s118 = sphi 0, %s117
      %s132 = sphi 0, %s118
      %s138 = sphi 0, %s140
      %s141 = sphi 0, %s138
      %s142 = sphi 0, %s141
      %s158 = sphi 0, %s142
    $region4: #{resblock_2d_forward.1} parent=1 // loop_header_branch
      %21 = sbr.rel (%p19) target = $region8
    $region5: #{resblock_2d_forward.1} parent=1 // loop_body
      %s23 = ssub.s32 %s18, 1
      %s24 = ssub.s32 %s18, 2
      %s25 = sadd.s32 %s18, 1
      %s26 = ssub.s32 %s18, %s25
      %p27 = scmp.eq.s32.totalorder %s26, 0
      %s29 = sadd.s32 %s28, 1
      %s30 = scalar_select %p27, %s28, %s29
      %p33 = pneg %p27
      %p34 = scmp.eq.s32.totalorder %s18, 1
      %p35 = por %p33, %p34
      %p36 = scmp.ne.s32.totalorder %s28, %s31
      %p37 = scmp.eq.s32.totalorder %s18, 0
      %p38 = por %p36, %p37
      %p39 = scmp.ne.s32.totalorder %s28, %s31
      %p40 = scmp.eq.s32.totalorder %s23, 1
      %p41 = por %p39, %p40
      %p42 = scmp.ne.s32.totalorder %s31, %s32
      %p43 = scmp.eq.s32.totalorder %s23, 0
      %p44 = por %p42, %p43
      %p45 = scmp.ne.s32.totalorder %s31, %s32
      %p46 = scmp.eq.s32.totalorder %s24, 1
      %p47 = por %p45, %p46
      %p49 = scmp.ne.s32.totalorder %s32, %s48
      %p50 = scmp.eq.s32.totalorder %s24, 0
      %p51 = por %p49, %p50
      %s53 = sadd.s32 %s52, 1
      %p56 = scmp.eq.s32.totalorder %s18, 1
      %p57 = scmp.ne.s32.totalorder %s52, %s54
      %p58 = scmp.eq.s32.totalorder %s18, 0
      %p59 = por %p57, %p58
      %p60 = scmp.ne.s32.totalorder %s52, %s54
      %p61 = scmp.eq.s32.totalorder %s23, 1
      %p62 = por %p60, %p61
      %p63 = scmp.ne.s32.totalorder %s54, %s55
      %p64 = scmp.eq.s32.totalorder %s23, 0
      %p65 = por %p63, %p64
      %p66 = scmp.ne.s32.totalorder %s54, %s55
      %p67 = scmp.eq.s32.totalorder %s24, 1
      %p68 = por %p66, %p67
      %p70 = scmp.ne.s32.totalorder %s55, %s69
      %p71 = scmp.eq.s32.totalorder %s24, 0
      %p72 = por %p70, %p71
      %s74 = sadd.s32 %s73, 1
      %p77 = scmp.eq.s32.totalorder %s18, 1
      %p78 = scmp.ne.s32.totalorder %s73, %s75
      %p79 = scmp.eq.s32.totalorder %s18, 0
      %p80 = por %p78, %p79
      %p81 = scmp.ne.s32.totalorder %s73, %s75
      %p82 = scmp.eq.s32.totalorder %s23, 1
      %p83 = por %p81, %p82
      %p84 = scmp.ne.s32.totalorder %s75, %s76
      %p85 = scmp.eq.s32.totalorder %s23, 0
      %p86 = por %p84, %p85
      %p87 = scmp.ne.s32.totalorder %s75, %s76
      %p88 = scmp.eq.s32.totalorder %s24, 1
      %p89 = por %p87, %p88
      %p91 = scmp.ne.s32.totalorder %s76, %s90
      %p92 = scmp.eq.s32.totalorder %s24, 0
      %p93 = por %p91, %p92
      %s95 = sadd.s32 %s94, 1
      %p98 = scmp.eq.s32.totalorder %s18, 1
      %p99 = scmp.ne.s32.totalorder %s94, %s96
      %p100 = scmp.eq.s32.totalorder %s18, 0
      %p101 = por %p99, %p100
      %p102 = scmp.ne.s32.totalorder %s94, %s96
      %p103 = scmp.eq.s32.totalorder %s23, 1
      %p104 = por %p102, %p103
      %p105 = scmp.ne.s32.totalorder %s96, %s97
      %p106 = scmp.eq.s32.totalorder %s23, 0
      %p107 = por %p105, %p106
      %p108 = scmp.ne.s32.totalorder %s96, %s97
      %p109 = scmp.eq.s32.totalorder %s24, 1
      %p110 = por %p108, %p109
      %p112 = scmp.ne.s32.totalorder %s97, %s111
      %p113 = scmp.eq.s32.totalorder %s24, 0
      %p114 = por %p112, %p113
      %s116 = sadd.s32 %s115, 1
      %p119 = scmp.eq.s32.totalorder %s18, 1
      %p120 = scmp.ne.s32.totalorder %s115, %s117
      %p121 = scmp.eq.s32.totalorder %s18, 0
      %p122 = por %p120, %p121
      %p123 = scmp.ne.s32.totalorder %s115, %s117
      %p124 = scmp.eq.s32.totalorder %s23, 1
      %p125 = por %p123, %p124
      %p126 = scmp.ne.s32.totalorder %s117, %s118
      %p127 = scmp.eq.s32.totalorder %s23, 0
      %p128 = por %p126, %p127
      %p129 = scmp.ne.s32.totalorder %s117, %s118
      %p130 = scmp.eq.s32.totalorder %s24, 1
      %p131 = por %p129, %p130
      %p133 = scmp.ne.s32.totalorder %s118, %s132
      %p134 = scmp.eq.s32.totalorder %s24, 0
      %p135 = por %p133, %p134
      %s136 = ssub.s32 %s18, %s25
      %p137 = scmp.eq.s32.totalorder %s136, 0
      %s139 = sadd.s32 %s138, 1
      %s140 = scalar_select %p137, %s138, %s139
      %p143 = pneg %p137
      %p144 = scmp.eq.s32.totalorder %s18, 1
      %p145 = por %p143, %p144
      %p146 = scmp.ne.s32.totalorder %s138, %s141
      %p147 = scmp.eq.s32.totalorder %s18, 0
      %p148 = por %p146, %p147
      %p149 = scmp.ne.s32.totalorder %s138, %s141
      %p150 = scmp.eq.s32.totalorder %s23, 1
      %p151 = por %p149, %p150
      %p152 = scmp.ne.s32.totalorder %s141, %s142
      %p153 = scmp.eq.s32.totalorder %s23, 0
      %p154 = por %p152, %p153
      %p155 = scmp.ne.s32.totalorder %s141, %s142
      %p156 = scmp.eq.s32.totalorder %s24, 1
      %p157 = por %p155, %p156
      %p159 = scmp.ne.s32.totalorder %s142, %s158
      %p160 = scmp.eq.s32.totalorder %s24, 0
      %p161 = por %p159, %p160
      %p162 = scmp.le.s32.totalorder 1, %s18
      %p163 = scmp.lt.s32.totalorder %s18, 3
      %p164 = pnand %p162, %p163
      %p165 = pneg %p164
      // Predicated region
      $region9: #{resblock_2d_forward.1} parent=5 // pred_check
        _
      $region10: #{resblock_2d_forward.1} parent=5 // pred_check_branch
        %167 = sbr.rel (%p164) target = $region12
      $region11: #{resblock_2d_forward.1} parent=5 // pred_region
        %s168 = ssub.s32 %s18, 1
        // Predicated region
        $region13: #{resblock_2d_forward.1} parent=11 // pred_check
          %p169 = pneg %p65
        $region14: #{resblock_2d_forward.1} parent=11 // pred_check_branch
          %171 = sbr.rel (%p169) target = $region16
        $region15: #{resblock_2d_forward.1} parent=11 // pred_region
          _
        $region16: #{resblock_2d_forward.1} parent=11 // pred_fallthru
          _
        // Predicated region
        $region17: #{resblock_2d_forward.1} parent=11 // pred_check
          %p172 = pneg %p86
        $region18: #{resblock_2d_forward.1} parent=11 // pred_check_branch
          %174 = sbr.rel (%p172) target = $region20
        $region19: #{resblock_2d_forward.1} parent=11 // pred_region
          _
        $region20: #{resblock_2d_forward.1} parent=11 // pred_fallthru
          _
        // Predicated region
        $region21: #{resblock_2d_forward.1} parent=11 // pred_check
          %p175 = pneg %p107
        $region22: #{resblock_2d_forward.1} parent=11 // pred_check_branch
          %177 = sbr.rel (%p175) target = $region24
        $region23: #{resblock_2d_forward.1} parent=11 // pred_region
          %s179 = ssub.s32 4608, 4608
          %180 = vsyncadd [#allocation7], %s179
          %s181 = sshll.u32 [#allocation6], 4
          %s182 = int_to_ptr.vmem [resolvable:$true] %s181
          %187 = dma.hbm_to_vmem [thread:$0]  %s3, 4608, %s182, [#allocation7], 64, 64, 4
        $region24: #{resblock_2d_forward.1} parent=11 // pred_fallthru
          _
        // Predicated region
        $region25: #{resblock_2d_forward.1} parent=11 // pred_check
          %p188 = pneg %p128
        $region26: #{resblock_2d_forward.1} parent=11 // pred_check_branch
          %190 = sbr.rel (%p188) target = $region28
        $region27: #{resblock_2d_forward.1} parent=11 // pred_region
          _
        $region28: #{resblock_2d_forward.1} parent=11 // pred_fallthru
          _
      $region12: #{resblock_2d_forward.1} parent=5 // pred_fallthru
        _
      %p191 = scmp.lt.s32.totalorder %s18, 2
      // Predicated region
      $region29: #{resblock_2d_forward.1} parent=5 // pred_check
        %p192 = pneg %p191
      $region30: #{resblock_2d_forward.1} parent=5 // pred_check_branch
        %194 = sbr.rel (%p192) target = $region32
      $region31: #{resblock_2d_forward.1} parent=5 // pred_region
        // Predicated region
        $region33: #{resblock_2d_forward.1} parent=31 // pred_check
          %p195 = pneg %p38
        $region34: #{resblock_2d_forward.1} parent=31 // pred_check_branch
          %197 = sbr.rel (%p195) target = $region36
        $region35: #{resblock_2d_forward.1} parent=31 // pred_region
          %s198 = sand.u32 %s28, 1
          %s199 = scalar_lea.sflag [#allocation4], %s198
          %s200 = sand.u32 %s28, 1
          %s201 = smul.addr %s200, 256
          %s202 = scalar_lea.vmem [#allocation3], %s201
          %s204 = ssub.s32 4096, 4096
          %205 = vsyncadd %s199, %s204
          %s206 = smul.addr %s18, 32
          %s207 = smul.addr %s206, 128
          %s208 = scalar_lea.hbm %s0, %s207
          %s209 = sshll.u32 %s202, 4
          %s210 = int_to_ptr.vmem [resolvable:$true] %s209
          %215 = dma.hbm_to_vmem [thread:$0]  %s208, 4096, %s210, %s199, 128, 128, 8
        $region36: #{resblock_2d_forward.1} parent=31 // pred_fallthru
          _
      $region32: #{resblock_2d_forward.1} parent=5 // pred_fallthru
        _
      %p216 = scmp.le.s32.totalorder 1, %s18
      %p217 = scmp.lt.s32.totalorder %s18, 3
      %p218 = pnand %p216, %p217
      %p219 = pneg %p218
      // Predicated region
      $region37: #{resblock_2d_forward.1} parent=5 // pred_check
        _
      $region38: #{resblock_2d_forward.1} parent=5 // pred_check_branch
        %221 = sbr.rel (%p218) target = $region40
      $region39: #{resblock_2d_forward.1} parent=5 // pred_region
        %s222 = ssub.s32 %s18, 1
        %s223 = sand.u32 %s31, 1
        %s224 = scalar_lea.sflag [#allocation4], %s223
        %s225 = sand.u32 %s31, 1
        %s226 = smul.addr %s225, 256
        %s227 = scalar_lea.vmem [#allocation3], %s226
        // Predicated region
        $region41: #{resblock_2d_forward.1} parent=39 // pred_check
          %p228 = pneg %p44
        $region42: #{resblock_2d_forward.1} parent=39 // pred_check_branch
          %230 = sbr.rel (%p228) target = $region44
        $region43: #{resblock_2d_forward.1} parent=39 // pred_region
          %231 = dma.done %s224, 4096
        $region44: #{resblock_2d_forward.1} parent=39 // pred_fallthru
          _
        // Predicated region
        $region45: #{resblock_2d_forward.1} parent=39 // pred_check
          %p232 = pneg %p107
        $region46: #{resblock_2d_forward.1} parent=39 // pred_check_branch
          %234 = sbr.rel (%p232) target = $region48
        $region47: #{resblock_2d_forward.1} parent=39 // pred_region
          %235 = dma.done [#allocation7], 4608
        $region48: #{resblock_2d_forward.1} parent=39 // pred_fallthru
          _
        %s236 = sand.u32 %s31, 1
        %s237 = scalar_lea.sflag [#allocation4], %s236
        %s238 = sand.u32 %s31, 1
        %s239 = smul.addr %s238, 256
        %s240 = scalar_lea.vmem [#allocation3], %s239
        %p241 = pneg %p44
        %p242 = pneg %p41
        %p243 = pneg %p65
        %p244 = pneg %p62
        %p245 = pneg %p86
        %p246 = pneg %p83
        %p247 = pneg %p107
        %p248 = pneg %p104
        %p249 = pneg %p128
        %p250 = pneg %p125
        %p251 = pneg %p154
        %p252 = pneg %p151
        %s253 = sand.u32 %s141, 1
        %s254 = scalar_lea.sflag [#allocation5], %s253
        %s255 = sand.u32 %s141, 1
        %s256 = smul.addr %s255, 256
        %s257 = scalar_lea.vmem [#allocation8], %s256
        %vm259 = vcmask 519168
        %260 = vst.msk [vmem:[#allocation2] sm:$0xf] %vm259, 0
        %261 = vst.msk [vmem:[#allocation2 + $0x4] sm:$0xf] %vm259, 0
        %262 = vst.msk [vmem:[#allocation2 + $0x8] sm:$0xf] %vm259, 0
        %263 = vst.msk [vmem:[#allocation2 + $0xc] sm:$0xf] %vm259, 0
        %264 = vst.msk [vmem:[#allocation2 + $0x10] sm:$0xf] %vm259, 0
        %265 = vst.msk [vmem:[#allocation2 + $0x14] sm:$0xf] %vm259, 0
        %266 = vst.msk [vmem:[#allocation2 + $0x18] sm:$0xf] %vm259, 0
        %267 = vst.msk [vmem:[#allocation2 + $0x1c] sm:$0xf] %vm259, 0
        %268 = vst.msk [vmem:[#allocation2 + $0x20] sm:$0xf] %vm259, 0
        %269 = vst.msk [vmem:[#allocation2 + $0x24] sm:$0xf] %vm259, 0
        %270 = vst.msk [vmem:[#allocation2 + $0x28] sm:$0xf] %vm259, 0
        %271 = vst.msk [vmem:[#allocation2 + $0x2c] sm:$0xf] %vm259, 0
        %272 = vst.msk [vmem:[#allocation2 + $0x30] sm:$0xf] %vm259, 0
        %273 = vst.msk [vmem:[#allocation2 + $0x34] sm:$0xf] %vm259, 0
        %274 = vst.msk [vmem:[#allocation2 + $0x38] sm:$0xf] %vm259, 0
        %275 = vst.msk [vmem:[#allocation2 + $0x3c] sm:$0xf] %vm259, 0
        %276 = vst.msk [vmem:[#allocation2 + $0x40] sm:$0xf] %vm259, 0
        %277 = vst.msk [vmem:[#allocation2 + $0x44] sm:$0xf] %vm259, 0
        %278 = vst.msk [vmem:[#allocation2 + $0x48] sm:$0xf] %vm259, 0
        %279 = vst.msk [vmem:[#allocation2 + $0x4c] sm:$0xf] %vm259, 0
        %280 = vst.msk [vmem:[#allocation2 + $0x50] sm:$0xf] %vm259, 0
        %281 = vst.msk [vmem:[#allocation2 + $0x54] sm:$0xf] %vm259, 0
        %282 = vst.msk [vmem:[#allocation2 + $0x58] sm:$0xf] %vm259, 0
        %283 = vst.msk [vmem:[#allocation2 + $0x5c] sm:$0xf] %vm259, 0
        %284 = vst.msk [vmem:[#allocation2 + $0x60] sm:$0xf] %vm259, 0
        %285 = vst.msk [vmem:[#allocation2 + $0x64] sm:$0xf] %vm259, 0
        %286 = vst.msk [vmem:[#allocation2 + $0x68] sm:$0xf] %vm259, 0
        %287 = vst.msk [vmem:[#allocation2 + $0x6c] sm:$0xf] %vm259, 0
        %288 = vst.msk [vmem:[#allocation2 + $0x70] sm:$0xf] %vm259, 0
        %289 = vst.msk [vmem:[#allocation2 + $0x74] sm:$0xf] %vm259, 0
        %290 = vst.msk [vmem:[#allocation2 + $0x78] sm:$0xf] %vm259, 0
        %291 = vst.msk [vmem:[#allocation2 + $0x7c] sm:$0xf] %vm259, 0
        %292 = vst.msk [vmem:[#allocation2 + $0x80] sm:$0xf] %vm259, 0
        %293 = vst.msk [vmem:[#allocation2 + $0x84] sm:$0xf] %vm259, 0
        %294 = vst.msk [vmem:[#allocation2 + $0x88] sm:$0xf] %vm259, 0
        %295 = vst.msk [vmem:[#allocation2 + $0x8c] sm:$0xf] %vm259, 0
        %296 = vst.msk [vmem:[#allocation2 + $0x90] sm:$0xf] %vm259, 0
        %297 = vst.msk [vmem:[#allocation2 + $0x94] sm:$0xf] %vm259, 0
        %298 = vst.msk [vmem:[#allocation2 + $0x98] sm:$0xf] %vm259, 0
        %299 = vst.msk [vmem:[#allocation2 + $0x9c] sm:$0xf] %vm259, 0
        %300 = vst.msk [vmem:[#allocation2 + $0xa0] sm:$0xf] %vm259, 0
        %301 = vst.msk [vmem:[#allocation2 + $0xa4] sm:$0xf] %vm259, 0
        %vm302 = vcmask 518144
        %303 = vst.msk [vmem:[#allocation2 + $0xa8] sm:$0x7] %vm302, 0
        %v304 = vld [vmem:[%s227] sm:$0xff]
        %v305 = vld [vmem:[%s227 + $0x8] sm:$0xff]
        %v306 = vld [vmem:[%s227 + $0x10] sm:$0xff]
        %v307 = vld [vmem:[%s227 + $0x18] sm:$0xff]
        %v308 = vld [vmem:[%s227 + $0x20] sm:$0xff]
        %v309 = vld [vmem:[%s227 + $0x28] sm:$0xff]
        %v310 = vld [vmem:[%s227 + $0x30] sm:$0xff]
        %v311 = vld [vmem:[%s227 + $0x38] sm:$0xff]
        %v312 = vld [vmem:[%s227 + $0x40] sm:$0xff]
        %v313 = vld [vmem:[%s227 + $0x48] sm:$0xff]
        %v314 = vld [vmem:[%s227 + $0x50] sm:$0xff]
        %v315 = vld [vmem:[%s227 + $0x58] sm:$0xff]
        %v316 = vld [vmem:[%s227 + $0x60] sm:$0xff]
        %v317 = vld [vmem:[%s227 + $0x68] sm:$0xff]
        %v318 = vld [vmem:[%s227 + $0x70] sm:$0xff]
        %v319 = vld [vmem:[%s227 + $0x78] sm:$0xff]
        %v320 = vld [vmem:[%s227 + $0x80] sm:$0xff]
        %v321 = vld [vmem:[%s227 + $0x88] sm:$0xff]
        %v322 = vld [vmem:[%s227 + $0x90] sm:$0xff]
        %v323 = vld [vmem:[%s227 + $0x98] sm:$0xff]
        %v324 = vld [vmem:[%s227 + $0xa0] sm:$0xff]
        %v325 = vld [vmem:[%s227 + $0xa8] sm:$0xff]
        %v326 = vld [vmem:[%s227 + $0xb0] sm:$0xff]
        %v327 = vld [vmem:[%s227 + $0xb8] sm:$0xff]
        %v328 = vld [vmem:[%s227 + $0xc0] sm:$0xff]
        %v329 = vld [vmem:[%s227 + $0xc8] sm:$0xff]
        %v330 = vld [vmem:[%s227 + $0xd0] sm:$0xff]
        %v331 = vld [vmem:[%s227 + $0xd8] sm:$0xff]
        %v332 = vld [vmem:[%s227 + $0xe0] sm:$0xff]
        %v333 = vld [vmem:[%s227 + $0xe8] sm:$0xff]
        %v334 = vld [vmem:[%s227 + $0xf0] sm:$0xff]
        %v335 = vld [vmem:[%s227 + $0xf8] sm:$0xff]
        %v336 = vpack.c.bf16 %v305, %v304
        %v337 = vpack.c.bf16 %v307, %v306
        %v338 = vpack.c.bf16 %v309, %v308
        %v339 = vpack.c.bf16 %v311, %v310
        %v340 = vpack.c.bf16 %v313, %v312
        %v341 = vpack.c.bf16 %v315, %v314
        %v342 = vpack.c.bf16 %v317, %v316
        %v343 = vpack.c.bf16 %v319, %v318
        %v344 = vpack.c.bf16 %v321, %v320
        %v345 = vpack.c.bf16 %v323, %v322
        %v346 = vpack.c.bf16 %v325, %v324
        %v347 = vpack.c.bf16 %v327, %v326
        %v348 = vpack.c.bf16 %v329, %v328
        %v349 = vpack.c.bf16 %v331, %v330
        %v350 = vpack.c.bf16 %v333, %v332
        %v351 = vpack.c.bf16 %v335, %v334
        %v352 = vld [vmem:[%s1] sm:$0xf]
        %v353 = vld [vmem:[%s1 + $0x4] sm:$0xf]
        %v354 = vld [vmem:[%s1 + $0x8] sm:$0xf]
        %v355 = vld [vmem:[%s1 + $0xc] sm:$0xf]
        %v356 = vld [vmem:[%s1 + $0x10] sm:$0xf]
        %v357 = vld [vmem:[%s1 + $0x14] sm:$0xf]
        %v358 = vld [vmem:[%s1 + $0x18] sm:$0xf]
        %v359 = vld [vmem:[%s1 + $0x1c] sm:$0xf]
        %v360 = vld [vmem:[%s1 + $0x20] sm:$0xf]
        %v361 = vld [vmem:[%s1 + $0x24] sm:$0xf]
        %v362 = vld [vmem:[%s1 + $0x28] sm:$0xf]
        %v363 = vld [vmem:[%s1 + $0x2c] sm:$0xf]
        %v364 = vld [vmem:[%s1 + $0x30] sm:$0xf]
        %v365 = vld [vmem:[%s1 + $0x34] sm:$0xf]
        %v366 = vld [vmem:[%s1 + $0x38] sm:$0xf]
        %v367 = vld [vmem:[%s1 + $0x3c] sm:$0xf]
        %v368 = vld [vmem:[%s2] sm:$0x1]
        %v370 = vlaneseq
        %v371 = vshrl.u32 %v370, 7
        %v372 = vsub.s32 0, %v371
        %v373 = vrot.slane %v368, %v372
        %v391 = vunpack.c.l.b16 %v352
        %v392 = vunpack.c.l.b16 %v353
        %v393 = vunpack.c.l.b16 %v354
        %v394 = vunpack.c.l.b16 %v355
        %v395 = vunpack.c.l.b16 %v356
        %v396 = vunpack.c.l.b16 %v357
        %v397 = vunpack.c.l.b16 %v358
        %v398 = vunpack.c.l.b16 %v359
        %v399 = vunpack.c.l.b16 %v360
        %v400 = vunpack.c.l.b16 %v361
        %v401 = vunpack.c.l.b16 %v362
        %v402 = vunpack.c.l.b16 %v363
        %v403 = vunpack.c.l.b16 %v364
        %v404 = vunpack.c.l.b16 %v365
        %v405 = vunpack.c.l.b16 %v366
        %v406 = vunpack.c.l.b16 %v367
        %v407 = vpack.c.b16 %v392, %v391
        %v408 = vpack.c.b16 %v394, %v393
        %v409 = vpack.c.b16 %v396, %v395
        %v410 = vpack.c.b16 %v398, %v397
        %v411 = vpack.c.b16 %v400, %v399
        %v412 = vpack.c.b16 %v402, %v401
        %v413 = vpack.c.b16 %v404, %v403
        %v414 = vpack.c.b16 %v406, %v405
        %423 = vmatprep.subr.bf16.mxu0 0
        %424 = vmatpush1.bf16.msra.mxu0 %v407
        %425 = vmatprep.subr.bf16.mxu0 0
        %426 = vmatpush1.bf16.msra.mxu0 %v408
        %427 = vmatprep.subr.bf16.mxu0 0
        %428 = vmatpush1.bf16.msra.mxu0 %v409
        %429 = vmatprep.subr.bf16.mxu0 0
        %430 = vmatpush1.bf16.msra.mxu0 %v410
        %431 = vmatprep.subr.bf16.mxu0 0
        %432 = vmatpush1.bf16.msra.mxu0 %v411
        %433 = vmatprep.subr.bf16.mxu0 0
        %434 = vmatpush1.bf16.msra.mxu0 %v412
        %435 = vmatprep.subr.bf16.mxu0 0
        %436 = vmatpush1.bf16.msra.mxu0 %v413
        %437 = vmatprep.subr.bf16.mxu0 0
        %438 = vmatpush1.bf16.msra.mxu0 %v414
        %439 = vmatprep.subr.bf16.mxu0 0
        %440 = vmatpush1.bf16.msra.mxu0 0
        %441 = vmatprep.subr.bf16.mxu0 0
        %442 = vmatpush1.bf16.msra.mxu0 0
        %443 = vmatprep.subr.bf16.mxu0 0
        %444 = vmatpush1.bf16.msra.mxu0 0
        %445 = vmatprep.subr.bf16.mxu0 0
        %446 = vmatpush1.bf16.msra.mxu0 0
        %447 = vmatprep.subr.bf16.mxu0 0
        %448 = vmatpush1.bf16.msra.mxu0 0
        %449 = vmatprep.subr.bf16.mxu0 0
        %450 = vmatpush1.bf16.msra.mxu0 0
        %451 = vmatprep.subr.bf16.mxu0 0
        %452 = vmatpush1.bf16.msra.mxu0 0
        %453 = vmatprep.subr.bf16.mxu0 0
        %454 = vmatpush1.bf16.msra.mxu0 0
        %455 = vmatprep.mubr.bf16.mxu0 0
        %456 = vmatmul.mubr.bf16.gmra.mrb[0].mxu0 %v336
        %v457 = vpop.f32.mrb[0].mxu0
        %v458 = vadd.f32 %v373, %v457
        %v459 = vpop.f32.mrb[0].mxu0
        %v460 = vpop.f32.mrb[0].mxu0
        %v461 = vadd.f32 %v373, %v460
        %v462 = vpop.f32.mrb[0].mxu0
        %463 = vmatprep.mubr.bf16.mxu0 0
        %464 = vmatmul.mubr.bf16.gmra.mrb[0].mxu0 %v337
        %v465 = vpop.f32.mrb[0].mxu0
        %v466 = vadd.f32 %v373, %v465
        %v467 = vpop.f32.mrb[0].mxu0
        %v468 = vpop.f32.mrb[0].mxu0
        %v469 = vadd.f32 %v373, %v468
        %v470 = vpop.f32.mrb[0].mxu0
        %471 = vmatprep.mubr.bf16.mxu0 0
        %472 = vmatmul.mubr.bf16.gmra.mrb[0].mxu0 %v338
        %v473 = vpop.f32.mrb[0].mxu0
        %v474 = vadd.f32 %v373, %v473
        %v475 = vpop.f32.mrb[0].mxu0
        %v476 = vpop.f32.mrb[0].mxu0
        %v477 = vadd.f32 %v373, %v476
        %v478 = vpop.f32.mrb[0].mxu0
        %479 = vmatprep.mubr.bf16.mxu0 0
        %480 = vmatmul.mubr.bf16.gmra.mrb[0].mxu0 %v339
        %v481 = vpop.f32.mrb[0].mxu0
        %v482 = vadd.f32 %v373, %v481
        %v483 = vpop.f32.mrb[0].mxu0
        %v484 = vpop.f32.mrb[0].mxu0
        %v485 = vadd.f32 %v373, %v484
        %v486 = vpop.f32.mrb[0].mxu0
        %487 = vmatprep.mubr.bf16.mxu0 0
        %488 = vmatmul.mubr.bf16.gmra.mrb[0].mxu0 %v340
        %v489 = vpop.f32.mrb[0].mxu0
        %v490 = vadd.f32 %v373, %v489
        %v491 = vpop.f32.mrb[0].mxu0
        %v492 = vpop.f32.mrb[0].mxu0
        %v493 = vadd.f32 %v373, %v492
        %v494 = vpop.f32.mrb[0].mxu0
        %495 = vmatprep.mubr.bf16.mxu0 0
        %496 = vmatmul.mubr.bf16.gmra.mrb[0].mxu0 %v341
        %v497 = vpop.f32.mrb[0].mxu0
        %v498 = vadd.f32 %v373, %v497
        %v499 = vpop.f32.mrb[0].mxu0
        %v500 = vpop.f32.mrb[0].mxu0
        %v501 = vadd.f32 %v373, %v500
        %v502 = vpop.f32.mrb[0].mxu0
        %503 = vmatprep.mubr.bf16.mxu0 0
        %504 = vmatmul.mubr.bf16.gmra.mrb[0].mxu0 %v342
        %v505 = vpop.f32.mrb[0].mxu0
        %v506 = vadd.f32 %v373, %v505
        %v507 = vpop.f32.mrb[0].mxu0
        %v508 = vpop.f32.mrb[0].mxu0
        %v509 = vadd.f32 %v373, %v508
        %v510 = vpop.f32.mrb[0].mxu0
        %511 = vmatprep.mubr.bf16.mxu0 0
        %512 = vmatmul.mubr.bf16.gmra.mrb[0].mxu0 %v343
        %v513 = vpop.f32.mrb[0].mxu0
        %v514 = vadd.f32 %v373, %v513
        %v515 = vpop.f32.mrb[0].mxu0
        %v516 = vpop.f32.mrb[0].mxu0
        %v517 = vadd.f32 %v373, %v516
        %v518 = vpop.f32.mrb[0].mxu0
        %519 = vmatprep.mubr.bf16.mxu0 0
        %520 = vmatmul.mubr.bf16.gmra.mrb[0].mxu0 %v344
        %v521 = vpop.f32.mrb[0].mxu0
        %v522 = vadd.f32 %v373, %v521
        %v523 = vpop.f32.mrb[0].mxu0
        %v524 = vpop.f32.mrb[0].mxu0
        %v525 = vadd.f32 %v373, %v524
        %v526 = vpop.f32.mrb[0].mxu0
        %527 = vmatprep.mubr.bf16.mxu0 0
        %528 = vmatmul.mubr.bf16.gmra.mrb[0].mxu0 %v345
        %v529 = vpop.f32.mrb[0].mxu0
        %v530 = vadd.f32 %v373, %v529
        %v531 = vpop.f32.mrb[0].mxu0
        %v532 = vpop.f32.mrb[0].mxu0
        %v533 = vadd.f32 %v373, %v532
        %v534 = vpop.f32.mrb[0].mxu0
        %535 = vmatprep.mubr.bf16.mxu0 0
        %536 = vmatmul.mubr.bf16.gmra.mrb[0].mxu0 %v346
        %v537 = vpop.f32.mrb[0].mxu0
        %v538 = vadd.f32 %v373, %v537
        %v539 = vpop.f32.mrb[0].mxu0
        %v540 = vpop.f32.mrb[0].mxu0
        %v541 = vadd.f32 %v373, %v540
        %v542 = vpop.f32.mrb[0].mxu0
        %543 = vmatprep.mubr.bf16.mxu0 0
        %544 = vmatmul.mubr.bf16.gmra.mrb[0].mxu0 %v347
        %v545 = vpop.f32.mrb[0].mxu0
        %v546 = vadd.f32 %v373, %v545
        %v547 = vpop.f32.mrb[0].mxu0
        %v548 = vpop.f32.mrb[0].mxu0
        %v549 = vadd.f32 %v373, %v548
        %v550 = vpop.f32.mrb[0].mxu0
        %551 = vmatprep.mubr.bf16.mxu0 0
        %552 = vmatmul.mubr.bf16.gmra.mrb[0].mxu0 %v348
        %v553 = vpop.f32.mrb[0].mxu0
        %v554 = vadd.f32 %v373, %v553
        %v555 = vpop.f32.mrb[0].mxu0
        %v556 = vpop.f32.mrb[0].mxu0
        %v557 = vadd.f32 %v373, %v556
        %v558 = vpop.f32.mrb[0].mxu0
        %559 = vmatprep.mubr.bf16.mxu0 0
        %560 = vmatmul.mubr.bf16.gmra.mrb[0].mxu0 %v349
        %v561 = vpop.f32.mrb[0].mxu0
        %v562 = vadd.f32 %v373, %v561
        %v563 = vpop.f32.mrb[0].mxu0
        %v564 = vpop.f32.mrb[0].mxu0
        %v565 = vadd.f32 %v373, %v564
        %v566 = vpop.f32.mrb[0].mxu0
        %567 = vmatprep.mubr.bf16.mxu0 0
        %568 = vmatmul.mubr.bf16.gmra.mrb[0].mxu0 %v350
        %v569 = vpop.f32.mrb[0].mxu0
        %v570 = vadd.f32 %v373, %v569
        %v571 = vpop.f32.mrb[0].mxu0
        %v572 = vpop.f32.mrb[0].mxu0
        %v573 = vadd.f32 %v373, %v572
        %v574 = vpop.f32.mrb[0].mxu0
        %575 = vmatprep.mubr.bf16.mxu0 0
        %576 = vmatmul.mubr.bf16.gmra.mrb[0].mxu0 %v351
        %v577 = vpop.f32.mrb[0].mxu0
        %v578 = vadd.f32 %v373, %v577
        %v579 = vpop.f32.mrb[0].mxu0
        %v580 = vpop.f32.mrb[0].mxu0
        %v581 = vadd.f32 %v373, %v580
        %v582 = vpop.f32.mrb[0].mxu0
        %583 = vdwg.mxu0
        %v584 = vmax.f32 %v458, 0.0
        %v585 = vmax.f32 %v461, 0.0
        %v586 = vmax.f32 %v466, 0.0
        %v587 = vmax.f32 %v469, 0.0
        %v588 = vmax.f32 %v474, 0.0
        %v589 = vmax.f32 %v477, 0.0
        %v590 = vmax.f32 %v482, 0.0
        %v591 = vmax.f32 %v485, 0.0
        %v592 = vmax.f32 %v490, 0.0
        %v593 = vmax.f32 %v493, 0.0
        %v594 = vmax.f32 %v498, 0.0
        %v595 = vmax.f32 %v501, 0.0
        %v596 = vmax.f32 %v506, 0.0
        %v597 = vmax.f32 %v509, 0.0
        %v598 = vmax.f32 %v514, 0.0
        %v599 = vmax.f32 %v517, 0.0
        %v600 = vmax.f32 %v522, 0.0
        %v601 = vmax.f32 %v525, 0.0
        %v602 = vmax.f32 %v530, 0.0
        %v603 = vmax.f32 %v533, 0.0
        %v604 = vmax.f32 %v538, 0.0
        %v605 = vmax.f32 %v541, 0.0
        %v606 = vmax.f32 %v546, 0.0
        %v607 = vmax.f32 %v549, 0.0
        %v608 = vmax.f32 %v554, 0.0
        %v609 = vmax.f32 %v557, 0.0
        %v610 = vmax.f32 %v562, 0.0
        %v611 = vmax.f32 %v565, 0.0
        %v612 = vmax.f32 %v570, 0.0
        %v613 = vmax.f32 %v573, 0.0
        %v614 = vmax.f32 %v578, 0.0
        %v615 = vmax.f32 %v581, 0.0
        %v616 = vpack.c.bf16 %v585, %v584
        %v617 = vpack.c.bf16 %v587, %v586
        %v618 = vpack.c.bf16 %v589, %v588
        %v619 = vpack.c.bf16 %v591, %v590
        %v620 = vpack.c.bf16 %v593, %v592
        %v621 = vpack.c.bf16 %v595, %v594
        %v622 = vpack.c.bf16 %v597, %v596
        %v623 = vpack.c.bf16 %v599, %v598
        %v624 = vpack.c.bf16 %v601, %v600
        %v625 = vpack.c.bf16 %v603, %v602
        %v626 = vpack.c.bf16 %v605, %v604
        %v627 = vpack.c.bf16 %v607, %v606
        %v628 = vpack.c.bf16 %v609, %v608
        %v629 = vpack.c.bf16 %v611, %v610
        %v630 = vpack.c.bf16 %v613, %v612
        %v631 = vpack.c.bf16 %v615, %v614
        %v633 = vunpack.c.l.b16 %v616
        %v634 = vunpack.c.h.b16 %v616
        %v635 = vpack.c.b16 %v633, %v633
        %v636 = vpack.c.b16 %v634, %v634
        %vm637 = vsmask.f32 1280
        %vm638 = vsmask.f32 5392
        %vm639 = vmor %vm637, %vm638
        %v641 = vshrl.u32 %v635, 16
        %v643 = vrot.slane %v641, 6
        %v644 = vshll.u32 %v635, 16
        %v646 = vrot.slane %v644, 7
        %v647 = vor.u32 %v643, %v646
        %v648 = vrot.slane %v647, 4
        %v650 = vshrl.u32 %v636, 16
        %v652 = vrot.slane %v650, 6
        %v653 = vshll.u32 %v636, 16
        %v655 = vrot.slane %v653, 7
        %v656 = vor.u32 %v652, %v655
        %v657 = vsel %vm639, %v648, %v656
        %v658 = vrot.slane %v656, 4
        %vm662 = vcmask 519169
        %vm663 = vsmask.f32 7942
        %vm664 = vmand %vm662, %vm663
        %v665 = vld [vmem:[#allocation2 + $0x8] sm:$0xe]
        %v666 = vsel %vm664, %v647, %v665
        %667 = vst [vmem:[#allocation2 + $0x8] sm:$0xe] %v666
        %668 = vst.msk [vmem:[#allocation2 + $0xc] sm:$0xf] %vm259, %v657
        %vm669 = vcmask 517120
        %vm670 = vmand %vm669, %vm637
        %v671 = vld [vmem:[#allocation2 + $0x10] sm:$0x3]
        %v672 = vsel %vm670, %v658, %v671
        %673 = vst [vmem:[#allocation2 + $0x10] sm:$0x3] %v672
        %v675 = vunpack.c.l.b16 %v617
        %v676 = vunpack.c.h.b16 %v617
        %v677 = vpack.c.b16 %v675, %v675
        %v678 = vpack.c.b16 %v676, %v676
        %vm679 = vsmask.f32 2304
        %vm680 = vsmask.f32 6416
        %vm681 = vmor %vm679, %vm680
        %v683 = vshrl.u32 %v677, 16
        %v685 = vrot.slane %v683, 5
        %v686 = vshll.u32 %v677, 16
        %v688 = vrot.slane %v686, 6
        %v689 = vor.u32 %v685, %v688
        %v690 = vrot.slane %v689, 4
        %v692 = vshrl.u32 %v678, 16
        %v694 = vrot.slane %v692, 5
        %v695 = vshll.u32 %v678, 16
        %v697 = vrot.slane %v695, 6
        %v698 = vor.u32 %v694, %v697
        %v699 = vsel %vm681, %v690, %v698
        %v700 = vrot.slane %v698, 4
        %vm704 = vcmask 519170
        %vm705 = vsmask.f32 7946
        %vm706 = vmand %vm704, %vm705
        %v707 = vld [vmem:[#allocation2 + $0x10] sm:$0xc]
        %v708 = vsel %vm706, %v689, %v707
        %709 = vst [vmem:[#allocation2 + $0x10] sm:$0xc] %v708
        %710 = vst.msk [vmem:[#allocation2 + $0x14] sm:$0xf] %vm259, %v699
        %vm711 = vcmask 518144
        %vm712 = vmand %vm711, %vm679
        %v713 = vld [vmem:[#allocation2 + $0x18] sm:$0x7]
        %v714 = vsel %vm712, %v700, %v713
        %715 = vst [vmem:[#allocation2 + $0x18] sm:$0x7] %v714
        %v717 = vunpack.c.l.b16 %v618
        %v718 = vunpack.c.h.b16 %v618
        %v719 = vpack.c.b16 %v717, %v717
        %v720 = vpack.c.b16 %v718, %v718
        %vm721 = vsmask.f32 3328
        %vm722 = vsmask.f32 7440
        %vm723 = vmor %vm721, %vm722
        %v725 = vshll.u32 %v719, 16
        %v727 = vrot.slane %v725, 5
        %v728 = vshrl.u32 %v719, 16
        %v730 = vrot.slane %v728, 4
        %v731 = vor.u32 %v730, %v727
        %v732 = vrot.slane %v731, 4
        %v734 = vshll.u32 %v720, 16
        %v736 = vrot.slane %v734, 5
        %v737 = vsel %vm723, %v732, %v736
        %v738 = vshrl.u32 %v720, 16
        %v740 = vrot.slane %v738, 4
        %v741 = vor.u32 %v740, %v736
        %v742 = vrot.slane %v741, 4
        %vm746 = vcmask 519171
        %vm747 = vsmask.f32 7950
        %vm748 = vmand %vm746, %vm747
        %v749 = vld [vmem:[#allocation2 + $0x18] sm:$0x8]
        %v750 = vsel %vm748, %v727, %v749
        %751 = vst [vmem:[#allocation2 + $0x18] sm:$0x8] %v750
        %752 = vst.msk [vmem:[#allocation2 + $0x1c] sm:$0xf] %vm259, %v737
        %vm753 = vcmask 519168
        %vm754 = vmand %vm753, %vm721
        %v755 = vld [vmem:[#allocation2 + $0x20] sm:$0xf]
        %v756 = vsel %vm754, %v742, %v755
        %757 = vst [vmem:[#allocation2 + $0x20] sm:$0xf] %v756
        %v759 = vunpack.c.l.b16 %v619
        %v760 = vunpack.c.h.b16 %v619
        %v761 = vpack.c.b16 %v759, %v759
        %v762 = vpack.c.b16 %v760, %v760
        %vm763 = vsmask.f32 256
        %vm764 = vsmask.f32 4368
        %vm765 = vmor %vm763, %vm764
        %v767 = vshrl.u32 %v761, 16
        %v769 = vrot.slane %v767, 7
        %v770 = vshll.u32 %v761, 16
        %v772 = vor.u32 %v769, %v770
        %v773 = vrot.slane %v769, 4
        %v775 = vshrl.u32 %v762, 16
        %v777 = vrot.slane %v775, 7
        %v778 = vshll.u32 %v762, 16
        %v780 = vor.u32 %v777, %v778
        %v781 = vsel %vm765, %v773, %v780
        %v782 = vrot.slane %v777, 4
        %vm786 = vsmask.f32 7938
        %vm787 = vmand %vm753, %vm786
        %v788 = vld [vmem:[#allocation2 + $0x24] sm:$0xf]
        %v789 = vsel %vm787, %v772, %v788
        %790 = vst [vmem:[#allocation2 + $0x24] sm:$0xf] %v789
        %791 = vst.msk [vmem:[#allocation2 + $0x28] sm:$0xf] %vm259, %v781
        %vm792 = vcmask 516096
        %vm793 = vmand %vm792, %vm763
        %v794 = vld [vmem:[#allocation2 + $0x2c] sm:$0x1]
        %v795 = vsel %vm793, %v782, %v794
        %796 = vst [vmem:[#allocation2 + $0x2c] sm:$0x1] %v795
        %v798 = vunpack.c.l.b16 %v620
        %v799 = vunpack.c.h.b16 %v620
        %v800 = vpack.c.b16 %v798, %v798
        %v801 = vpack.c.b16 %v799, %v799
        %v803 = vshrl.u32 %v800, 16
        %v805 = vrot.slane %v803, 6
        %v806 = vshll.u32 %v800, 16
        %v808 = vrot.slane %v806, 7
        %v809 = vor.u32 %v805, %v808
        %v810 = vrot.slane %v809, 4
        %v812 = vshrl.u32 %v801, 16
        %v814 = vrot.slane %v812, 6
        %v815 = vshll.u32 %v801, 16
        %v817 = vrot.slane %v815, 7
        %v818 = vor.u32 %v814, %v817
        %v819 = vsel %vm639, %v810, %v818
        %v820 = vrot.slane %v818, 4
        %v824 = vld [vmem:[#allocation2 + $0x2c] sm:$0xe]
        %v825 = vsel %vm664, %v809, %v824
        %826 = vst [vmem:[#allocation2 + $0x2c] sm:$0xe] %v825
        %827 = vst.msk [vmem:[#allocation2 + $0x30] sm:$0xf] %vm259, %v819
        %v828 = vld [vmem:[#allocation2 + $0x34] sm:$0x3]
        %v829 = vsel %vm670, %v820, %v828
        %830 = vst [vmem:[#allocation2 + $0x34] sm:$0x3] %v829
        %v832 = vunpack.c.l.b16 %v621
        %v833 = vunpack.c.h.b16 %v621
        %v834 = vpack.c.b16 %v832, %v832
        %v835 = vpack.c.b16 %v833, %v833
        %v837 = vshrl.u32 %v834, 16
        %v839 = vrot.slane %v837, 5
        %v840 = vshll.u32 %v834, 16
        %v842 = vrot.slane %v840, 6
        %v843 = vor.u32 %v839, %v842
        %v844 = vrot.slane %v843, 4
        %v846 = vshrl.u32 %v835, 16
        %v848 = vrot.slane %v846, 5
        %v849 = vshll.u32 %v835, 16
        %v851 = vrot.slane %v849, 6
        %v852 = vor.u32 %v848, %v851
        %v853 = vsel %vm681, %v844, %v852
        %v854 = vrot.slane %v852, 4
        %v858 = vld [vmem:[#allocation2 + $0x34] sm:$0xc]
        %v859 = vsel %vm706, %v843, %v858
        %860 = vst [vmem:[#allocation2 + $0x34] sm:$0xc] %v859
        %861 = vst.msk [vmem:[#allocation2 + $0x38] sm:$0xf] %vm259, %v853
        %v862 = vld [vmem:[#allocation2 + $0x3c] sm:$0x7]
        %v863 = vsel %vm712, %v854, %v862
        %864 = vst [vmem:[#allocation2 + $0x3c] sm:$0x7] %v863
        %v866 = vunpack.c.l.b16 %v622
        %v867 = vunpack.c.h.b16 %v622
        %v868 = vpack.c.b16 %v866, %v866
        %v869 = vpack.c.b16 %v867, %v867
        %v871 = vshll.u32 %v868, 16
        %v873 = vrot.slane %v871, 5
        %v874 = vshrl.u32 %v868, 16
        %v876 = vrot.slane %v874, 4
        %v877 = vor.u32 %v876, %v873
        %v878 = vrot.slane %v877, 4
        %v880 = vshll.u32 %v869, 16
        %v882 = vrot.slane %v880, 5
        %v883 = vsel %vm723, %v878, %v882
        %v884 = vshrl.u32 %v869, 16
        %v886 = vrot.slane %v884, 4
        %v887 = vor.u32 %v886, %v882
        %v888 = vrot.slane %v887, 4
        %v892 = vld [vmem:[#allocation2 + $0x3c] sm:$0x8]
        %v893 = vsel %vm748, %v873, %v892
        %894 = vst [vmem:[#allocation2 + $0x3c] sm:$0x8] %v893
        %895 = vst.msk [vmem:[#allocation2 + $0x40] sm:$0xf] %vm259, %v883
        %v896 = vld [vmem:[#allocation2 + $0x44] sm:$0xf]
        %v897 = vsel %vm754, %v888, %v896
        %898 = vst [vmem:[#allocation2 + $0x44] sm:$0xf] %v897
        %v900 = vunpack.c.l.b16 %v623
        %v901 = vunpack.c.h.b16 %v623
        %v902 = vpack.c.b16 %v900, %v900
        %v903 = vpack.c.b16 %v901, %v901
        %v905 = vshrl.u32 %v902, 16
        %v907 = vrot.slane %v905, 7
        %v908 = vshll.u32 %v902, 16
        %v910 = vor.u32 %v907, %v908
        %v911 = vrot.slane %v907, 4
        %v913 = vshrl.u32 %v903, 16
        %v915 = vrot.slane %v913, 7
        %v916 = vshll.u32 %v903, 16
        %v918 = vor.u32 %v915, %v916
        %v919 = vsel %vm765, %v911, %v918
        %v920 = vrot.slane %v915, 4
        %v924 = vld [vmem:[#allocation2 + $0x48] sm:$0xf]
        %v925 = vsel %vm787, %v910, %v924
        %926 = vst [vmem:[#allocation2 + $0x48] sm:$0xf] %v925
        %927 = vst.msk [vmem:[#allocation2 + $0x4c] sm:$0xf] %vm259, %v919
        %v928 = vld [vmem:[#allocation2 + $0x50] sm:$0x1]
        %v929 = vsel %vm793, %v920, %v928
        %930 = vst [vmem:[#allocation2 + $0x50] sm:$0x1] %v929
        %v932 = vunpack.c.l.b16 %v624
        %v933 = vunpack.c.h.b16 %v624
        %v934 = vpack.c.b16 %v932, %v932
        %v935 = vpack.c.b16 %v933, %v933
        %v937 = vshrl.u32 %v934, 16
        %v939 = vrot.slane %v937, 6
        %v940 = vshll.u32 %v934, 16
        %v942 = vrot.slane %v940, 7
        %v943 = vor.u32 %v939, %v942
        %v944 = vrot.slane %v943, 4
        %v946 = vshrl.u32 %v935, 16
        %v948 = vrot.slane %v946, 6
        %v949 = vshll.u32 %v935, 16
        %v951 = vrot.slane %v949, 7
        %v952 = vor.u32 %v948, %v951
        %v953 = vsel %vm639, %v944, %v952
        %v954 = vrot.slane %v952, 4
        %v958 = vld [vmem:[#allocation2 + $0x50] sm:$0xe]
        %v959 = vsel %vm664, %v943, %v958
        %960 = vst [vmem:[#allocation2 + $0x50] sm:$0xe] %v959
        %961 = vst.msk [vmem:[#allocation2 + $0x54] sm:$0xf] %vm259, %v953
        %v962 = vld [vmem:[#allocation2 + $0x58] sm:$0x3]
        %v963 = vsel %vm670, %v954, %v962
        %964 = vst [vmem:[#allocation2 + $0x58] sm:$0x3] %v963
        %v966 = vunpack.c.l.b16 %v625
        %v967 = vunpack.c.h.b16 %v625
        %v968 = vpack.c.b16 %v966, %v966
        %v969 = vpack.c.b16 %v967, %v967
        %v971 = vshrl.u32 %v968, 16
        %v973 = vrot.slane %v971, 5
        %v974 = vshll.u32 %v968, 16
        %v976 = vrot.slane %v974, 6
        %v977 = vor.u32 %v973, %v976
        %v978 = vrot.slane %v977, 4
        %v980 = vshrl.u32 %v969, 16
        %v982 = vrot.slane %v980, 5
        %v983 = vshll.u32 %v969, 16
        %v985 = vrot.slane %v983, 6
        %v986 = vor.u32 %v982, %v985
        %v987 = vsel %vm681, %v978, %v986
        %v988 = vrot.slane %v986, 4
        %v992 = vld [vmem:[#allocation2 + $0x58] sm:$0xc]
        %v993 = vsel %vm706, %v977, %v992
        %994 = vst [vmem:[#allocation2 + $0x58] sm:$0xc] %v993
        %995 = vst.msk [vmem:[#allocation2 + $0x5c] sm:$0xf] %vm259, %v987
        %v996 = vld [vmem:[#allocation2 + $0x60] sm:$0x7]
        %v997 = vsel %vm712, %v988, %v996
        %998 = vst [vmem:[#allocation2 + $0x60] sm:$0x7] %v997
        %v1000 = vunpack.c.l.b16 %v626
        %v1001 = vunpack.c.h.b16 %v626
        %v1002 = vpack.c.b16 %v1000, %v1000
        %v1003 = vpack.c.b16 %v1001, %v1001
        %v1005 = vshll.u32 %v1002, 16
        %v1007 = vrot.slane %v1005, 5
        %v1008 = vshrl.u32 %v1002, 16
        %v1010 = vrot.slane %v1008, 4
        %v1011 = vor.u32 %v1010, %v1007
        %v1012 = vrot.slane %v1011, 4
        %v1014 = vshll.u32 %v1003, 16
        %v1016 = vrot.slane %v1014, 5
        %v1017 = vsel %vm723, %v1012, %v1016
        %v1018 = vshrl.u32 %v1003, 16
        %v1020 = vrot.slane %v1018, 4
        %v1021 = vor.u32 %v1020, %v1016
        %v1022 = vrot.slane %v1021, 4
        %v1026 = vld [vmem:[#allocation2 + $0x60] sm:$0x8]
        %v1027 = vsel %vm748, %v1007, %v1026
        %1028 = vst [vmem:[#allocation2 + $0x60] sm:$0x8] %v1027
        %1029 = vst.msk [vmem:[#allocation2 + $0x64] sm:$0xf] %vm259, %v1017
        %v1030 = vld [vmem:[#allocation2 + $0x68] sm:$0xf]
        %v1031 = vsel %vm754, %v1022, %v1030
        %1032 = vst [vmem:[#allocation2 + $0x68] sm:$0xf] %v1031
        %v1034 = vunpack.c.l.b16 %v627
        %v1035 = vunpack.c.h.b16 %v627
        %v1036 = vpack.c.b16 %v1034, %v1034
        %v1037 = vpack.c.b16 %v1035, %v1035
        %v1039 = vshrl.u32 %v1036, 16
        %v1041 = vrot.slane %v1039, 7
        %v1042 = vshll.u32 %v1036, 16
        %v1044 = vor.u32 %v1041, %v1042
        %v1045 = vrot.slane %v1041, 4
        %v1047 = vshrl.u32 %v1037, 16
        %v1049 = vrot.slane %v1047, 7
        %v1050 = vshll.u32 %v1037, 16
        %v1052 = vor.u32 %v1049, %v1050
        %v1053 = vsel %vm765, %v1045, %v1052
        %v1054 = vrot.slane %v1049, 4
        %v1058 = vld [vmem:[#allocation2 + $0x6c] sm:$0xf]
        %v1059 = vsel %vm787, %v1044, %v1058
        %1060 = vst [vmem:[#allocation2 + $0x6c] sm:$0xf] %v1059
        %1061 = vst.msk [vmem:[#allocation2 + $0x70] sm:$0xf] %vm259, %v1053
        %v1062 = vld [vmem:[#allocation2 + $0x74] sm:$0x1]
        %v1063 = vsel %vm793, %v1054, %v1062
        %1064 = vst [vmem:[#allocation2 + $0x74] sm:$0x1] %v1063
        %v1066 = vunpack.c.l.b16 %v628
        %v1067 = vunpack.c.h.b16 %v628
        %v1068 = vpack.c.b16 %v1066, %v1066
        %v1069 = vpack.c.b16 %v1067, %v1067
        %v1071 = vshrl.u32 %v1068, 16
        %v1073 = vrot.slane %v1071, 6
        %v1074 = vshll.u32 %v1068, 16
        %v1076 = vrot.slane %v1074, 7
        %v1077 = vor.u32 %v1073, %v1076
        %v1078 = vrot.slane %v1077, 4
        %v1080 = vshrl.u32 %v1069, 16
        %v1082 = vrot.slane %v1080, 6
        %v1083 = vshll.u32 %v1069, 16
        %v1085 = vrot.slane %v1083, 7
        %v1086 = vor.u32 %v1082, %v1085
        %v1087 = vsel %vm639, %v1078, %v1086
        %v1088 = vrot.slane %v1086, 4
        %v1092 = vld [vmem:[#allocation2 + $0x74] sm:$0xe]
        %v1093 = vsel %vm664, %v1077, %v1092
        %1094 = vst [vmem:[#allocation2 + $0x74] sm:$0xe] %v1093
        %1095 = vst.msk [vmem:[#allocation2 + $0x78] sm:$0xf] %vm259, %v1087
        %v1096 = vld [vmem:[#allocation2 + $0x7c] sm:$0x3]
        %v1097 = vsel %vm670, %v1088, %v1096
        %1098 = vst [vmem:[#allocation2 + $0x7c] sm:$0x3] %v1097
        %v1100 = vunpack.c.l.b16 %v629
        %v1101 = vunpack.c.h.b16 %v629
        %v1102 = vpack.c.b16 %v1100, %v1100
        %v1103 = vpack.c.b16 %v1101, %v1101
        %v1105 = vshrl.u32 %v1102, 16
        %v1107 = vrot.slane %v1105, 5
        %v1108 = vshll.u32 %v1102, 16
        %v1110 = vrot.slane %v1108, 6
        %v1111 = vor.u32 %v1107, %v1110
        %v1112 = vrot.slane %v1111, 4
        %v1114 = vshrl.u32 %v1103, 16
        %v1116 = vrot.slane %v1114, 5
        %v1117 = vshll.u32 %v1103, 16
        %v1119 = vrot.slane %v1117, 6
        %v1120 = vor.u32 %v1116, %v1119
        %v1121 = vsel %vm681, %v1112, %v1120
        %v1122 = vrot.slane %v1120, 4
        %v1126 = vld [vmem:[#allocation2 + $0x7c] sm:$0xc]
        %v1127 = vsel %vm706, %v1111, %v1126
        %1128 = vst [vmem:[#allocation2 + $0x7c] sm:$0xc] %v1127
        %1129 = vst.msk [vmem:[#allocation2 + $0x80] sm:$0xf] %vm259, %v1121
        %v1130 = vld [vmem:[#allocation2 + $0x84] sm:$0x7]
        %v1131 = vsel %vm712, %v1122, %v1130
        %1132 = vst [vmem:[#allocation2 + $0x84] sm:$0x7] %v1131
        %v1134 = vunpack.c.l.b16 %v630
        %v1135 = vunpack.c.h.b16 %v630
        %v1136 = vpack.c.b16 %v1134, %v1134
        %v1137 = vpack.c.b16 %v1135, %v1135
        %v1139 = vshll.u32 %v1136, 16
        %v1141 = vrot.slane %v1139, 5
        %v1142 = vshrl.u32 %v1136, 16
        %v1144 = vrot.slane %v1142, 4
        %v1145 = vor.u32 %v1144, %v1141
        %v1146 = vrot.slane %v1145, 4
        %v1148 = vshll.u32 %v1137, 16
        %v1150 = vrot.slane %v1148, 5
        %v1151 = vsel %vm723, %v1146, %v1150
        %v1152 = vshrl.u32 %v1137, 16
        %v1154 = vrot.slane %v1152, 4
        %v1155 = vor.u32 %v1154, %v1150
        %v1156 = vrot.slane %v1155, 4
        %v1160 = vld [vmem:[#allocation2 + $0x84] sm:$0x8]
        %v1161 = vsel %vm748, %v1141, %v1160
        %1162 = vst [vmem:[#allocation2 + $0x84] sm:$0x8] %v1161
        %1163 = vst.msk [vmem:[#allocation2 + $0x88] sm:$0xf] %vm259, %v1151
        %v1164 = vld [vmem:[#allocation2 + $0x8c] sm:$0xf]
        %v1165 = vsel %vm754, %v1156, %v1164
        %1166 = vst [vmem:[#allocation2 + $0x8c] sm:$0xf] %v1165
        %v1168 = vunpack.c.l.b16 %v631
        %v1169 = vunpack.c.h.b16 %v631
        %v1170 = vpack.c.b16 %v1168, %v1168
        %v1171 = vpack.c.b16 %v1169, %v1169
        %v1173 = vshrl.u32 %v1170, 16
        %v1175 = vrot.slane %v1173, 7
        %v1176 = vshll.u32 %v1170, 16
        %v1178 = vor.u32 %v1175, %v1176
        %v1179 = vrot.slane %v1175, 4
        %v1181 = vshrl.u32 %v1171, 16
        %v1183 = vrot.slane %v1181, 7
        %v1184 = vshll.u32 %v1171, 16
        %v1186 = vor.u32 %v1183, %v1184
        %v1187 = vsel %vm765, %v1179, %v1186
        %v1188 = vrot.slane %v1183, 4
        %v1192 = vld [vmem:[#allocation2 + $0x90] sm:$0xf]
        %v1193 = vsel %vm787, %v1178, %v1192
        %1194 = vst [vmem:[#allocation2 + $0x90] sm:$0xf] %v1193
        %1195 = vst.msk [vmem:[#allocation2 + $0x94] sm:$0xf] %vm259, %v1187
        %v1196 = vld [vmem:[#allocation2 + $0x98] sm:$0x1]
        %v1197 = vsel %vm793, %v1188, %v1196
        %1198 = vst [vmem:[#allocation2 + $0x98] sm:$0x1] %v1197
        %v1199 = vld [vmem:[%s4] sm:$0x1]
        %v1200 = vld [vmem:[#allocation2] sm:$0xf]
        %v1201 = vld [vmem:[#allocation2 + $0x4] sm:$0xf]
        %v1202 = vld [vmem:[#allocation2 + $0x8] sm:$0xf]
        %v1203 = vld [vmem:[#allocation2 + $0xc] sm:$0xf]
        %v1204 = vld [vmem:[#allocation2 + $0x10] sm:$0xf]
        %v1205 = vld [vmem:[#allocation2 + $0x14] sm:$0xf]
        %v1206 = vld [vmem:[#allocation2 + $0x18] sm:$0xf]
        %v1207 = vld [vmem:[#allocation2 + $0x1c] sm:$0xf]
        %v1208 = vld [vmem:[#allocation2 + $0x20] sm:$0xf]
        %v1209 = vld [vmem:[#allocation2 + $0x24] sm:$0xf]
        %v1210 = vld [vmem:[#allocation2 + $0x28] sm:$0xf]
        %v1211 = vld [vmem:[#allocation2 + $0x2c] sm:$0xf]
        %v1212 = vld [vmem:[#allocation2 + $0x30] sm:$0xf]
        %v1213 = vld [vmem:[#allocation2 + $0x34] sm:$0xf]
        %v1214 = vld [vmem:[#allocation2 + $0x38] sm:$0xf]
        %v1215 = vld [vmem:[#allocation2 + $0x3c] sm:$0xf]
        %v1216 = vld [vmem:[#allocation2 + $0x40] sm:$0xf]
        %v1217 = vld [vmem:[#allocation2 + $0x44] sm:$0xf]
        %v1218 = vld [vmem:[#allocation6] sm:$0xf]
        %v1219 = vld [vmem:[#allocation6 + $0x4] sm:$0xf]
        %v1220 = vld [vmem:[#allocation6 + $0x8] sm:$0xf]
        %v1221 = vld [vmem:[#allocation6 + $0xc] sm:$0xf]
        %v1222 = vld [vmem:[#allocation6 + $0x10] sm:$0xf]
        %v1223 = vld [vmem:[#allocation6 + $0x14] sm:$0xf]
        %v1224 = vld [vmem:[#allocation6 + $0x18] sm:$0xf]
        %v1225 = vld [vmem:[#allocation6 + $0x1c] sm:$0xf]
        %v1226 = vld [vmem:[#allocation2 + $0x48] sm:$0x1]
        %s1227 = scalar_lea.vmem [#allocation6], 32
        %v1228 = vld [vmem:[%s1227] sm:$0xf]
        %v1229 = vld [vmem:[%s1227 + $0x4] sm:$0xf]
        %v1230 = vld [vmem:[%s1227 + $0x8] sm:$0xf]
        %v1231 = vld [vmem:[%s1227 + $0xc] sm:$0xf]
        %v1232 = vld [vmem:[%s1227 + $0x10] sm:$0xf]
        %v1233 = vld [vmem:[%s1227 + $0x14] sm:$0xf]
        %v1234 = vld [vmem:[%s1227 + $0x18] sm:$0xf]
        %v1235 = vld [vmem:[%s1227 + $0x1c] sm:$0xf]
        %v1255 = vunpack.c.l.b16 %v1200
        %v1256 = vunpack.c.l.b16 %v1201
        %v1257 = vunpack.c.l.b16 %v1202
        %v1258 = vunpack.c.l.b16 %v1203
        %v1259 = vunpack.c.l.b16 %v1204
        %v1260 = vunpack.c.l.b16 %v1205
        %v1261 = vunpack.c.l.b16 %v1206
        %v1262 = vunpack.c.l.b16 %v1207
        %v1263 = vunpack.c.l.b16 %v1208
        %v1264 = vunpack.c.l.b16 %v1209
        %v1265 = vunpack.c.l.b16 %v1210
        %v1266 = vunpack.c.l.b16 %v1211
        %v1267 = vunpack.c.l.b16 %v1212
        %v1268 = vunpack.c.l.b16 %v1213
        %v1269 = vunpack.c.l.b16 %v1214
        %v1270 = vunpack.c.l.b16 %v1215
        %v1271 = vunpack.c.l.b16 %v1216
        %v1272 = vunpack.c.l.b16 %v1217
        %v1273 = vunpack.c.l.b16 %v1226
        %v1274 = vpack.c.b16 %v1256, %v1255
        %v1275 = vpack.c.b16 %v1258, %v1257
        %v1276 = vpack.c.b16 %v1260, %v1259
        %v1277 = vpack.c.b16 %v1262, %v1261
        %v1278 = vpack.c.b16 %v1264, %v1263
        %v1279 = vpack.c.b16 %v1266, %v1265
        %v1280 = vpack.c.b16 %v1268, %v1267
        %v1281 = vpack.c.b16 %v1270, %v1269
        %v1282 = vpack.c.b16 %v1272, %v1271
        %v1283 = vpack.c.b16 %v1273, %v1273
        %vm1284 = vsmask.f32 7424
        %v1286 = vshrl.u32 %v1274, 16
        %v1288 = vshll.u32 %v1274, 16
        %v1290 = vrot.slane %v1288, 1
        %v1291 = vor.u32 %v1286, %v1290
        %v1293 = vshll.u32 %v1275, 16
        %v1295 = vrot.slane %v1293, 1
        %v1296 = vsel %vm1284, %v1291, %v1295
        %v1297 = vshrl.u32 %v1275, 16
        %v1299 = vor.u32 %v1297, %v1295
        %v1301 = vshll.u32 %v1276, 16
        %v1303 = vrot.slane %v1301, 1
        %v1304 = vsel %vm1284, %v1299, %v1303
        %v1305 = vshrl.u32 %v1276, 16
        %v1307 = vor.u32 %v1305, %v1303
        %v1309 = vshll.u32 %v1277, 16
        %v1311 = vrot.slane %v1309, 1
        %v1312 = vsel %vm1284, %v1307, %v1311
        %v1313 = vshrl.u32 %v1277, 16
        %v1315 = vor.u32 %v1313, %v1311
        %v1317 = vshll.u32 %v1278, 16
        %v1319 = vrot.slane %v1317, 1
        %v1320 = vsel %vm1284, %v1315, %v1319
        %v1321 = vshrl.u32 %v1278, 16
        %v1323 = vor.u32 %v1321, %v1319
        %v1325 = vshll.u32 %v1279, 16
        %v1327 = vrot.slane %v1325, 1
        %v1328 = vsel %vm1284, %v1323, %v1327
        %v1329 = vshrl.u32 %v1279, 16
        %v1331 = vor.u32 %v1329, %v1327
        %v1333 = vshll.u32 %v1280, 16
        %v1335 = vrot.slane %v1333, 1
        %v1336 = vsel %vm1284, %v1331, %v1335
        %v1337 = vshrl.u32 %v1280, 16
        %v1339 = vor.u32 %v1337, %v1335
        %v1341 = vshll.u32 %v1281, 16
        %v1343 = vrot.slane %v1341, 1
        %v1344 = vsel %vm1284, %v1339, %v1343
        %v1345 = vshrl.u32 %v1281, 16
        %v1347 = vor.u32 %v1345, %v1343
        %v1349 = vshll.u32 %v1282, 16
        %v1351 = vrot.slane %v1349, 1
        %v1352 = vsel %vm1284, %v1347, %v1351
        %v1353 = vshrl.u32 %v1282, 16
        %v1355 = vor.u32 %v1353, %v1351
        %v1357 = vshll.u32 %v1283, 16
        %v1359 = vrot.slane %v1357, 1
        %v1360 = vsel %vm1284, %v1355, %v1359
        %v1369 = vunpack.c.l.b16 %v1228
        %v1370 = vunpack.c.l.b16 %v1229
        %v1371 = vunpack.c.l.b16 %v1230
        %v1372 = vunpack.c.l.b16 %v1231
        %v1373 = vunpack.c.l.b16 %v1232
        %v1374 = vunpack.c.l.b16 %v1233
        %v1375 = vunpack.c.l.b16 %v1234
        %v1376 = vunpack.c.l.b16 %v1235
        %v1377 = vpack.c.b16 %v1370, %v1369
        %v1378 = vpack.c.b16 %v1372, %v1371
        %v1379 = vpack.c.b16 %v1374, %v1373
        %v1380 = vpack.c.b16 %v1376, %v1375
        %vm1385 = vcmask 523264
        %v1387 = vsel %vm1385, %v1296, 0
        %v1390 = vsel %vm1385, %v1304, 0
        %v1393 = vsel %vm1385, %v1312, 0
        %v1396 = vsel %vm1385, %v1320, 0
        %v1399 = vsel %vm1385, %v1328, 0
        %v1402 = vsel %vm1385, %v1336, 0
        %v1405 = vsel %vm1385, %v1344, 0
        %v1408 = vsel %vm1385, %v1352, 0
        %v1411 = vsel %vm1385, %v1360, 0
        %1413 = vmatprep.subr.bf16.mxu0 0
        %1414 = vmatpush1.bf16.msra.mxu0 %v1377
        %1415 = vmatprep.subr.bf16.mxu0 0
        %1416 = vmatpush1.bf16.msra.mxu0 %v1378
        %1417 = vmatprep.subr.bf16.mxu0 0
        %1418 = vmatpush1.bf16.msra.mxu0 %v1379
        %1419 = vmatprep.subr.bf16.mxu0 0
        %1420 = vmatpush1.bf16.msra.mxu0 %v1380
        %1421 = vmatprep.subr.bf16.mxu0 0
        %1422 = vmatpush1.bf16.msra.mxu0 0
        %1423 = vmatprep.subr.bf16.mxu0 0
        %1424 = vmatpush1.bf16.msra.mxu0 0
        %1425 = vmatprep.subr.bf16.mxu0 0
        %1426 = vmatpush1.bf16.msra.mxu0 0
        %1427 = vmatprep.subr.bf16.mxu0 0
        %1428 = vmatpush1.bf16.msra.mxu0 0
        %1429 = vmatprep.subr.bf16.mxu0 0
        %1430 = vmatpush1.bf16.msra.mxu0 0
        %1431 = vmatprep.subr.bf16.mxu0 0
        %1432 = vmatpush1.bf16.msra.mxu0 0
        %1433 = vmatprep.subr.bf16.mxu0 0
        %1434 = vmatpush1.bf16.msra.mxu0 0
        %1435 = vmatprep.subr.bf16.mxu0 0
        %1436 = vmatpush1.bf16.msra.mxu0 0
        %1437 = vmatprep.subr.bf16.mxu0 0
        %1438 = vmatpush1.bf16.msra.mxu0 0
        %1439 = vmatprep.subr.bf16.mxu0 0
        %1440 = vmatpush1.bf16.msra.mxu0 0
        %1441 = vmatprep.subr.bf16.mxu0 0
        %1442 = vmatpush1.bf16.msra.mxu0 0
        %1443 = vmatprep.subr.bf16.mxu0 0
        %1444 = vmatpush1.bf16.msra.mxu0 0
        %1445 = vmatprep.mubr.bf16.mxu0 0
        %1446 = vmatmul.mubr.bf16.gmra.mrb[0].mxu0 %v1387
        %v1447 = vpop.f32.mrb[0].mxu0
        %v1448 = vadd.f32 0.0, %v1447
        %v1449 = vpop.f32.mrb[0].mxu0
        %v1450 = vpop.f32.mrb[0].mxu0
        %v1451 = vadd.f32 0.0, %v1450
        %v1452 = vpop.f32.mrb[0].mxu0
        %1453 = vmatprep.mubr.bf16.mxu0 0
        %1454 = vmatmul.mubr.bf16.gmra.mrb[0].mxu0 %v1390
        %v1455 = vpop.f32.mrb[0].mxu0
        %v1456 = vadd.f32 0.0, %v1455
        %v1457 = vpop.f32.mrb[0].mxu0
        %v1458 = vpop.f32.mrb[0].mxu0
        %v1459 = vadd.f32 0.0, %v1458
        %v1460 = vpop.f32.mrb[0].mxu0
        %1461 = vmatprep.mubr.bf16.mxu0 0
        %1462 = vmatmul.mubr.bf16.gmra.mrb[0].mxu0 %v1393
        %v1463 = vpop.f32.mrb[0].mxu0
        %v1464 = vadd.f32 0.0, %v1463
        %v1465 = vpop.f32.mrb[0].mxu0
        %v1466 = vpop.f32.mrb[0].mxu0
        %v1467 = vadd.f32 0.0, %v1466
        %v1468 = vpop.f32.mrb[0].mxu0
        %1469 = vmatprep.mubr.bf16.mxu0 0
        %1470 = vmatmul.mubr.bf16.gmra.mrb[0].mxu0 %v1396
        %v1471 = vpop.f32.mrb[0].mxu0
        %v1472 = vadd.f32 0.0, %v1471
        %v1473 = vpop.f32.mrb[0].mxu0
        %v1474 = vpop.f32.mrb[0].mxu0
        %v1475 = vadd.f32 0.0, %v1474
        %v1476 = vpop.f32.mrb[0].mxu0
        %1477 = vmatprep.mubr.bf16.mxu0 0
        %1478 = vmatmul.mubr.bf16.gmra.mrb[0].mxu0 %v1399
        %v1479 = vpop.f32.mrb[0].mxu0
        %v1480 = vadd.f32 0.0, %v1479
        %v1481 = vpop.f32.mrb[0].mxu0
        %v1482 = vpop.f32.mrb[0].mxu0
        %v1483 = vadd.f32 0.0, %v1482
        %v1484 = vpop.f32.mrb[0].mxu0
        %1485 = vmatprep.mubr.bf16.mxu0 0
        %1486 = vmatmul.mubr.bf16.gmra.mrb[0].mxu0 %v1402
        %v1487 = vpop.f32.mrb[0].mxu0
        %v1488 = vadd.f32 0.0, %v1487
        %v1489 = vpop.f32.mrb[0].mxu0
        %v1490 = vpop.f32.mrb[0].mxu0
        %v1491 = vadd.f32 0.0, %v1490
        %v1492 = vpop.f32.mrb[0].mxu0
        %1493 = vmatprep.mubr.bf16.mxu0 0
        %1494 = vmatmul.mubr.bf16.gmra.mrb[0].mxu0 %v1405
        %v1495 = vpop.f32.mrb[0].mxu0
        %v1496 = vadd.f32 0.0, %v1495
        %v1497 = vpop.f32.mrb[0].mxu0
        %v1498 = vpop.f32.mrb[0].mxu0
        %v1499 = vadd.f32 0.0, %v1498
        %v1500 = vpop.f32.mrb[0].mxu0
        %1501 = vmatprep.mubr.bf16.mxu0 0
        %1502 = vmatmul.mubr.bf16.gmra.mrb[0].mxu0 %v1408
        %v1503 = vpop.f32.mrb[0].mxu0
        %v1504 = vadd.f32 0.0, %v1503
        %v1505 = vpop.f32.mrb[0].mxu0
        %v1506 = vpop.f32.mrb[0].mxu0
        %v1507 = vadd.f32 0.0, %v1506
        %v1508 = vpop.f32.mrb[0].mxu0
        %1509 = vmatprep.mubr.bf16.mxu0 0
        %1510 = vmatmul.mubr.bf16.gmra.mrb[0].mxu0 %v1411
        %v1511 = vpop.f32.mrb[0].mxu0
        %v1512 = vadd.f32 0.0, %v1511
        %v1513 = vpop.f32.mrb[0].mxu0
        %v1514 = vpop.f32.mrb[0].mxu0
        %v1515 = vadd.f32 0.0, %v1514
        %v1516 = vpop.f32.mrb[0].mxu0
        %1517 = vdwg.mxu0
        %v1526 = vunpack.c.l.b16 %v1218
        %v1527 = vunpack.c.l.b16 %v1219
        %v1528 = vunpack.c.l.b16 %v1220
        %v1529 = vunpack.c.l.b16 %v1221
        %v1530 = vunpack.c.l.b16 %v1222
        %v1531 = vunpack.c.l.b16 %v1223
        %v1532 = vunpack.c.l.b16 %v1224
        %v1533 = vunpack.c.l.b16 %v1225
        %v1534 = vpack.c.b16 %v1527, %v1526
        %v1535 = vpack.c.b16 %v1529, %v1528
        %v1536 = vpack.c.b16 %v1531, %v1530
        %v1537 = vpack.c.b16 %v1533, %v1532
        %v1542 = vsel %vm1385, %v1274, 0
        %v1544 = vsel %vm1385, %v1275, 0
        %v1546 = vsel %vm1385, %v1276, 0
        %v1548 = vsel %vm1385, %v1277, 0
        %v1550 = vsel %vm1385, %v1278, 0
        %v1552 = vsel %vm1385, %v1279, 0
        %v1554 = vsel %vm1385, %v1280, 0
        %v1556 = vsel %vm1385, %v1281, 0
        %v1558 = vsel %vm1385, %v1282, 0
        %1560 = vmatprep.subr.bf16.mxu0 0
        %1561 = vmatpush1.bf16.msra.mxu0 %v1534
        %1562 = vmatprep.subr.bf16.mxu0 0
        %1563 = vmatpush1.bf16.msra.mxu0 %v1535
        %1564 = vmatprep.subr.bf16.mxu0 0
        %1565 = vmatpush1.bf16.msra.mxu0 %v1536
        %1566 = vmatprep.subr.bf16.mxu0 0
        %1567 = vmatpush1.bf16.msra.mxu0 %v1537
        %1568 = vmatprep.subr.bf16.mxu0 0
        %1569 = vmatpush1.bf16.msra.mxu0 0
        %1570 = vmatprep.subr.bf16.mxu0 0
        %1571 = vmatpush1.bf16.msra.mxu0 0
        %1572 = vmatprep.subr.bf16.mxu0 0
        %1573 = vmatpush1.bf16.msra.mxu0 0
        %1574 = vmatprep.subr.bf16.mxu0 0
        %1575 = vmatpush1.bf16.msra.mxu0 0
        %1576 = vmatprep.subr.bf16.mxu0 0
        %1577 = vmatpush1.bf16.msra.mxu0 0
        %1578 = vmatprep.subr.bf16.mxu0 0
        %1579 = vmatpush1.bf16.msra.mxu0 0
        %1580 = vmatprep.subr.bf16.mxu0 0
        %1581 = vmatpush1.bf16.msra.mxu0 0
        %1582 = vmatprep.subr.bf16.mxu0 0
        %1583 = vmatpush1.bf16.msra.mxu0 0
        %1584 = vmatprep.subr.bf16.mxu0 0
        %1585 = vmatpush1.bf16.msra.mxu0 0
        %1586 = vmatprep.subr.bf16.mxu0 0
        %1587 = vmatpush1.bf16.msra.mxu0 0
        %1588 = vmatprep.subr.bf16.mxu0 0
        %1589 = vmatpush1.bf16.msra.mxu0 0
        %1590 = vmatprep.subr.bf16.mxu0 0
        %1591 = vmatpush1.bf16.msra.mxu0 0
        %1592 = vmatprep.mubr.bf16.mxu0 0
        %1593 = vmatmul.mubr.bf16.gmra.mrb[0].mxu0 %v1542
        %v1594 = vpop.f32.mrb[0].mxu0
        %v1595 = vadd.f32 %v1448, %v1594
        %v1596 = vpop.f32.mrb[0].mxu0
        %v1597 = vpop.f32.mrb[0].mxu0
        %v1598 = vadd.f32 %v1451, %v1597
        %v1599 = vpop.f32.mrb[0].mxu0
        %1600 = vmatprep.mubr.bf16.mxu0 0
        %1601 = vmatmul.mubr.bf16.gmra.mrb[0].mxu0 %v1544
        %v1602 = vpop.f32.mrb[0].mxu0
        %v1603 = vadd.f32 %v1456, %v1602
        %v1604 = vpop.f32.mrb[0].mxu0
        %v1605 = vpop.f32.mrb[0].mxu0
        %v1606 = vadd.f32 %v1459, %v1605
        %v1607 = vpop.f32.mrb[0].mxu0
        %1608 = vmatprep.mubr.bf16.mxu0 0
        %1609 = vmatmul.mubr.bf16.gmra.mrb[0].mxu0 %v1546
        %v1610 = vpop.f32.mrb[0].mxu0
        %v1611 = vadd.f32 %v1464, %v1610
        %v1612 = vpop.f32.mrb[0].mxu0
        %v1613 = vpop.f32.mrb[0].mxu0
        %v1614 = vadd.f32 %v1467, %v1613
        %v1615 = vpop.f32.mrb[0].mxu0
        %1616 = vmatprep.mubr.bf16.mxu0 0
        %1617 = vmatmul.mubr.bf16.gmra.mrb[0].mxu0 %v1548
        %v1618 = vpop.f32.mrb[0].mxu0
        %v1619 = vadd.f32 %v1472, %v1618
        %v1620 = vpop.f32.mrb[0].mxu0
        %v1621 = vpop.f32.mrb[0].mxu0
        %v1622 = vadd.f32 %v1475, %v1621
        %v1623 = vpop.f32.mrb[0].mxu0
        %1624 = vmatprep.mubr.bf16.mxu0 0
        %1625 = vmatmul.mubr.bf16.gmra.mrb[0].mxu0 %v1550
        %v1626 = vpop.f32.mrb[0].mxu0
        %v1627 = vadd.f32 %v1480, %v1626
        %v1628 = vpop.f32.mrb[0].mxu0
        %v1629 = vpop.f32.mrb[0].mxu0
        %v1630 = vadd.f32 %v1483, %v1629
        %v1631 = vpop.f32.mrb[0].mxu0
        %1632 = vmatprep.mubr.bf16.mxu0 0
        %1633 = vmatmul.mubr.bf16.gmra.mrb[0].mxu0 %v1552
        %v1634 = vpop.f32.mrb[0].mxu0
        %v1635 = vadd.f32 %v1488, %v1634
        %v1636 = vpop.f32.mrb[0].mxu0
        %v1637 = vpop.f32.mrb[0].mxu0
        %v1638 = vadd.f32 %v1491, %v1637
        %v1639 = vpop.f32.mrb[0].mxu0
        %1640 = vmatprep.mubr.bf16.mxu0 0
        %1641 = vmatmul.mubr.bf16.gmra.mrb[0].mxu0 %v1554
        %v1642 = vpop.f32.mrb[0].mxu0
        %v1643 = vadd.f32 %v1496, %v1642
        %v1644 = vpop.f32.mrb[0].mxu0
        %v1645 = vpop.f32.mrb[0].mxu0
        %v1646 = vadd.f32 %v1499, %v1645
        %v1647 = vpop.f32.mrb[0].mxu0
        %1648 = vmatprep.mubr.bf16.mxu0 0
        %1649 = vmatmul.mubr.bf16.gmra.mrb[0].mxu0 %v1556
        %v1650 = vpop.f32.mrb[0].mxu0
        %v1651 = vadd.f32 %v1504, %v1650
        %v1652 = vpop.f32.mrb[0].mxu0
        %v1653 = vpop.f32.mrb[0].mxu0
        %v1654 = vadd.f32 %v1507, %v1653
        %v1655 = vpop.f32.mrb[0].mxu0
        %1656 = vmatprep.mubr.bf16.mxu0 0
        %1657 = vmatmul.mubr.bf16.gmra.mrb[0].mxu0 %v1558
        %v1658 = vpop.f32.mrb[0].mxu0
        %v1659 = vadd.f32 %v1512, %v1658
        %v1660 = vpop.f32.mrb[0].mxu0
        %v1661 = vpop.f32.mrb[0].mxu0
        %v1662 = vadd.f32 %v1515, %v1661
        %v1663 = vpop.f32.mrb[0].mxu0
        %1664 = vdwg.mxu0
        %v1665 = vld [vmem:[#allocation2] sm:$0xe]
        %s1666 = scalar_lea.vmem [#allocation6], 64
        %v1667 = vld [vmem:[%s1666] sm:$0xf]
        %v1668 = vld [vmem:[%s1666 + $0x4] sm:$0xf]
        %v1669 = vld [vmem:[%s1666 + $0x8] sm:$0xf]
        %v1670 = vld [vmem:[%s1666 + $0xc] sm:$0xf]
        %v1671 = vld [vmem:[%s1666 + $0x10] sm:$0xf]
        %v1672 = vld [vmem:[%s1666 + $0x14] sm:$0xf]
        %v1673 = vld [vmem:[%s1666 + $0x18] sm:$0xf]
        %v1674 = vld [vmem:[%s1666 + $0x1c] sm:$0xf]
        %v1676 = vunpack.c.l.b16 %v1665
        %v1677 = vpack.c.b16 %v1256, %v1676
        %vm1678 = vcmask 1046528
        %v1679 = vrot.slane %v1677, 1
        %v1680 = vrot.slane %v1275, 1
        %v1681 = vsel %vm1678, %v1679, %v1680
        %v1682 = vrot.slane %v1276, 1
        %v1683 = vsel %vm1678, %v1680, %v1682
        %v1684 = vrot.slane %v1277, 1
        %v1685 = vsel %vm1678, %v1682, %v1684
        %v1686 = vrot.slane %v1278, 1
        %v1687 = vsel %vm1678, %v1684, %v1686
        %v1688 = vrot.slane %v1279, 1
        %v1689 = vsel %vm1678, %v1686, %v1688
        %v1690 = vrot.slane %v1280, 1
        %v1691 = vsel %vm1678, %v1688, %v1690
        %v1692 = vrot.slane %v1281, 1
        %v1693 = vsel %vm1678, %v1690, %v1692
        %v1694 = vrot.slane %v1282, 1
        %v1695 = vsel %vm1678, %v1692, %v1694
        %v1696 = vrot.slane %v1283, 1
        %v1697 = vsel %vm1678, %v1694, %v1696
        %v1706 = vunpack.c.l.b16 %v1667
        %v1707 = vunpack.c.l.b16 %v1668
        %v1708 = vunpack.c.l.b16 %v1669
        %v1709 = vunpack.c.l.b16 %v1670
        %v1710 = vunpack.c.l.b16 %v1671
        %v1711 = vunpack.c.l.b16 %v1672
        %v1712 = vunpack.c.l.b16 %v1673
        %v1713 = vunpack.c.l.b16 %v1674
        %v1714 = vpack.c.b16 %v1707, %v1706
        %v1715 = vpack.c.b16 %v1709, %v1708
        %v1716 = vpack.c.b16 %v1711, %v1710
        %v1717 = vpack.c.b16 %v1713, %v1712
        %v1723 = vsel %vm1385, %v1681, 0
        %v1726 = vsel %vm1385, %v1683, 0
        %v1729 = vsel %vm1385, %v1685, 0
        %v1732 = vsel %vm1385, %v1687, 0
        %v1735 = vsel %vm1385, %v1689, 0
        %v1738 = vsel %vm1385, %v1691, 0
        %v1741 = vsel %vm1385, %v1693, 0
        %v1744 = vsel %vm1385, %v1695, 0
        %v1747 = vsel %vm1385, %v1697, 0
        %1749 = vmatprep.subr.bf16.mxu0 0
        %1750 = vmatpush1.bf16.msra.mxu0 %v1714
        %1751 = vmatprep.subr.bf16.mxu0 0
        %1752 = vmatpush1.bf16.msra.mxu0 %v1715
        %1753 = vmatprep.subr.bf16.mxu0 0
        %1754 = vmatpush1.bf16.msra.mxu0 %v1716
        %1755 = vmatprep.subr.bf16.mxu0 0
        %1756 = vmatpush1.bf16.msra.mxu0 %v1717
        %1757 = vmatprep.subr.bf16.mxu0 0
        %1758 = vmatpush1.bf16.msra.mxu0 0
        %1759 = vmatprep.subr.bf16.mxu0 0
        %1760 = vmatpush1.bf16.msra.mxu0 0
        %1761 = vmatprep.subr.bf16.mxu0 0
        %1762 = vmatpush1.bf16.msra.mxu0 0
        %1763 = vmatprep.subr.bf16.mxu0 0
        %1764 = vmatpush1.bf16.msra.mxu0 0
        %1765 = vmatprep.subr.bf16.mxu0 0
        %1766 = vmatpush1.bf16.msra.mxu0 0
        %1767 = vmatprep.subr.bf16.mxu0 0
        %1768 = vmatpush1.bf16.msra.mxu0 0
        %1769 = vmatprep.subr.bf16.mxu0 0
        %1770 = vmatpush1.bf16.msra.mxu0 0
        %1771 = vmatprep.subr.bf16.mxu0 0
        %1772 = vmatpush1.bf16.msra.mxu0 0
        %1773 = vmatprep.subr.bf16.mxu0 0
        %1774 = vmatpush1.bf16.msra.mxu0 0
        %1775 = vmatprep.subr.bf16.mxu0 0
        %1776 = vmatpush1.bf16.msra.mxu0 0
        %1777 = vmatprep.subr.bf16.mxu0 0
        %1778 = vmatpush1.bf16.msra.mxu0 0
        %1779 = vmatprep.subr.bf16.mxu0 0
        %1780 = vmatpush1.bf16.msra.mxu0 0
        %1781 = vmatprep.mubr.bf16.mxu0 0
        %1782 = vmatmul.mubr.bf16.gmra.mrb[0].mxu0 %v1723
        %v1783 = vpop.f32.mrb[0].mxu0
        %v1784 = vadd.f32 0.0, %v1783
        %v1785 = vpop.f32.mrb[0].mxu0
        %v1786 = vpop.f32.mrb[0].mxu0
        %v1787 = vadd.f32 0.0, %v1786
        %v1788 = vpop.f32.mrb[0].mxu0
        %1789 = vmatprep.mubr.bf16.mxu0 0
        %1790 = vmatmul.mubr.bf16.gmra.mrb[0].mxu0 %v1726
        %v1791 = vpop.f32.mrb[0].mxu0
        %v1792 = vadd.f32 0.0, %v1791
        %v1793 = vpop.f32.mrb[0].mxu0
        %v1794 = vpop.f32.mrb[0].mxu0
        %v1795 = vadd.f32 0.0, %v1794
        %v1796 = vpop.f32.mrb[0].mxu0
        %1797 = vmatprep.mubr.bf16.mxu0 0
        %1798 = vmatmul.mubr.bf16.gmra.mrb[0].mxu0 %v1729
        %v1799 = vpop.f32.mrb[0].mxu0
        %v1800 = vadd.f32 0.0, %v1799
        %v1801 = vpop.f32.mrb[0].mxu0
        %v1802 = vpop.f32.mrb[0].mxu0
        %v1803 = vadd.f32 0.0, %v1802
        %v1804 = vpop.f32.mrb[0].mxu0
        %1805 = vmatprep.mubr.bf16.mxu0 0
        %1806 = vmatmul.mubr.bf16.gmra.mrb[0].mxu0 %v1732
        %v1807 = vpop.f32.mrb[0].mxu0
        %v1808 = vadd.f32 0.0, %v1807
        %v1809 = vpop.f32.mrb[0].mxu0
        %v1810 = vpop.f32.mrb[0].mxu0
        %v1811 = vadd.f32 0.0, %v1810
        %v1812 = vpop.f32.mrb[0].mxu0
        %1813 = vmatprep.mubr.bf16.mxu0 0
        %1814 = vmatmul.mubr.bf16.gmra.mrb[0].mxu0 %v1735
        %v1815 = vpop.f32.mrb[0].mxu0
        %v1816 = vadd.f32 0.0, %v1815
        %v1817 = vpop.f32.mrb[0].mxu0
        %v1818 = vpop.f32.mrb[0].mxu0
        %v1819 = vadd.f32 0.0, %v1818
        %v1820 = vpop.f32.mrb[0].mxu0
        %1821 = vmatprep.mubr.bf16.mxu0 0
        %1822 = vmatmul.mubr.bf16.gmra.mrb[0].mxu0 %v1738
        %v1823 = vpop.f32.mrb[0].mxu0
        %v1824 = vadd.f32 0.0, %v1823
        %v1825 = vpop.f32.mrb[0].mxu0
        %v1826 = vpop.f32.mrb[0].mxu0
        %v1827 = vadd.f32 0.0, %v1826
        %v1828 = vpop.f32.mrb[0].mxu0
        %1829 = vmatprep.mubr.bf16.mxu0 0
        %1830 = vmatmul.mubr.bf16.gmra.mrb[0].mxu0 %v1741
        %v1831 = vpop.f32.mrb[0].mxu0
        %v1832 = vadd.f32 0.0, %v1831
        %v1833 = vpop.f32.mrb[0].mxu0
        %v1834 = vpop.f32.mrb[0].mxu0
        %v1835 = vadd.f32 0.0, %v1834
        %v1836 = vpop.f32.mrb[0].mxu0
        %1837 = vmatprep.mubr.bf16.mxu0 0
        %1838 = vmatmul.mubr.bf16.gmra.mrb[0].mxu0 %v1744
        %v1839 = vpop.f32.mrb[0].mxu0
        %v1840 = vadd.f32 0.0, %v1839
        %v1841 = vpop.f32.mrb[0].mxu0
        %v1842 = vpop.f32.mrb[0].mxu0
        %v1843 = vadd.f32 0.0, %v1842
        %v1844 = vpop.f32.mrb[0].mxu0
        %1845 = vmatprep.mubr.bf16.mxu0 0
        %1846 = vmatmul.mubr.bf16.gmra.mrb[0].mxu0 %v1747
        %v1847 = vpop.f32.mrb[0].mxu0
        %v1848 = vadd.f32 0.0, %v1847
        %v1849 = vpop.f32.mrb[0].mxu0
        %v1850 = vpop.f32.mrb[0].mxu0
        %v1851 = vadd.f32 0.0, %v1850
        %v1852 = vpop.f32.mrb[0].mxu0
        %1853 = vdwg.mxu0
        %v1854 = vadd.f32 %v1595, %v1784
        %v1855 = vadd.f32 %v1598, %v1787
        %v1856 = vadd.f32 %v1603, %v1792
        %v1857 = vadd.f32 %v1606, %v1795
        %v1858 = vadd.f32 %v1611, %v1800
        %v1859 = vadd.f32 %v1614, %v1803
        %v1860 = vadd.f32 %v1619, %v1808
        %v1861 = vadd.f32 %v1622, %v1811
        %v1862 = vadd.f32 %v1627, %v1816
        %v1863 = vadd.f32 %v1630, %v1819
        %v1864 = vadd.f32 %v1635, %v1824
        %v1865 = vadd.f32 %v1638, %v1827
        %v1866 = vadd.f32 %v1643, %v1832
        %v1867 = vadd.f32 %v1646, %v1835
        %v1868 = vadd.f32 %v1651, %v1840
        %v1869 = vadd.f32 %v1654, %v1843
        %v1870 = vadd.f32 %v1659, %v1848
        %v1871 = vadd.f32 %v1662, %v1851
        %v1872 = vld [vmem:[#allocation2 + $0x8] sm:$0xe]
        %v1873 = vld [vmem:[#allocation2 + $0xc] sm:$0xf]
        %v1874 = vld [vmem:[#allocation2 + $0x10] sm:$0xf]
        %v1875 = vld [vmem:[#allocation2 + $0x14] sm:$0xf]
        %v1876 = vld [vmem:[#allocation2 + $0x18] sm:$0xf]
        %v1877 = vld [vmem:[#allocation2 + $0x1c] sm:$0xf]
        %v1878 = vld [vmem:[#allocation2 + $0x20] sm:$0xf]
        %v1879 = vld [vmem:[#allocation2 + $0x24] sm:$0xf]
        %v1880 = vld [vmem:[#allocation2 + $0x28] sm:$0xf]
        %v1881 = vld [vmem:[#allocation2 + $0x2c] sm:$0xf]
        %v1882 = vld [vmem:[#allocation2 + $0x30] sm:$0xf]
        %v1883 = vld [vmem:[#allocation2 + $0x34] sm:$0xf]
        %v1884 = vld [vmem:[#allocation2 + $0x38] sm:$0xf]
        %v1885 = vld [vmem:[#allocation2 + $0x3c] sm:$0xf]
        %v1886 = vld [vmem:[#allocation2 + $0x40] sm:$0xf]
        %v1887 = vld [vmem:[#allocation2 + $0x44] sm:$0xf]
        %v1888 = vld [vmem:[#allocation2 + $0x48] sm:$0xf]
        %v1889 = vld [vmem:[#allocation2 + $0x4c] sm:$0xf]
        %v1890 = vld [vmem:[#allocation2 + $0x50] sm:$0x1]
        %s1891 = scalar_lea.vmem [#allocation6], 96
        %v1892 = vld [vmem:[%s1891] sm:$0xf]
        %v1893 = vld [vmem:[%s1891 + $0x4] sm:$0xf]
        %v1894 = vld [vmem:[%s1891 + $0x8] sm:$0xf]
        %v1895 = vld [vmem:[%s1891 + $0xc] sm:$0xf]
        %v1896 = vld [vmem:[%s1891 + $0x10] sm:$0xf]
        %v1897 = vld [vmem:[%s1891 + $0x14] sm:$0xf]
        %v1898 = vld [vmem:[%s1891 + $0x18] sm:$0xf]
        %v1899 = vld [vmem:[%s1891 + $0x1c] sm:$0xf]
        %v1919 = vunpack.c.l.b16 %v1872
        %v1920 = vunpack.c.l.b16 %v1873
        %v1921 = vunpack.c.l.b16 %v1874
        %v1922 = vunpack.c.l.b16 %v1875
        %v1923 = vunpack.c.l.b16 %v1876
        %v1924 = vunpack.c.l.b16 %v1877
        %v1925 = vunpack.c.l.b16 %v1878
        %v1926 = vunpack.c.l.b16 %v1879
        %v1927 = vunpack.c.l.b16 %v1880
        %v1928 = vunpack.c.l.b16 %v1881
        %v1929 = vunpack.c.l.b16 %v1882
        %v1930 = vunpack.c.l.b16 %v1883
        %v1931 = vunpack.c.l.b16 %v1884
        %v1932 = vunpack.c.l.b16 %v1885
        %v1933 = vunpack.c.l.b16 %v1886
        %v1934 = vunpack.c.l.b16 %v1887
        %v1935 = vunpack.c.l.b16 %v1888
        %v1936 = vunpack.c.l.b16 %v1889
        %v1937 = vunpack.c.l.b16 %v1890
        %v1938 = vpack.c.b16 %v1920, %v1919
        %v1939 = vpack.c.b16 %v1922, %v1921
        %v1940 = vpack.c.b16 %v1924, %v1923
        %v1941 = vpack.c.b16 %v1926, %v1925
        %v1942 = vpack.c.b16 %v1928, %v1927
        %v1943 = vpack.c.b16 %v1930, %v1929
        %v1944 = vpack.c.b16 %v1932, %v1931
        %v1945 = vpack.c.b16 %v1934, %v1933
        %v1946 = vpack.c.b16 %v1936, %v1935
        %v1947 = vpack.c.b16 %v1937, %v1937
        %v1948 = vrot.slane %v1938, 1
        %v1949 = vrot.slane %v1939, 1
        %v1950 = vsel %vm1678, %v1948, %v1949
        %v1951 = vrot.slane %v1940, 1
        %v1952 = vsel %vm1678, %v1949, %v1951
        %v1953 = vrot.slane %v1941, 1
        %v1954 = vsel %vm1678, %v1951, %v1953
        %v1955 = vrot.slane %v1942, 1
        %v1956 = vsel %vm1678, %v1953, %v1955
        %v1957 = vrot.slane %v1943, 1
        %v1958 = vsel %vm1678, %v1955, %v1957
        %v1959 = vrot.slane %v1944, 1
        %v1960 = vsel %vm1678, %v1957, %v1959
        %v1961 = vrot.slane %v1945, 1
        %v1962 = vsel %vm1678, %v1959, %v1961
        %v1963 = vrot.slane %v1946, 1
        %v1964 = vsel %vm1678, %v1961, %v1963
        %v1965 = vrot.slane %v1947, 1
        %v1966 = vsel %vm1678, %v1963, %v1965
        %v1975 = vunpack.c.l.b16 %v1892
        %v1976 = vunpack.c.l.b16 %v1893
        %v1977 = vunpack.c.l.b16 %v1894
        %v1978 = vunpack.c.l.b16 %v1895
        %v1979 = vunpack.c.l.b16 %v1896
        %v1980 = vunpack.c.l.b16 %v1897
        %v1981 = vunpack.c.l.b16 %v1898
        %v1982 = vunpack.c.l.b16 %v1899
        %v1983 = vpack.c.b16 %v1976, %v1975
        %v1984 = vpack.c.b16 %v1978, %v1977
        %v1985 = vpack.c.b16 %v1980, %v1979
        %v1986 = vpack.c.b16 %v1982, %v1981
        %v1992 = vsel %vm1385, %v1950, 0
        %v1995 = vsel %vm1385, %v1952, 0
        %v1998 = vsel %vm1385, %v1954, 0
        %v2001 = vsel %vm1385, %v1956, 0
        %v2004 = vsel %vm1385, %v1958, 0
        %v2007 = vsel %vm1385, %v1960, 0
        %v2010 = vsel %vm1385, %v1962, 0
        %v2013 = vsel %vm1385, %v1964, 0
        %v2016 = vsel %vm1385, %v1966, 0
        %2018 = vmatprep.subr.bf16.mxu0 0
        %2019 = vmatpush1.bf16.msra.mxu0 %v1983
        %2020 = vmatprep.subr.bf16.mxu0 0
        %2021 = vmatpush1.bf16.msra.mxu0 %v1984
        %2022 = vmatprep.subr.bf16.mxu0 0
        %2023 = vmatpush1.bf16.msra.mxu0 %v1985
        %2024 = vmatprep.subr.bf16.mxu0 0
        %2025 = vmatpush1.bf16.msra.mxu0 %v1986
        %2026 = vmatprep.subr.bf16.mxu0 0
        %2027 = vmatpush1.bf16.msra.mxu0 0
        %2028 = vmatprep.subr.bf16.mxu0 0
        %2029 = vmatpush1.bf16.msra.mxu0 0
        %2030 = vmatprep.subr.bf16.mxu0 0
        %2031 = vmatpush1.bf16.msra.mxu0 0
        %2032 = vmatprep.subr.bf16.mxu0 0
        %2033 = vmatpush1.bf16.msra.mxu0 0
        %2034 = vmatprep.subr.bf16.mxu0 0
        %2035 = vmatpush1.bf16.msra.mxu0 0
        %2036 = vmatprep.subr.bf16.mxu0 0
        %2037 = vmatpush1.bf16.msra.mxu0 0
        %2038 = vmatprep.subr.bf16.mxu0 0
        %2039 = vmatpush1.bf16.msra.mxu0 0
        %2040 = vmatprep.subr.bf16.mxu0 0
        %2041 = vmatpush1.bf16.msra.mxu0 0
        %2042 = vmatprep.subr.bf16.mxu0 0
        %2043 = vmatpush1.bf16.msra.mxu0 0
        %2044 = vmatprep.subr.bf16.mxu0 0
        %2045 = vmatpush1.bf16.msra.mxu0 0
        %2046 = vmatprep.subr.bf16.mxu0 0
        %2047 = vmatpush1.bf16.msra.mxu0 0
        %2048 = vmatprep.subr.bf16.mxu0 0
        %2049 = vmatpush1.bf16.msra.mxu0 0
        %2050 = vmatprep.mubr.bf16.mxu0 0
        %2051 = vmatmul.mubr.bf16.gmra.mrb[0].mxu0 %v1992
        %v2052 = vpop.f32.mrb[0].mxu0
        %v2053 = vadd.f32 0.0, %v2052
        %v2054 = vpop.f32.mrb[0].mxu0
        %v2055 = vpop.f32.mrb[0].mxu0
        %v2056 = vadd.f32 0.0, %v2055
        %v2057 = vpop.f32.mrb[0].mxu0
        %2058 = vmatprep.mubr.bf16.mxu0 0
        %2059 = vmatmul.mubr.bf16.gmra.mrb[0].mxu0 %v1995
        %v2060 = vpop.f32.mrb[0].mxu0
        %v2061 = vadd.f32 0.0, %v2060
        %v2062 = vpop.f32.mrb[0].mxu0
        %v2063 = vpop.f32.mrb[0].mxu0
        %v2064 = vadd.f32 0.0, %v2063
        %v2065 = vpop.f32.mrb[0].mxu0
        %2066 = vmatprep.mubr.bf16.mxu0 0
        %2067 = vmatmul.mubr.bf16.gmra.mrb[0].mxu0 %v1998
        %v2068 = vpop.f32.mrb[0].mxu0
        %v2069 = vadd.f32 0.0, %v2068
        %v2070 = vpop.f32.mrb[0].mxu0
        %v2071 = vpop.f32.mrb[0].mxu0
        %v2072 = vadd.f32 0.0, %v2071
        %v2073 = vpop.f32.mrb[0].mxu0
        %2074 = vmatprep.mubr.bf16.mxu0 0
        %2075 = vmatmul.mubr.bf16.gmra.mrb[0].mxu0 %v2001
        %v2076 = vpop.f32.mrb[0].mxu0
        %v2077 = vadd.f32 0.0, %v2076
        %v2078 = vpop.f32.mrb[0].mxu0
        %v2079 = vpop.f32.mrb[0].mxu0
        %v2080 = vadd.f32 0.0, %v2079
        %v2081 = vpop.f32.mrb[0].mxu0
        %2082 = vmatprep.mubr.bf16.mxu0 0
        %2083 = vmatmul.mubr.bf16.gmra.mrb[0].mxu0 %v2004
        %v2084 = vpop.f32.mrb[0].mxu0
        %v2085 = vadd.f32 0.0, %v2084
        %v2086 = vpop.f32.mrb[0].mxu0
        %v2087 = vpop.f32.mrb[0].mxu0
        %v2088 = vadd.f32 0.0, %v2087
        %v2089 = vpop.f32.mrb[0].mxu0
        %2090 = vmatprep.mubr.bf16.mxu0 0
        %2091 = vmatmul.mubr.bf16.gmra.mrb[0].mxu0 %v2007
        %v2092 = vpop.f32.mrb[0].mxu0
        %v2093 = vadd.f32 0.0, %v2092
        %v2094 = vpop.f32.mrb[0].mxu0
        %v2095 = vpop.f32.mrb[0].mxu0
        %v2096 = vadd.f32 0.0, %v2095
        %v2097 = vpop.f32.mrb[0].mxu0
        %2098 = vmatprep.mubr.bf16.mxu0 0
        %2099 = vmatmul.mubr.bf16.gmra.mrb[0].mxu0 %v2010
        %v2100 = vpop.f32.mrb[0].mxu0
        %v2101 = vadd.f32 0.0, %v2100
        %v2102 = vpop.f32.mrb[0].mxu0
        %v2103 = vpop.f32.mrb[0].mxu0
        %v2104 = vadd.f32 0.0, %v2103
        %v2105 = vpop.f32.mrb[0].mxu0
        %2106 = vmatprep.mubr.bf16.mxu0 0
        %2107 = vmatmul.mubr.bf16.gmra.mrb[0].mxu0 %v2013
        %v2108 = vpop.f32.mrb[0].mxu0
        %v2109 = vadd.f32 0.0, %v2108
        %v2110 = vpop.f32.mrb[0].mxu0
        %v2111 = vpop.f32.mrb[0].mxu0
        %v2112 = vadd.f32 0.0, %v2111
        %v2113 = vpop.f32.mrb[0].mxu0
        %2114 = vmatprep.mubr.bf16.mxu0 0
        %2115 = vmatmul.mubr.bf16.gmra.mrb[0].mxu0 %v2016
        %v2116 = vpop.f32.mrb[0].mxu0
        %v2117 = vadd.f32 0.0, %v2116
        %v2118 = vpop.f32.mrb[0].mxu0
        %v2119 = vpop.f32.mrb[0].mxu0
        %v2120 = vadd.f32 0.0, %v2119
        %v2121 = vpop.f32.mrb[0].mxu0
        %2122 = vdwg.mxu0
        %v2123 = vadd.f32 %v1854, %v2053
        %v2124 = vadd.f32 %v1855, %v2056
        %v2125 = vadd.f32 %v1856, %v2061
        %v2126 = vadd.f32 %v1857, %v2064
        %v2127 = vadd.f32 %v1858, %v2069
        %v2128 = vadd.f32 %v1859, %v2072
        %v2129 = vadd.f32 %v1860, %v2077
        %v2130 = vadd.f32 %v1861, %v2080
        %v2131 = vadd.f32 %v1862, %v2085
        %v2132 = vadd.f32 %v1863, %v2088
        %v2133 = vadd.f32 %v1864, %v2093
        %v2134 = vadd.f32 %v1865, %v2096
        %v2135 = vadd.f32 %v1866, %v2101
        %v2136 = vadd.f32 %v1867, %v2104
        %v2137 = vadd.f32 %v1868, %v2109
        %v2138 = vadd.f32 %v1869, %v2112
        %v2139 = vadd.f32 %v1870, %v2117
        %v2140 = vadd.f32 %v1871, %v2120
        %v2141 = vld [vmem:[#allocation2 + $0x50] sm:$0x3]
        %s2142 = scalar_lea.vmem [#allocation6], 128
        %v2143 = vld [vmem:[%s2142] sm:$0xf]
        %v2144 = vld [vmem:[%s2142 + $0x4] sm:$0xf]
        %v2145 = vld [vmem:[%s2142 + $0x8] sm:$0xf]
        %v2146 = vld [vmem:[%s2142 + $0xc] sm:$0xf]
        %v2147 = vld [vmem:[%s2142 + $0x10] sm:$0xf]
        %v2148 = vld [vmem:[%s2142 + $0x14] sm:$0xf]
        %v2149 = vld [vmem:[%s2142 + $0x18] sm:$0xf]
        %v2150 = vld [vmem:[%s2142 + $0x1c] sm:$0xf]
        %v2152 = vunpack.c.l.b16 %v2141
        %v2153 = vpack.c.b16 %v2152, %v2152
        %vm2154 = vsmask.f32 6400
        %v2156 = vshrl.u32 %v1938, 16
        %v2158 = vrot.slane %v2156, 1
        %v2159 = vshll.u32 %v1938, 16
        %v2161 = vrot.slane %v2159, 2
        %v2162 = vor.u32 %v2158, %v2161
        %v2164 = vshrl.u32 %v1939, 16
        %v2166 = vrot.slane %v2164, 1
        %v2167 = vshll.u32 %v1939, 16
        %v2169 = vrot.slane %v2167, 2
        %v2170 = vor.u32 %v2166, %v2169
        %v2171 = vsel %vm2154, %v2162, %v2170
        %v2173 = vshrl.u32 %v1940, 16
        %v2175 = vrot.slane %v2173, 1
        %v2176 = vshll.u32 %v1940, 16
        %v2178 = vrot.slane %v2176, 2
        %v2179 = vor.u32 %v2175, %v2178
        %v2180 = vsel %vm2154, %v2170, %v2179
        %v2182 = vshrl.u32 %v1941, 16
        %v2184 = vrot.slane %v2182, 1
        %v2185 = vshll.u32 %v1941, 16
        %v2187 = vrot.slane %v2185, 2
        %v2188 = vor.u32 %v2184, %v2187
        %v2189 = vsel %vm2154, %v2179, %v2188
        %v2191 = vshrl.u32 %v1942, 16
        %v2193 = vrot.slane %v2191, 1
        %v2194 = vshll.u32 %v1942, 16
        %v2196 = vrot.slane %v2194, 2
        %v2197 = vor.u32 %v2193, %v2196
        %v2198 = vsel %vm2154, %v2188, %v2197
        %v2200 = vshrl.u32 %v1943, 16
        %v2202 = vrot.slane %v2200, 1
        %v2203 = vshll.u32 %v1943, 16
        %v2205 = vrot.slane %v2203, 2
        %v2206 = vor.u32 %v2202, %v2205
        %v2207 = vsel %vm2154, %v2197, %v2206
        %v2209 = vshrl.u32 %v1944, 16
        %v2211 = vrot.slane %v2209, 1
        %v2212 = vshll.u32 %v1944, 16
        %v2214 = vrot.slane %v2212, 2
        %v2215 = vor.u32 %v2211, %v2214
        %v2216 = vsel %vm2154, %v2206, %v2215
        %v2218 = vshrl.u32 %v1945, 16
        %v2220 = vrot.slane %v2218, 1
        %v2221 = vshll.u32 %v1945, 16
        %v2223 = vrot.slane %v2221, 2
        %v2224 = vor.u32 %v2220, %v2223
        %v2225 = vsel %vm2154, %v2215, %v2224
        %v2227 = vshrl.u32 %v1946, 16
        %v2229 = vrot.slane %v2227, 1
        %v2230 = vshll.u32 %v1946, 16
        %v2232 = vrot.slane %v2230, 2
        %v2233 = vor.u32 %v2229, %v2232
        %v2234 = vsel %vm2154, %v2224, %v2233
        %v2236 = vshrl.u32 %v2153, 16
        %v2238 = vrot.slane %v2236, 1
        %v2239 = vshll.u32 %v2153, 16
        %v2241 = vrot.slane %v2239, 2
        %v2242 = vor.u32 %v2238, %v2241
        %v2243 = vsel %vm2154, %v2233, %v2242
        %v2252 = vunpack.c.l.b16 %v2143
        %v2253 = vunpack.c.l.b16 %v2144
        %v2254 = vunpack.c.l.b16 %v2145
        %v2255 = vunpack.c.l.b16 %v2146
        %v2256 = vunpack.c.l.b16 %v2147
        %v2257 = vunpack.c.l.b16 %v2148
        %v2258 = vunpack.c.l.b16 %v2149
        %v2259 = vunpack.c.l.b16 %v2150
        %v2260 = vpack.c.b16 %v2253, %v2252
        %v2261 = vpack.c.b16 %v2255, %v2254
        %v2262 = vpack.c.b16 %v2257, %v2256
        %v2263 = vpack.c.b16 %v2259, %v2258
        %v2269 = vsel %vm1385, %v2171, 0
        %v2272 = vsel %vm1385, %v2180, 0
        %v2275 = vsel %vm1385, %v2189, 0
        %v2278 = vsel %vm1385, %v2198, 0
        %v2281 = vsel %vm1385, %v2207, 0
        %v2284 = vsel %vm1385, %v2216, 0
        %v2287 = vsel %vm1385, %v2225, 0
        %v2290 = vsel %vm1385, %v2234, 0
        %v2293 = vsel %vm1385, %v2243, 0
        %2295 = vmatprep.subr.bf16.mxu0 0
        %2296 = vmatpush1.bf16.msra.mxu0 %v2260
        %2297 = vmatprep.subr.bf16.mxu0 0
        %2298 = vmatpush1.bf16.msra.mxu0 %v2261
        %2299 = vmatprep.subr.bf16.mxu0 0
        %2300 = vmatpush1.bf16.msra.mxu0 %v2262
        %2301 = vmatprep.subr.bf16.mxu0 0
        %2302 = vmatpush1.bf16.msra.mxu0 %v2263
        %2303 = vmatprep.subr.bf16.mxu0 0
        %2304 = vmatpush1.bf16.msra.mxu0 0
        %2305 = vmatprep.subr.bf16.mxu0 0
        %2306 = vmatpush1.bf16.msra.mxu0 0
        %2307 = vmatprep.subr.bf16.mxu0 0
        %2308 = vmatpush1.bf16.msra.mxu0 0
        %2309 = vmatprep.subr.bf16.mxu0 0
        %2310 = vmatpush1.bf16.msra.mxu0 0
        %2311 = vmatprep.subr.bf16.mxu0 0
        %2312 = vmatpush1.bf16.msra.mxu0 0
        %2313 = vmatprep.subr.bf16.mxu0 0
        %2314 = vmatpush1.bf16.msra.mxu0 0
        %2315 = vmatprep.subr.bf16.mxu0 0
        %2316 = vmatpush1.bf16.msra.mxu0 0
        %2317 = vmatprep.subr.bf16.mxu0 0
        %2318 = vmatpush1.bf16.msra.mxu0 0
        %2319 = vmatprep.subr.bf16.mxu0 0
        %2320 = vmatpush1.bf16.msra.mxu0 0
        %2321 = vmatprep.subr.bf16.mxu0 0
        %2322 = vmatpush1.bf16.msra.mxu0 0
        %2323 = vmatprep.subr.bf16.mxu0 0
        %2324 = vmatpush1.bf16.msra.mxu0 0
        %2325 = vmatprep.subr.bf16.mxu0 0
        %2326 = vmatpush1.bf16.msra.mxu0 0
        %2327 = vmatprep.mubr.bf16.mxu0 0
        %2328 = vmatmul.mubr.bf16.gmra.mrb[0].mxu0 %v2269
        %v2329 = vpop.f32.mrb[0].mxu0
        %v2330 = vadd.f32 0.0, %v2329
        %v2331 = vpop.f32.mrb[0].mxu0
        %v2332 = vpop.f32.mrb[0].mxu0
        %v2333 = vadd.f32 0.0, %v2332
        %v2334 = vpop.f32.mrb[0].mxu0
        %2335 = vmatprep.mubr.bf16.mxu0 0
        %2336 = vmatmul.mubr.bf16.gmra.mrb[0].mxu0 %v2272
        %v2337 = vpop.f32.mrb[0].mxu0
        %v2338 = vadd.f32 0.0, %v2337
        %v2339 = vpop.f32.mrb[0].mxu0
        %v2340 = vpop.f32.mrb[0].mxu0
        %v2341 = vadd.f32 0.0, %v2340
        %v2342 = vpop.f32.mrb[0].mxu0
        %2343 = vmatprep.mubr.bf16.mxu0 0
        %2344 = vmatmul.mubr.bf16.gmra.mrb[0].mxu0 %v2275
        %v2345 = vpop.f32.mrb[0].mxu0
        %v2346 = vadd.f32 0.0, %v2345
        %v2347 = vpop.f32.mrb[0].mxu0
        %v2348 = vpop.f32.mrb[0].mxu0
        %v2349 = vadd.f32 0.0, %v2348
        %v2350 = vpop.f32.mrb[0].mxu0
        %2351 = vmatprep.mubr.bf16.mxu0 0
        %2352 = vmatmul.mubr.bf16.gmra.mrb[0].mxu0 %v2278
        %v2353 = vpop.f32.mrb[0].mxu0
        %v2354 = vadd.f32 0.0, %v2353
        %v2355 = vpop.f32.mrb[0].mxu0
        %v2356 = vpop.f32.mrb[0].mxu0
        %v2357 = vadd.f32 0.0, %v2356
        %v2358 = vpop.f32.mrb[0].mxu0
        %2359 = vmatprep.mubr.bf16.mxu0 0
        %2360 = vmatmul.mubr.bf16.gmra.mrb[0].mxu0 %v2281
        %v2361 = vpop.f32.mrb[0].mxu0
        %v2362 = vadd.f32 0.0, %v2361
        %v2363 = vpop.f32.mrb[0].mxu0
        %v2364 = vpop.f32.mrb[0].mxu0
        %v2365 = vadd.f32 0.0, %v2364
        %v2366 = vpop.f32.mrb[0].mxu0
        %2367 = vmatprep.mubr.bf16.mxu0 0
        %2368 = vmatmul.mubr.bf16.gmra.mrb[0].mxu0 %v2284
        %v2369 = vpop.f32.mrb[0].mxu0
        %v2370 = vadd.f32 0.0, %v2369
        %v2371 = vpop.f32.mrb[0].mxu0
        %v2372 = vpop.f32.mrb[0].mxu0
        %v2373 = vadd.f32 0.0, %v2372
        %v2374 = vpop.f32.mrb[0].mxu0
        %2375 = vmatprep.mubr.bf16.mxu0 0
        %2376 = vmatmul.mubr.bf16.gmra.mrb[0].mxu0 %v2287
        %v2377 = vpop.f32.mrb[0].mxu0
        %v2378 = vadd.f32 0.0, %v2377
        %v2379 = vpop.f32.mrb[0].mxu0
        %v2380 = vpop.f32.mrb[0].mxu0
        %v2381 = vadd.f32 0.0, %v2380
        %v2382 = vpop.f32.mrb[0].mxu0
        %2383 = vmatprep.mubr.bf16.mxu0 0
        %2384 = vmatmul.mubr.bf16.gmra.mrb[0].mxu0 %v2290
        %v2385 = vpop.f32.mrb[0].mxu0
        %v2386 = vadd.f32 0.0, %v2385
        %v2387 = vpop.f32.mrb[0].mxu0
        %v2388 = vpop.f32.mrb[0].mxu0
        %v2389 = vadd.f32 0.0, %v2388
        %v2390 = vpop.f32.mrb[0].mxu0
        %2391 = vmatprep.mubr.bf16.mxu0 0
        %2392 = vmatmul.mubr.bf16.gmra.mrb[0].mxu0 %v2293
        %v2393 = vpop.f32.mrb[0].mxu0
        %v2394 = vadd.f32 0.0, %v2393
        %v2395 = vpop.f32.mrb[0].mxu0
        %v2396 = vpop.f32.mrb[0].mxu0
        %v2397 = vadd.f32 0.0, %v2396
        %v2398 = vpop.f32.mrb[0].mxu0
        %2399 = vdwg.mxu0
        %v2400 = vadd.f32 %v2123, %v2330
        %v2401 = vadd.f32 %v2124, %v2333
        %v2402 = vadd.f32 %v2125, %v2338
        %v2403 = vadd.f32 %v2126, %v2341
        %v2404 = vadd.f32 %v2127, %v2346
        %v2405 = vadd.f32 %v2128, %v2349
        %v2406 = vadd.f32 %v2129, %v2354
        %v2407 = vadd.f32 %v2130, %v2357
        %v2408 = vadd.f32 %v2131, %v2362
        %v2409 = vadd.f32 %v2132, %v2365
        %v2410 = vadd.f32 %v2133, %v2370
        %v2411 = vadd.f32 %v2134, %v2373
        %v2412 = vadd.f32 %v2135, %v2378
        %v2413 = vadd.f32 %v2136, %v2381
        %v2414 = vadd.f32 %v2137, %v2386
        %v2415 = vadd.f32 %v2138, %v2389
        %v2416 = vadd.f32 %v2139, %v2394
        %v2417 = vadd.f32 %v2140, %v2397
        %v2418 = vld [vmem:[#allocation2 + $0x8] sm:$0xc]
        %s2419 = scalar_lea.vmem [#allocation6], 160
        %v2420 = vld [vmem:[%s2419] sm:$0xf]
        %v2421 = vld [vmem:[%s2419 + $0x4] sm:$0xf]
        %v2422 = vld [vmem:[%s2419 + $0x8] sm:$0xf]
        %v2423 = vld [vmem:[%s2419 + $0xc] sm:$0xf]
        %v2424 = vld [vmem:[%s2419 + $0x10] sm:$0xf]
        %v2425 = vld [vmem:[%s2419 + $0x14] sm:$0xf]
        %v2426 = vld [vmem:[%s2419 + $0x18] sm:$0xf]
        %v2427 = vld [vmem:[%s2419 + $0x1c] sm:$0xf]
        %v2429 = vunpack.c.l.b16 %v2418
        %v2430 = vpack.c.b16 %v1920, %v2429
        %vm2431 = vcmask 1045504
        %v2432 = vrot.slane %v2430, 2
        %v2433 = vrot.slane %v1939, 2
        %v2434 = vsel %vm2431, %v2432, %v2433
        %v2435 = vrot.slane %v1940, 2
        %v2436 = vsel %vm2431, %v2433, %v2435
        %v2437 = vrot.slane %v1941, 2
        %v2438 = vsel %vm2431, %v2435, %v2437
        %v2439 = vrot.slane %v1942, 2
        %v2440 = vsel %vm2431, %v2437, %v2439
        %v2441 = vrot.slane %v1943, 2
        %v2442 = vsel %vm2431, %v2439, %v2441
        %v2443 = vrot.slane %v1944, 2
        %v2444 = vsel %vm2431, %v2441, %v2443
        %v2445 = vrot.slane %v1945, 2
        %v2446 = vsel %vm2431, %v2443, %v2445
        %v2447 = vrot.slane %v1946, 2
        %v2448 = vsel %vm2431, %v2445, %v2447
        %v2449 = vrot.slane %v2153, 2
        %v2450 = vsel %vm2431, %v2447, %v2449
        %v2459 = vunpack.c.l.b16 %v2420
        %v2460 = vunpack.c.l.b16 %v2421
        %v2461 = vunpack.c.l.b16 %v2422
        %v2462 = vunpack.c.l.b16 %v2423
        %v2463 = vunpack.c.l.b16 %v2424
        %v2464 = vunpack.c.l.b16 %v2425
        %v2465 = vunpack.c.l.b16 %v2426
        %v2466 = vunpack.c.l.b16 %v2427
        %v2467 = vpack.c.b16 %v2460, %v2459
        %v2468 = vpack.c.b16 %v2462, %v2461
        %v2469 = vpack.c.b16 %v2464, %v2463
        %v2470 = vpack.c.b16 %v2466, %v2465
        %v2476 = vsel %vm1385, %v2434, 0
        %v2479 = vsel %vm1385, %v2436, 0
        %v2482 = vsel %vm1385, %v2438, 0
        %v2485 = vsel %vm1385, %v2440, 0
        %v2488 = vsel %vm1385, %v2442, 0
        %v2491 = vsel %vm1385, %v2444, 0
        %v2494 = vsel %vm1385, %v2446, 0
        %v2497 = vsel %vm1385, %v2448, 0
        %v2500 = vsel %vm1385, %v2450, 0
        %2502 = vmatprep.subr.bf16.mxu0 0
        %2503 = vmatpush1.bf16.msra.mxu0 %v2467
        %2504 = vmatprep.subr.bf16.mxu0 0
        %2505 = vmatpush1.bf16.msra.mxu0 %v2468
        %2506 = vmatprep.subr.bf16.mxu0 0
        %2507 = vmatpush1.bf16.msra.mxu0 %v2469
        %2508 = vmatprep.subr.bf16.mxu0 0
        %2509 = vmatpush1.bf16.msra.mxu0 %v2470
        %2510 = vmatprep.subr.bf16.mxu0 0
        %2511 = vmatpush1.bf16.msra.mxu0 0
        %2512 = vmatprep.subr.bf16.mxu0 0
        %2513 = vmatpush1.bf16.msra.mxu0 0
        %2514 = vmatprep.subr.bf16.mxu0 0
        %2515 = vmatpush1.bf16.msra.mxu0 0
        %2516 = vmatprep.subr.bf16.mxu0 0
        %2517 = vmatpush1.bf16.msra.mxu0 0
        %2518 = vmatprep.subr.bf16.mxu0 0
        %2519 = vmatpush1.bf16.msra.mxu0 0
        %2520 = vmatprep.subr.bf16.mxu0 0
        %2521 = vmatpush1.bf16.msra.mxu0 0
        %2522 = vmatprep.subr.bf16.mxu0 0
        %2523 = vmatpush1.bf16.msra.mxu0 0
        %2524 = vmatprep.subr.bf16.mxu0 0
        %2525 = vmatpush1.bf16.msra.mxu0 0
        %2526 = vmatprep.subr.bf16.mxu0 0
        %2527 = vmatpush1.bf16.msra.mxu0 0
        %2528 = vmatprep.subr.bf16.mxu0 0
        %2529 = vmatpush1.bf16.msra.mxu0 0
        %2530 = vmatprep.subr.bf16.mxu0 0
        %2531 = vmatpush1.bf16.msra.mxu0 0
        %2532 = vmatprep.subr.bf16.mxu0 0
        %2533 = vmatpush1.bf16.msra.mxu0 0
        %2534 = vmatprep.mubr.bf16.mxu0 0
        %2535 = vmatmul.mubr.bf16.gmra.mrb[0].mxu0 %v2476
        %v2536 = vpop.f32.mrb[0].mxu0
        %v2537 = vadd.f32 0.0, %v2536
        %v2538 = vpop.f32.mrb[0].mxu0
        %v2539 = vpop.f32.mrb[0].mxu0
        %v2540 = vadd.f32 0.0, %v2539
        %v2541 = vpop.f32.mrb[0].mxu0
        %2542 = vmatprep.mubr.bf16.mxu0 0
        %2543 = vmatmul.mubr.bf16.gmra.mrb[0].mxu0 %v2479
        %v2544 = vpop.f32.mrb[0].mxu0
        %v2545 = vadd.f32 0.0, %v2544
        %v2546 = vpop.f32.mrb[0].mxu0
        %v2547 = vpop.f32.mrb[0].mxu0
        %v2548 = vadd.f32 0.0, %v2547
        %v2549 = vpop.f32.mrb[0].mxu0
        %2550 = vmatprep.mubr.bf16.mxu0 0
        %2551 = vmatmul.mubr.bf16.gmra.mrb[0].mxu0 %v2482
        %v2552 = vpop.f32.mrb[0].mxu0
        %v2553 = vadd.f32 0.0, %v2552
        %v2554 = vpop.f32.mrb[0].mxu0
        %v2555 = vpop.f32.mrb[0].mxu0
        %v2556 = vadd.f32 0.0, %v2555
        %v2557 = vpop.f32.mrb[0].mxu0
        %2558 = vmatprep.mubr.bf16.mxu0 0
        %2559 = vmatmul.mubr.bf16.gmra.mrb[0].mxu0 %v2485
        %v2560 = vpop.f32.mrb[0].mxu0
        %v2561 = vadd.f32 0.0, %v2560
        %v2562 = vpop.f32.mrb[0].mxu0
        %v2563 = vpop.f32.mrb[0].mxu0
        %v2564 = vadd.f32 0.0, %v2563
        %v2565 = vpop.f32.mrb[0].mxu0
        %2566 = vmatprep.mubr.bf16.mxu0 0
        %2567 = vmatmul.mubr.bf16.gmra.mrb[0].mxu0 %v2488
        %v2568 = vpop.f32.mrb[0].mxu0
        %v2569 = vadd.f32 0.0, %v2568
        %v2570 = vpop.f32.mrb[0].mxu0
        %v2571 = vpop.f32.mrb[0].mxu0
        %v2572 = vadd.f32 0.0, %v2571
        %v2573 = vpop.f32.mrb[0].mxu0
        %2574 = vmatprep.mubr.bf16.mxu0 0
        %2575 = vmatmul.mubr.bf16.gmra.mrb[0].mxu0 %v2491
        %v2576 = vpop.f32.mrb[0].mxu0
        %v2577 = vadd.f32 0.0, %v2576
        %v2578 = vpop.f32.mrb[0].mxu0
        %v2579 = vpop.f32.mrb[0].mxu0
        %v2580 = vadd.f32 0.0, %v2579
        %v2581 = vpop.f32.mrb[0].mxu0
        %2582 = vmatprep.mubr.bf16.mxu0 0
        %2583 = vmatmul.mubr.bf16.gmra.mrb[0].mxu0 %v2494
        %v2584 = vpop.f32.mrb[0].mxu0
        %v2585 = vadd.f32 0.0, %v2584
        %v2586 = vpop.f32.mrb[0].mxu0
        %v2587 = vpop.f32.mrb[0].mxu0
        %v2588 = vadd.f32 0.0, %v2587
        %v2589 = vpop.f32.mrb[0].mxu0
        %2590 = vmatprep.mubr.bf16.mxu0 0
        %2591 = vmatmul.mubr.bf16.gmra.mrb[0].mxu0 %v2497
        %v2592 = vpop.f32.mrb[0].mxu0
        %v2593 = vadd.f32 0.0, %v2592
        %v2594 = vpop.f32.mrb[0].mxu0
        %v2595 = vpop.f32.mrb[0].mxu0
        %v2596 = vadd.f32 0.0, %v2595
        %v2597 = vpop.f32.mrb[0].mxu0
        %2598 = vmatprep.mubr.bf16.mxu0 0
        %2599 = vmatmul.mubr.bf16.gmra.mrb[0].mxu0 %v2500
        %v2600 = vpop.f32.mrb[0].mxu0
        %v2601 = vadd.f32 0.0, %v2600
        %v2602 = vpop.f32.mrb[0].mxu0
        %v2603 = vpop.f32.mrb[0].mxu0
        %v2604 = vadd.f32 0.0, %v2603
        %v2605 = vpop.f32.mrb[0].mxu0
        %2606 = vdwg.mxu0
        %v2607 = vadd.f32 %v2400, %v2537
        %v2608 = vadd.f32 %v2401, %v2540
        %v2609 = vadd.f32 %v2402, %v2545
        %v2610 = vadd.f32 %v2403, %v2548
        %v2611 = vadd.f32 %v2404, %v2553
        %v2612 = vadd.f32 %v2405, %v2556
        %v2613 = vadd.f32 %v2406, %v2561
        %v2614 = vadd.f32 %v2407, %v2564
        %v2615 = vadd.f32 %v2408, %v2569
        %v2616 = vadd.f32 %v2409, %v2572
        %v2617 = vadd.f32 %v2410, %v2577
        %v2618 = vadd.f32 %v2411, %v2580
        %v2619 = vadd.f32 %v2412, %v2585
        %v2620 = vadd.f32 %v2413, %v2588
        %v2621 = vadd.f32 %v2414, %v2593
        %v2622 = vadd.f32 %v2415, %v2596
        %v2623 = vadd.f32 %v2416, %v2601
        %v2624 = vadd.f32 %v2417, %v2604
        %v2625 = vld [vmem:[#allocation2 + $0x10] sm:$0xc]
        %v2626 = vld [vmem:[#allocation2 + $0x14] sm:$0xf]
        %v2627 = vld [vmem:[#allocation2 + $0x18] sm:$0xf]
        %v2628 = vld [vmem:[#allocation2 + $0x1c] sm:$0xf]
        %v2629 = vld [vmem:[#allocation2 + $0x20] sm:$0xf]
        %v2630 = vld [vmem:[#allocation2 + $0x24] sm:$0xf]
        %v2631 = vld [vmem:[#allocation2 + $0x28] sm:$0xf]
        %v2632 = vld [vmem:[#allocation2 + $0x2c] sm:$0xf]
        %v2633 = vld [vmem:[#allocation2 + $0x30] sm:$0xf]
        %v2634 = vld [vmem:[#allocation2 + $0x34] sm:$0xf]
        %v2635 = vld [vmem:[#allocation2 + $0x38] sm:$0xf]
        %v2636 = vld [vmem:[#allocation2 + $0x3c] sm:$0xf]
        %v2637 = vld [vmem:[#allocation2 + $0x40] sm:$0xf]
        %v2638 = vld [vmem:[#allocation2 + $0x44] sm:$0xf]
        %v2639 = vld [vmem:[#allocation2 + $0x48] sm:$0xf]
        %v2640 = vld [vmem:[#allocation2 + $0x4c] sm:$0xf]
        %v2641 = vld [vmem:[#allocation2 + $0x50] sm:$0xf]
        %v2642 = vld [vmem:[#allocation2 + $0x54] sm:$0xf]
        %v2643 = vld [vmem:[#allocation2 + $0x58] sm:$0x3]
        %s2644 = scalar_lea.vmem [#allocation6], 192
        %v2645 = vld [vmem:[%s2644] sm:$0xf]
        %v2646 = vld [vmem:[%s2644 + $0x4] sm:$0xf]
        %v2647 = vld [vmem:[%s2644 + $0x8] sm:$0xf]
        %v2648 = vld [vmem:[%s2644 + $0xc] sm:$0xf]
        %v2649 = vld [vmem:[%s2644 + $0x10] sm:$0xf]
        %v2650 = vld [vmem:[%s2644 + $0x14] sm:$0xf]
        %v2651 = vld [vmem:[%s2644 + $0x18] sm:$0xf]
        %v2652 = vld [vmem:[%s2644 + $0x1c] sm:$0xf]
        %v2672 = vunpack.c.l.b16 %v2625
        %v2673 = vunpack.c.l.b16 %v2626
        %v2674 = vunpack.c.l.b16 %v2627
        %v2675 = vunpack.c.l.b16 %v2628
        %v2676 = vunpack.c.l.b16 %v2629
        %v2677 = vunpack.c.l.b16 %v2630
        %v2678 = vunpack.c.l.b16 %v2631
        %v2679 = vunpack.c.l.b16 %v2632
        %v2680 = vunpack.c.l.b16 %v2633
        %v2681 = vunpack.c.l.b16 %v2634
        %v2682 = vunpack.c.l.b16 %v2635
        %v2683 = vunpack.c.l.b16 %v2636
        %v2684 = vunpack.c.l.b16 %v2637
        %v2685 = vunpack.c.l.b16 %v2638
        %v2686 = vunpack.c.l.b16 %v2639
        %v2687 = vunpack.c.l.b16 %v2640
        %v2688 = vunpack.c.l.b16 %v2641
        %v2689 = vunpack.c.l.b16 %v2642
        %v2690 = vunpack.c.l.b16 %v2643
        %v2691 = vpack.c.b16 %v2673, %v2672
        %v2692 = vpack.c.b16 %v2675, %v2674
        %v2693 = vpack.c.b16 %v2677, %v2676
        %v2694 = vpack.c.b16 %v2679, %v2678
        %v2695 = vpack.c.b16 %v2681, %v2680
        %v2696 = vpack.c.b16 %v2683, %v2682
        %v2697 = vpack.c.b16 %v2685, %v2684
        %v2698 = vpack.c.b16 %v2687, %v2686
        %v2699 = vpack.c.b16 %v2689, %v2688
        %v2700 = vpack.c.b16 %v2690, %v2690
        %v2701 = vrot.slane %v2691, 2
        %v2702 = vrot.slane %v2692, 2
        %v2703 = vsel %vm2431, %v2701, %v2702
        %v2704 = vrot.slane %v2693, 2
        %v2705 = vsel %vm2431, %v2702, %v2704
        %v2706 = vrot.slane %v2694, 2
        %v2707 = vsel %vm2431, %v2704, %v2706
        %v2708 = vrot.slane %v2695, 2
        %v2709 = vsel %vm2431, %v2706, %v2708
        %v2710 = vrot.slane %v2696, 2
        %v2711 = vsel %vm2431, %v2708, %v2710
        %v2712 = vrot.slane %v2697, 2
        %v2713 = vsel %vm2431, %v2710, %v2712
        %v2714 = vrot.slane %v2698, 2
        %v2715 = vsel %vm2431, %v2712, %v2714
        %v2716 = vrot.slane %v2699, 2
        %v2717 = vsel %vm2431, %v2714, %v2716
        %v2718 = vrot.slane %v2700, 2
        %v2719 = vsel %vm2431, %v2716, %v2718
        %v2728 = vunpack.c.l.b16 %v2645
        %v2729 = vunpack.c.l.b16 %v2646
        %v2730 = vunpack.c.l.b16 %v2647
        %v2731 = vunpack.c.l.b16 %v2648
        %v2732 = vunpack.c.l.b16 %v2649
        %v2733 = vunpack.c.l.b16 %v2650
        %v2734 = vunpack.c.l.b16 %v2651
        %v2735 = vunpack.c.l.b16 %v2652
        %v2736 = vpack.c.b16 %v2729, %v2728
        %v2737 = vpack.c.b16 %v2731, %v2730
        %v2738 = vpack.c.b16 %v2733, %v2732
        %v2739 = vpack.c.b16 %v2735, %v2734
        %v2745 = vsel %vm1385, %v2703, 0
        %v2748 = vsel %vm1385, %v2705, 0
        %v2751 = vsel %vm1385, %v2707, 0
        %v2754 = vsel %vm1385, %v2709, 0
        %v2757 = vsel %vm1385, %v2711, 0
        %v2760 = vsel %vm1385, %v2713, 0
        %v2763 = vsel %vm1385, %v2715, 0
        %v2766 = vsel %vm1385, %v2717, 0
        %v2769 = vsel %vm1385, %v2719, 0
        %2771 = vmatprep.subr.bf16.mxu0 0
        %2772 = vmatpush1.bf16.msra.mxu0 %v2736
        %2773 = vmatprep.subr.bf16.mxu0 0
        %2774 = vmatpush1.bf16.msra.mxu0 %v2737
        %2775 = vmatprep.subr.bf16.mxu0 0
        %2776 = vmatpush1.bf16.msra.mxu0 %v2738
        %2777 = vmatprep.subr.bf16.mxu0 0
        %2778 = vmatpush1.bf16.msra.mxu0 %v2739
        %2779 = vmatprep.subr.bf16.mxu0 0
        %2780 = vmatpush1.bf16.msra.mxu0 0
        %2781 = vmatprep.subr.bf16.mxu0 0
        %2782 = vmatpush1.bf16.msra.mxu0 0
        %2783 = vmatprep.subr.bf16.mxu0 0
        %2784 = vmatpush1.bf16.msra.mxu0 0
        %2785 = vmatprep.subr.bf16.mxu0 0
        %2786 = vmatpush1.bf16.msra.mxu0 0
        %2787 = vmatprep.subr.bf16.mxu0 0
        %2788 = vmatpush1.bf16.msra.mxu0 0
        %2789 = vmatprep.subr.bf16.mxu0 0
        %2790 = vmatpush1.bf16.msra.mxu0 0
        %2791 = vmatprep.subr.bf16.mxu0 0
        %2792 = vmatpush1.bf16.msra.mxu0 0
        %2793 = vmatprep.subr.bf16.mxu0 0
        %2794 = vmatpush1.bf16.msra.mxu0 0
        %2795 = vmatprep.subr.bf16.mxu0 0
        %2796 = vmatpush1.bf16.msra.mxu0 0
        %2797 = vmatprep.subr.bf16.mxu0 0
        %2798 = vmatpush1.bf16.msra.mxu0 0
        %2799 = vmatprep.subr.bf16.mxu0 0
        %2800 = vmatpush1.bf16.msra.mxu0 0
        %2801 = vmatprep.subr.bf16.mxu0 0
        %2802 = vmatpush1.bf16.msra.mxu0 0
        %2803 = vmatprep.mubr.bf16.mxu0 0
        %2804 = vmatmul.mubr.bf16.gmra.mrb[0].mxu0 %v2745
        %v2805 = vpop.f32.mrb[0].mxu0
        %v2806 = vadd.f32 0.0, %v2805
        %v2807 = vpop.f32.mrb[0].mxu0
        %v2808 = vpop.f32.mrb[0].mxu0
        %v2809 = vadd.f32 0.0, %v2808
        %v2810 = vpop.f32.mrb[0].mxu0
        %2811 = vmatprep.mubr.bf16.mxu0 0
        %2812 = vmatmul.mubr.bf16.gmra.mrb[0].mxu0 %v2748
        %v2813 = vpop.f32.mrb[0].mxu0
        %v2814 = vadd.f32 0.0, %v2813
        %v2815 = vpop.f32.mrb[0].mxu0
        %v2816 = vpop.f32.mrb[0].mxu0
        %v2817 = vadd.f32 0.0, %v2816
        %v2818 = vpop.f32.mrb[0].mxu0
        %2819 = vmatprep.mubr.bf16.mxu0 0
        %2820 = vmatmul.mubr.bf16.gmra.mrb[0].mxu0 %v2751
        %v2821 = vpop.f32.mrb[0].mxu0
        %v2822 = vadd.f32 0.0, %v2821
        %v2823 = vpop.f32.mrb[0].mxu0
        %v2824 = vpop.f32.mrb[0].mxu0
        %v2825 = vadd.f32 0.0, %v2824
        %v2826 = vpop.f32.mrb[0].mxu0
        %2827 = vmatprep.mubr.bf16.mxu0 0
        %2828 = vmatmul.mubr.bf16.gmra.mrb[0].mxu0 %v2754
        %v2829 = vpop.f32.mrb[0].mxu0
        %v2830 = vadd.f32 0.0, %v2829
        %v2831 = vpop.f32.mrb[0].mxu0
        %v2832 = vpop.f32.mrb[0].mxu0
        %v2833 = vadd.f32 0.0, %v2832
        %v2834 = vpop.f32.mrb[0].mxu0
        %2835 = vmatprep.mubr.bf16.mxu0 0
        %2836 = vmatmul.mubr.bf16.gmra.mrb[0].mxu0 %v2757
        %v2837 = vpop.f32.mrb[0].mxu0
        %v2838 = vadd.f32 0.0, %v2837
        %v2839 = vpop.f32.mrb[0].mxu0
        %v2840 = vpop.f32.mrb[0].mxu0
        %v2841 = vadd.f32 0.0, %v2840
        %v2842 = vpop.f32.mrb[0].mxu0
        %2843 = vmatprep.mubr.bf16.mxu0 0
        %2844 = vmatmul.mubr.bf16.gmra.mrb[0].mxu0 %v2760
        %v2845 = vpop.f32.mrb[0].mxu0
        %v2846 = vadd.f32 0.0, %v2845
        %v2847 = vpop.f32.mrb[0].mxu0
        %v2848 = vpop.f32.mrb[0].mxu0
        %v2849 = vadd.f32 0.0, %v2848
        %v2850 = vpop.f32.mrb[0].mxu0
        %2851 = vmatprep.mubr.bf16.mxu0 0
        %2852 = vmatmul.mubr.bf16.gmra.mrb[0].mxu0 %v2763
        %v2853 = vpop.f32.mrb[0].mxu0
        %v2854 = vadd.f32 0.0, %v2853
        %v2855 = vpop.f32.mrb[0].mxu0
        %v2856 = vpop.f32.mrb[0].mxu0
        %v2857 = vadd.f32 0.0, %v2856
        %v2858 = vpop.f32.mrb[0].mxu0
        %2859 = vmatprep.mubr.bf16.mxu0 0
        %2860 = vmatmul.mubr.bf16.gmra.mrb[0].mxu0 %v2766
        %v2861 = vpop.f32.mrb[0].mxu0
        %v2862 = vadd.f32 0.0, %v2861
        %v2863 = vpop.f32.mrb[0].mxu0
        %v2864 = vpop.f32.mrb[0].mxu0
        %v2865 = vadd.f32 0.0, %v2864
        %v2866 = vpop.f32.mrb[0].mxu0
        %2867 = vmatprep.mubr.bf16.mxu0 0
        %2868 = vmatmul.mubr.bf16.gmra.mrb[0].mxu0 %v2769
        %v2869 = vpop.f32.mrb[0].mxu0
        %v2870 = vadd.f32 0.0, %v2869
        %v2871 = vpop.f32.mrb[0].mxu0
        %v2872 = vpop.f32.mrb[0].mxu0
        %v2873 = vadd.f32 0.0, %v2872
        %v2874 = vpop.f32.mrb[0].mxu0
        %2875 = vdwg.mxu0
        %v2876 = vadd.f32 %v2607, %v2806
        %v2877 = vadd.f32 %v2608, %v2809
        %v2878 = vadd.f32 %v2609, %v2814
        %v2879 = vadd.f32 %v2610, %v2817
        %v2880 = vadd.f32 %v2611, %v2822
        %v2881 = vadd.f32 %v2612, %v2825
        %v2882 = vadd.f32 %v2613, %v2830
        %v2883 = vadd.f32 %v2614, %v2833
        %v2884 = vadd.f32 %v2615, %v2838
        %v2885 = vadd.f32 %v2616, %v2841
        %v2886 = vadd.f32 %v2617, %v2846
        %v2887 = vadd.f32 %v2618, %v2849
        %v2888 = vadd.f32 %v2619, %v2854
        %v2889 = vadd.f32 %v2620, %v2857
        %v2890 = vadd.f32 %v2621, %v2862
        %v2891 = vadd.f32 %v2622, %v2865
        %v2892 = vadd.f32 %v2623, %v2870
        %v2893 = vadd.f32 %v2624, %v2873
        %v2894 = vld [vmem:[#allocation2 + $0x58] sm:$0x7]
        %s2895 = scalar_lea.vmem [#allocation6], 224
        %v2896 = vld [vmem:[%s2895] sm:$0xf]
        %v2897 = vld [vmem:[%s2895 + $0x4] sm:$0xf]
        %v2898 = vld [vmem:[%s2895 + $0x8] sm:$0xf]
        %v2899 = vld [vmem:[%s2895 + $0xc] sm:$0xf]
        %v2900 = vld [vmem:[%s2895 + $0x10] sm:$0xf]
        %v2901 = vld [vmem:[%s2895 + $0x14] sm:$0xf]
        %v2902 = vld [vmem:[%s2895 + $0x18] sm:$0xf]
        %v2903 = vld [vmem:[%s2895 + $0x1c] sm:$0xf]
        %v2905 = vunpack.c.l.b16 %v2894
        %v2906 = vpack.c.b16 %v2905, %v2905
        %vm2907 = vsmask.f32 5376
        %v2909 = vshrl.u32 %v2691, 16
        %v2911 = vrot.slane %v2909, 2
        %v2912 = vshll.u32 %v2691, 16
        %v2914 = vrot.slane %v2912, 3
        %v2915 = vor.u32 %v2911, %v2914
        %v2917 = vshrl.u32 %v2692, 16
        %v2919 = vrot.slane %v2917, 2
        %v2920 = vshll.u32 %v2692, 16
        %v2922 = vrot.slane %v2920, 3
        %v2923 = vor.u32 %v2919, %v2922
        %v2924 = vsel %vm2907, %v2915, %v2923
        %v2926 = vshrl.u32 %v2693, 16
        %v2928 = vrot.slane %v2926, 2
        %v2929 = vshll.u32 %v2693, 16
        %v2931 = vrot.slane %v2929, 3
        %v2932 = vor.u32 %v2928, %v2931
        %v2933 = vsel %vm2907, %v2923, %v2932
        %v2935 = vshrl.u32 %v2694, 16
        %v2937 = vrot.slane %v2935, 2
        %v2938 = vshll.u32 %v2694, 16
        %v2940 = vrot.slane %v2938, 3
        %v2941 = vor.u32 %v2937, %v2940
        %v2942 = vsel %vm2907, %v2932, %v2941
        %v2944 = vshrl.u32 %v2695, 16
        %v2946 = vrot.slane %v2944, 2
        %v2947 = vshll.u32 %v2695, 16
        %v2949 = vrot.slane %v2947, 3
        %v2950 = vor.u32 %v2946, %v2949
        %v2951 = vsel %vm2907, %v2941, %v2950
        %v2953 = vshrl.u32 %v2696, 16
        %v2955 = vrot.slane %v2953, 2
        %v2956 = vshll.u32 %v2696, 16
        %v2958 = vrot.slane %v2956, 3
        %v2959 = vor.u32 %v2955, %v2958
        %v2960 = vsel %vm2907, %v2950, %v2959
        %v2962 = vshrl.u32 %v2697, 16
        %v2964 = vrot.slane %v2962, 2
        %v2965 = vshll.u32 %v2697, 16
        %v2967 = vrot.slane %v2965, 3
        %v2968 = vor.u32 %v2964, %v2967
        %v2969 = vsel %vm2907, %v2959, %v2968
        %v2971 = vshrl.u32 %v2698, 16
        %v2973 = vrot.slane %v2971, 2
        %v2974 = vshll.u32 %v2698, 16
        %v2976 = vrot.slane %v2974, 3
        %v2977 = vor.u32 %v2973, %v2976
        %v2978 = vsel %vm2907, %v2968, %v2977
        %v2980 = vshrl.u32 %v2699, 16
        %v2982 = vrot.slane %v2980, 2
        %v2983 = vshll.u32 %v2699, 16
        %v2985 = vrot.slane %v2983, 3
        %v2986 = vor.u32 %v2982, %v2985
        %v2987 = vsel %vm2907, %v2977, %v2986
        %v2989 = vshrl.u32 %v2906, 16
        %v2991 = vrot.slane %v2989, 2
        %v2992 = vshll.u32 %v2906, 16
        %v2994 = vrot.slane %v2992, 3
        %v2995 = vor.u32 %v2991, %v2994
        %v2996 = vsel %vm2907, %v2986, %v2995
        %v3005 = vunpack.c.l.b16 %v2896
        %v3006 = vunpack.c.l.b16 %v2897
        %v3007 = vunpack.c.l.b16 %v2898
        %v3008 = vunpack.c.l.b16 %v2899
        %v3009 = vunpack.c.l.b16 %v2900
        %v3010 = vunpack.c.l.b16 %v2901
        %v3011 = vunpack.c.l.b16 %v2902
        %v3012 = vunpack.c.l.b16 %v2903
        %v3013 = vpack.c.b16 %v3006, %v3005
        %v3014 = vpack.c.b16 %v3008, %v3007
        %v3015 = vpack.c.b16 %v3010, %v3009
        %v3016 = vpack.c.b16 %v3012, %v3011
        %v3022 = vsel %vm1385, %v2924, 0
        %v3025 = vsel %vm1385, %v2933, 0
        %v3028 = vsel %vm1385, %v2942, 0
        %v3031 = vsel %vm1385, %v2951, 0
        %v3034 = vsel %vm1385, %v2960, 0
        %v3037 = vsel %vm1385, %v2969, 0
        %v3040 = vsel %vm1385, %v2978, 0
        %v3043 = vsel %vm1385, %v2987, 0
        %v3046 = vsel %vm1385, %v2996, 0
        %3048 = vmatprep.subr.bf16.mxu0 0
        %3049 = vmatpush1.bf16.msra.mxu0 %v3013
        %3050 = vmatprep.subr.bf16.mxu0 0
        %3051 = vmatpush1.bf16.msra.mxu0 %v3014
        %3052 = vmatprep.subr.bf16.mxu0 0
        %3053 = vmatpush1.bf16.msra.mxu0 %v3015
        %3054 = vmatprep.subr.bf16.mxu0 0
        %3055 = vmatpush1.bf16.msra.mxu0 %v3016
        %3056 = vmatprep.subr.bf16.mxu0 0
        %3057 = vmatpush1.bf16.msra.mxu0 0
        %3058 = vmatprep.subr.bf16.mxu0 0
        %3059 = vmatpush1.bf16.msra.mxu0 0
        %3060 = vmatprep.subr.bf16.mxu0 0
        %3061 = vmatpush1.bf16.msra.mxu0 0
        %3062 = vmatprep.subr.bf16.mxu0 0
        %3063 = vmatpush1.bf16.msra.mxu0 0
        %3064 = vmatprep.subr.bf16.mxu0 0
        %3065 = vmatpush1.bf16.msra.mxu0 0
        %3066 = vmatprep.subr.bf16.mxu0 0
        %3067 = vmatpush1.bf16.msra.mxu0 0
        %3068 = vmatprep.subr.bf16.mxu0 0
        %3069 = vmatpush1.bf16.msra.mxu0 0
        %3070 = vmatprep.subr.bf16.mxu0 0
        %3071 = vmatpush1.bf16.msra.mxu0 0
        %3072 = vmatprep.subr.bf16.mxu0 0
        %3073 = vmatpush1.bf16.msra.mxu0 0
        %3074 = vmatprep.subr.bf16.mxu0 0
        %3075 = vmatpush1.bf16.msra.mxu0 0
        %3076 = vmatprep.subr.bf16.mxu0 0
        %3077 = vmatpush1.bf16.msra.mxu0 0
        %3078 = vmatprep.subr.bf16.mxu0 0
        %3079 = vmatpush1.bf16.msra.mxu0 0
        %3080 = vmatprep.mubr.bf16.mxu0 0
        %3081 = vmatmul.mubr.bf16.gmra.mrb[0].mxu0 %v3022
        %v3082 = vpop.f32.mrb[0].mxu0
        %v3083 = vadd.f32 0.0, %v3082
        %v3084 = vpop.f32.mrb[0].mxu0
        %v3085 = vpop.f32.mrb[0].mxu0
        %v3086 = vadd.f32 0.0, %v3085
        %v3087 = vpop.f32.mrb[0].mxu0
        %3088 = vmatprep.mubr.bf16.mxu0 0
        %3089 = vmatmul.mubr.bf16.gmra.mrb[0].mxu0 %v3025
        %v3090 = vpop.f32.mrb[0].mxu0
        %v3091 = vadd.f32 0.0, %v3090
        %v3092 = vpop.f32.mrb[0].mxu0
        %v3093 = vpop.f32.mrb[0].mxu0
        %v3094 = vadd.f32 0.0, %v3093
        %v3095 = vpop.f32.mrb[0].mxu0
        %3096 = vmatprep.mubr.bf16.mxu0 0
        %3097 = vmatmul.mubr.bf16.gmra.mrb[0].mxu0 %v3028
        %v3098 = vpop.f32.mrb[0].mxu0
        %v3099 = vadd.f32 0.0, %v3098
        %v3100 = vpop.f32.mrb[0].mxu0
        %v3101 = vpop.f32.mrb[0].mxu0
        %v3102 = vadd.f32 0.0, %v3101
        %v3103 = vpop.f32.mrb[0].mxu0
        %3104 = vmatprep.mubr.bf16.mxu0 0
        %3105 = vmatmul.mubr.bf16.gmra.mrb[0].mxu0 %v3031
        %v3106 = vpop.f32.mrb[0].mxu0
        %v3107 = vadd.f32 0.0, %v3106
        %v3108 = vpop.f32.mrb[0].mxu0
        %v3109 = vpop.f32.mrb[0].mxu0
        %v3110 = vadd.f32 0.0, %v3109
        %v3111 = vpop.f32.mrb[0].mxu0
        %3112 = vmatprep.mubr.bf16.mxu0 0
        %3113 = vmatmul.mubr.bf16.gmra.mrb[0].mxu0 %v3034
        %v3114 = vpop.f32.mrb[0].mxu0
        %v3115 = vadd.f32 0.0, %v3114
        %v3116 = vpop.f32.mrb[0].mxu0
        %v3117 = vpop.f32.mrb[0].mxu0
        %v3118 = vadd.f32 0.0, %v3117
        %v3119 = vpop.f32.mrb[0].mxu0
        %3120 = vmatprep.mubr.bf16.mxu0 0
        %3121 = vmatmul.mubr.bf16.gmra.mrb[0].mxu0 %v3037
        %v3122 = vpop.f32.mrb[0].mxu0
        %v3123 = vadd.f32 0.0, %v3122
        %v3124 = vpop.f32.mrb[0].mxu0
        %v3125 = vpop.f32.mrb[0].mxu0
        %v3126 = vadd.f32 0.0, %v3125
        %v3127 = vpop.f32.mrb[0].mxu0
        %3128 = vmatprep.mubr.bf16.mxu0 0
        %3129 = vmatmul.mubr.bf16.gmra.mrb[0].mxu0 %v3040
        %v3130 = vpop.f32.mrb[0].mxu0
        %v3131 = vadd.f32 0.0, %v3130
        %v3132 = vpop.f32.mrb[0].mxu0
        %v3133 = vpop.f32.mrb[0].mxu0
        %v3134 = vadd.f32 0.0, %v3133
        %v3135 = vpop.f32.mrb[0].mxu0
        %3136 = vmatprep.mubr.bf16.mxu0 0
        %3137 = vmatmul.mubr.bf16.gmra.mrb[0].mxu0 %v3043
        %v3138 = vpop.f32.mrb[0].mxu0
        %v3139 = vadd.f32 0.0, %v3138
        %v3140 = vpop.f32.mrb[0].mxu0
        %v3141 = vpop.f32.mrb[0].mxu0
        %v3142 = vadd.f32 0.0, %v3141
        %v3143 = vpop.f32.mrb[0].mxu0
        %3144 = vmatprep.mubr.bf16.mxu0 0
        %3145 = vmatmul.mubr.bf16.gmra.mrb[0].mxu0 %v3046
        %v3146 = vpop.f32.mrb[0].mxu0
        %v3147 = vadd.f32 0.0, %v3146
        %v3148 = vpop.f32.mrb[0].mxu0
        %v3149 = vpop.f32.mrb[0].mxu0
        %v3150 = vadd.f32 0.0, %v3149
        %v3151 = vpop.f32.mrb[0].mxu0
        %3152 = vdwg.mxu0
        %v3153 = vadd.f32 %v2876, %v3083
        %v3154 = vadd.f32 %v2877, %v3086
        %v3155 = vadd.f32 %v2878, %v3091
        %v3156 = vadd.f32 %v2879, %v3094
        %v3157 = vadd.f32 %v2880, %v3099
        %v3158 = vadd.f32 %v2881, %v3102
        %v3159 = vadd.f32 %v2882, %v3107
        %v3160 = vadd.f32 %v2883, %v3110
        %v3161 = vadd.f32 %v2884, %v3115
        %v3162 = vadd.f32 %v2885, %v3118
        %v3163 = vadd.f32 %v2886, %v3123
        %v3164 = vadd.f32 %v2887, %v3126
        %v3165 = vadd.f32 %v2888, %v3131
        %v3166 = vadd.f32 %v2889, %v3134
        %v3167 = vadd.f32 %v2890, %v3139
        %v3168 = vadd.f32 %v2891, %v3142
        %v3169 = vadd.f32 %v2892, %v3147
        %v3170 = vadd.f32 %v2893, %v3150
        %v3171 = vld [vmem:[#allocation2 + $0x10] sm:$0x8]
        %s3172 = scalar_lea.vmem [#allocation6], 256
        %v3173 = vld [vmem:[%s3172] sm:$0xf]
        %v3174 = vld [vmem:[%s3172 + $0x4] sm:$0xf]
        %v3175 = vld [vmem:[%s3172 + $0x8] sm:$0xf]
        %v3176 = vld [vmem:[%s3172 + $0xc] sm:$0xf]
        %v3177 = vld [vmem:[%s3172 + $0x10] sm:$0xf]
        %v3178 = vld [vmem:[%s3172 + $0x14] sm:$0xf]
        %v3179 = vld [vmem:[%s3172 + $0x18] sm:$0xf]
        %v3180 = vld [vmem:[%s3172 + $0x1c] sm:$0xf]
        %v3182 = vunpack.c.l.b16 %v3171
        %v3183 = vpack.c.b16 %v2673, %v3182
        %vm3184 = vcmask 1044480
        %v3185 = vrot.slane %v3183, 3
        %v3186 = vrot.slane %v2692, 3
        %v3187 = vsel %vm3184, %v3185, %v3186
        %v3188 = vrot.slane %v2693, 3
        %v3189 = vsel %vm3184, %v3186, %v3188
        %v3190 = vrot.slane %v2694, 3
        %v3191 = vsel %vm3184, %v3188, %v3190
        %v3192 = vrot.slane %v2695, 3
        %v3193 = vsel %vm3184, %v3190, %v3192
        %v3194 = vrot.slane %v2696, 3
        %v3195 = vsel %vm3184, %v3192, %v3194
        %v3196 = vrot.slane %v2697, 3
        %v3197 = vsel %vm3184, %v3194, %v3196
        %v3198 = vrot.slane %v2698, 3
        %v3199 = vsel %vm3184, %v3196, %v3198
        %v3200 = vrot.slane %v2699, 3
        %v3201 = vsel %vm3184, %v3198, %v3200
        %v3202 = vrot.slane %v2906, 3
        %v3203 = vsel %vm3184, %v3200, %v3202
        %v3212 = vunpack.c.l.b16 %v3173
        %v3213 = vunpack.c.l.b16 %v3174
        %v3214 = vunpack.c.l.b16 %v3175
        %v3215 = vunpack.c.l.b16 %v3176
        %v3216 = vunpack.c.l.b16 %v3177
        %v3217 = vunpack.c.l.b16 %v3178
        %v3218 = vunpack.c.l.b16 %v3179
        %v3219 = vunpack.c.l.b16 %v3180
        %v3220 = vpack.c.b16 %v3213, %v3212
        %v3221 = vpack.c.b16 %v3215, %v3214
        %v3222 = vpack.c.b16 %v3217, %v3216
        %v3223 = vpack.c.b16 %v3219, %v3218
        %v3229 = vsel %vm1385, %v3187, 0
        %v3232 = vsel %vm1385, %v3189, 0
        %v3235 = vsel %vm1385, %v3191, 0
        %v3238 = vsel %vm1385, %v3193, 0
        %v3241 = vsel %vm1385, %v3195, 0
        %v3244 = vsel %vm1385, %v3197, 0
        %v3247 = vsel %vm1385, %v3199, 0
        %v3250 = vsel %vm1385, %v3201, 0
        %v3253 = vsel %vm1385, %v3203, 0
        %3255 = vmatprep.subr.bf16.mxu0 0
        %3256 = vmatpush1.bf16.msra.mxu0 %v3220
        %3257 = vmatprep.subr.bf16.mxu0 0
        %3258 = vmatpush1.bf16.msra.mxu0 %v3221
        %3259 = vmatprep.subr.bf16.mxu0 0
        %3260 = vmatpush1.bf16.msra.mxu0 %v3222
        %3261 = vmatprep.subr.bf16.mxu0 0
        %3262 = vmatpush1.bf16.msra.mxu0 %v3223
        %3263 = vmatprep.subr.bf16.mxu0 0
        %3264 = vmatpush1.bf16.msra.mxu0 0
        %3265 = vmatprep.subr.bf16.mxu0 0
        %3266 = vmatpush1.bf16.msra.mxu0 0
        %3267 = vmatprep.subr.bf16.mxu0 0
        %3268 = vmatpush1.bf16.msra.mxu0 0
        %3269 = vmatprep.subr.bf16.mxu0 0
        %3270 = vmatpush1.bf16.msra.mxu0 0
        %3271 = vmatprep.subr.bf16.mxu0 0
        %3272 = vmatpush1.bf16.msra.mxu0 0
        %3273 = vmatprep.subr.bf16.mxu0 0
        %3274 = vmatpush1.bf16.msra.mxu0 0
        %3275 = vmatprep.subr.bf16.mxu0 0
        %3276 = vmatpush1.bf16.msra.mxu0 0
        %3277 = vmatprep.subr.bf16.mxu0 0
        %3278 = vmatpush1.bf16.msra.mxu0 0
        %3279 = vmatprep.subr.bf16.mxu0 0
        %3280 = vmatpush1.bf16.msra.mxu0 0
        %3281 = vmatprep.subr.bf16.mxu0 0
        %3282 = vmatpush1.bf16.msra.mxu0 0
        %3283 = vmatprep.subr.bf16.mxu0 0
        %3284 = vmatpush1.bf16.msra.mxu0 0
        %3285 = vmatprep.subr.bf16.mxu0 0
        %3286 = vmatpush1.bf16.msra.mxu0 0
        %3287 = vmatprep.mubr.bf16.mxu0 0
        %3288 = vmatmul.mubr.bf16.gmra.mrb[0].mxu0 %v3229
        %v3289 = vpop.f32.mrb[0].mxu0
        %v3290 = vadd.f32 0.0, %v3289
        %v3291 = vpop.f32.mrb[0].mxu0
        %v3292 = vpop.f32.mrb[0].mxu0
        %v3293 = vadd.f32 0.0, %v3292
        %v3294 = vpop.f32.mrb[0].mxu0
        %3295 = vmatprep.mubr.bf16.mxu0 0
        %3296 = vmatmul.mubr.bf16.gmra.mrb[0].mxu0 %v3232
        %v3297 = vpop.f32.mrb[0].mxu0
        %v3298 = vadd.f32 0.0, %v3297
        %v3299 = vpop.f32.mrb[0].mxu0
        %v3300 = vpop.f32.mrb[0].mxu0
        %v3301 = vadd.f32 0.0, %v3300
        %v3302 = vpop.f32.mrb[0].mxu0
        %3303 = vmatprep.mubr.bf16.mxu0 0
        %3304 = vmatmul.mubr.bf16.gmra.mrb[0].mxu0 %v3235
        %v3305 = vpop.f32.mrb[0].mxu0
        %v3306 = vadd.f32 0.0, %v3305
        %v3307 = vpop.f32.mrb[0].mxu0
        %v3308 = vpop.f32.mrb[0].mxu0
        %v3309 = vadd.f32 0.0, %v3308
        %v3310 = vpop.f32.mrb[0].mxu0
        %3311 = vmatprep.mubr.bf16.mxu0 0
        %3312 = vmatmul.mubr.bf16.gmra.mrb[0].mxu0 %v3238
        %v3313 = vpop.f32.mrb[0].mxu0
        %v3314 = vadd.f32 0.0, %v3313
        %v3315 = vpop.f32.mrb[0].mxu0
        %v3316 = vpop.f32.mrb[0].mxu0
        %v3317 = vadd.f32 0.0, %v3316
        %v3318 = vpop.f32.mrb[0].mxu0
        %3319 = vmatprep.mubr.bf16.mxu0 0
        %3320 = vmatmul.mubr.bf16.gmra.mrb[0].mxu0 %v3241
        %v3321 = vpop.f32.mrb[0].mxu0
        %v3322 = vadd.f32 0.0, %v3321
        %v3323 = vpop.f32.mrb[0].mxu0
        %v3324 = vpop.f32.mrb[0].mxu0
        %v3325 = vadd.f32 0.0, %v3324
        %v3326 = vpop.f32.mrb[0].mxu0
        %3327 = vmatprep.mubr.bf16.mxu0 0
        %3328 = vmatmul.mubr.bf16.gmra.mrb[0].mxu0 %v3244
        %v3329 = vpop.f32.mrb[0].mxu0
        %v3330 = vadd.f32 0.0, %v3329
        %v3331 = vpop.f32.mrb[0].mxu0
        %v3332 = vpop.f32.mrb[0].mxu0
        %v3333 = vadd.f32 0.0, %v3332
        %v3334 = vpop.f32.mrb[0].mxu0
        %3335 = vmatprep.mubr.bf16.mxu0 0
        %3336 = vmatmul.mubr.bf16.gmra.mrb[0].mxu0 %v3247
        %v3337 = vpop.f32.mrb[0].mxu0
        %v3338 = vadd.f32 0.0, %v3337
        %v3339 = vpop.f32.mrb[0].mxu0
        %v3340 = vpop.f32.mrb[0].mxu0
        %v3341 = vadd.f32 0.0, %v3340
        %v3342 = vpop.f32.mrb[0].mxu0
        %3343 = vmatprep.mubr.bf16.mxu0 0
        %3344 = vmatmul.mubr.bf16.gmra.mrb[0].mxu0 %v3250
        %v3345 = vpop.f32.mrb[0].mxu0
        %v3346 = vadd.f32 0.0, %v3345
        %v3347 = vpop.f32.mrb[0].mxu0
        %v3348 = vpop.f32.mrb[0].mxu0
        %v3349 = vadd.f32 0.0, %v3348
        %v3350 = vpop.f32.mrb[0].mxu0
        %3351 = vmatprep.mubr.bf16.mxu0 0
        %3352 = vmatmul.mubr.bf16.gmra.mrb[0].mxu0 %v3253
        %v3353 = vpop.f32.mrb[0].mxu0
        %v3354 = vadd.f32 0.0, %v3353
        %v3355 = vpop.f32.mrb[0].mxu0
        %v3356 = vpop.f32.mrb[0].mxu0
        %v3357 = vadd.f32 0.0, %v3356
        %v3358 = vpop.f32.mrb[0].mxu0
        %3359 = vdwg.mxu0
        %v3360 = vadd.f32 %v3153, %v3290
        %v3361 = vadd.f32 %v3154, %v3293
        %v3362 = vadd.f32 %v3155, %v3298
        %v3363 = vadd.f32 %v3156, %v3301
        %v3364 = vadd.f32 %v3157, %v3306
        %v3365 = vadd.f32 %v3158, %v3309
        %v3366 = vadd.f32 %v3159, %v3314
        %v3367 = vadd.f32 %v3160, %v3317
        %v3368 = vadd.f32 %v3161, %v3322
        %v3369 = vadd.f32 %v3162, %v3325
        %v3370 = vadd.f32 %v3163, %v3330
        %v3371 = vadd.f32 %v3164, %v3333
        %v3372 = vadd.f32 %v3165, %v3338
        %v3373 = vadd.f32 %v3166, %v3341
        %v3374 = vadd.f32 %v3167, %v3346
        %v3375 = vadd.f32 %v3168, %v3349
        %v3376 = vadd.f32 %v3169, %v3354
        %v3377 = vadd.f32 %v3170, %v3357
        %v3379 = vlaneseq
        %v3380 = vshrl.u32 %v3379, 7
        %v3381 = vsub.s32 0, %v3380
        %v3382 = vrot.slane %v1199, %v3381
        %v3384 = vadd.f32 %v3360, %v3382
        %v3385 = vadd.f32 %v3361, %v3382
        %v3386 = vadd.f32 %v3362, %v3382
        %v3387 = vadd.f32 %v3363, %v3382
        %v3388 = vadd.f32 %v3364, %v3382
        %v3389 = vadd.f32 %v3365, %v3382
        %v3390 = vadd.f32 %v3366, %v3382
        %v3391 = vadd.f32 %v3367, %v3382
        %v3392 = vadd.f32 %v3368, %v3382
        %v3393 = vadd.f32 %v3369, %v3382
        %v3394 = vadd.f32 %v3370, %v3382
        %v3395 = vadd.f32 %v3371, %v3382
        %v3396 = vadd.f32 %v3372, %v3382
        %v3397 = vadd.f32 %v3373, %v3382
        %v3398 = vadd.f32 %v3374, %v3382
        %v3399 = vadd.f32 %v3375, %v3382
        %v3400 = vadd.f32 %v3376, %v3382
        %v3401 = vadd.f32 %v3377, %v3382
        %v3402 = vmax.f32 %v3384, 0.0
        %v3403 = vmax.f32 %v3385, 0.0
        %v3404 = vmax.f32 %v3386, 0.0
        %v3405 = vmax.f32 %v3387, 0.0
        %v3406 = vmax.f32 %v3388, 0.0
        %v3407 = vmax.f32 %v3389, 0.0
        %v3408 = vmax.f32 %v3390, 0.0
        %v3409 = vmax.f32 %v3391, 0.0
        %v3410 = vmax.f32 %v3392, 0.0
        %v3411 = vmax.f32 %v3393, 0.0
        %v3412 = vmax.f32 %v3394, 0.0
        %v3413 = vmax.f32 %v3395, 0.0
        %v3414 = vmax.f32 %v3396, 0.0
        %v3415 = vmax.f32 %v3397, 0.0
        %v3416 = vmax.f32 %v3398, 0.0
        %v3417 = vmax.f32 %v3399, 0.0
        %v3418 = vmax.f32 %v3400, 0.0
        %v3419 = vmax.f32 %v3401, 0.0
        %v3420 = vld [vmem:[%s227] sm:$0xff]
        %v3421 = vld [vmem:[%s227 + $0x8] sm:$0xff]
        %v3422 = vadd.f32 %v3420, %v3402
        %v3423 = vadd.f32 %v3421, %v3403
        %3424 = vst [vmem:[%s257] sm:$0xff] %v3422
        %3425 = vst [vmem:[%s257 + $0x8] sm:$0xff] %v3423
        %v3426 = vld [vmem:[%s227 + $0x10] sm:$0xff]
        %v3427 = vld [vmem:[%s227 + $0x18] sm:$0xff]
        %vm3431 = vcmask 1045504
        %v3432 = vrot.slane %v3404, 2
        %v3433 = vrot.slane %v3405, 2
        %v3434 = vsel %vm3431, %v3432, %v3433
        %v3435 = vrot.slane %v3406, 2
        %v3436 = vsel %vm3431, %v3433, %v3435
        %v3439 = vadd.f32 %v3426, %v3434
        %v3440 = vadd.f32 %v3427, %v3436
        %3441 = vst [vmem:[%s257 + $0x10] sm:$0xff] %v3439
        %3442 = vst [vmem:[%s257 + $0x18] sm:$0xff] %v3440
        %v3443 = vld [vmem:[%s227 + $0x20] sm:$0xff]
        %v3444 = vld [vmem:[%s227 + $0x28] sm:$0xff]
        %vm3447 = vcmask 1043456
        %v3448 = vrot.slane %v3406, 4
        %v3449 = vrot.slane %v3407, 4
        %v3450 = vsel %vm3447, %v3448, %v3449
        %v3451 = vrot.slane %v3408, 4
        %v3452 = vsel %vm3447, %v3449, %v3451
        %v3455 = vadd.f32 %v3443, %v3450
        %v3456 = vadd.f32 %v3444, %v3452
        %3457 = vst [vmem:[%s257 + $0x20] sm:$0xff] %v3455
        %3458 = vst [vmem:[%s257 + $0x28] sm:$0xff] %v3456
        %v3459 = vld [vmem:[%s227 + $0x30] sm:$0xff]
        %v3460 = vld [vmem:[%s227 + $0x38] sm:$0xff]
        %vm3463 = vcmask 1041408
        %v3464 = vrot.slane %v3408, 6
        %v3465 = vrot.slane %v3409, 6
        %v3466 = vsel %vm3463, %v3464, %v3465
        %v3467 = vrot.slane %v3410, 6
        %v3468 = vsel %vm3463, %v3465, %v3467
        %v3471 = vadd.f32 %v3459, %v3466
        %v3472 = vadd.f32 %v3460, %v3468
        %3473 = vst [vmem:[%s257 + $0x30] sm:$0xff] %v3471
        %3474 = vst [vmem:[%s257 + $0x38] sm:$0xff] %v3472
        %v3475 = vld [vmem:[%s227 + $0x40] sm:$0xff]
        %v3476 = vld [vmem:[%s227 + $0x48] sm:$0xff]
        %v3477 = vadd.f32 %v3475, %v3411
        %v3478 = vadd.f32 %v3476, %v3412
        %3479 = vst [vmem:[%s257 + $0x40] sm:$0xff] %v3477
        %3480 = vst [vmem:[%s257 + $0x48] sm:$0xff] %v3478
        %v3481 = vld [vmem:[%s227 + $0x50] sm:$0xff]
        %v3482 = vld [vmem:[%s227 + $0x58] sm:$0xff]
        %v3486 = vrot.slane %v3413, 2
        %v3487 = vrot.slane %v3414, 2
        %v3488 = vsel %vm3431, %v3486, %v3487
        %v3489 = vrot.slane %v3415, 2
        %v3490 = vsel %vm3431, %v3487, %v3489
        %v3493 = vadd.f32 %v3481, %v3488
        %v3494 = vadd.f32 %v3482, %v3490
        %3495 = vst [vmem:[%s257 + $0x50] sm:$0xff] %v3493
        %3496 = vst [vmem:[%s257 + $0x58] sm:$0xff] %v3494
        %v3497 = vld [vmem:[%s227 + $0x60] sm:$0xff]
        %v3498 = vld [vmem:[%s227 + $0x68] sm:$0xff]
        %v3501 = vrot.slane %v3415, 4
        %v3502 = vrot.slane %v3416, 4
        %v3503 = vsel %vm3447, %v3501, %v3502
        %v3504 = vrot.slane %v3417, 4
        %v3505 = vsel %vm3447, %v3502, %v3504
        %v3508 = vadd.f32 %v3497, %v3503
        %v3509 = vadd.f32 %v3498, %v3505
        %3510 = vst [vmem:[%s257 + $0x60] sm:$0xff] %v3508
        %3511 = vst [vmem:[%s257 + $0x68] sm:$0xff] %v3509
        %v3512 = vld [vmem:[%s227 + $0x70] sm:$0xff]
        %v3513 = vld [vmem:[%s227 + $0x78] sm:$0xff]
        %v3516 = vrot.slane %v3417, 6
        %v3517 = vrot.slane %v3418, 6
        %v3518 = vsel %vm3463, %v3516, %v3517
        %v3519 = vrot.slane %v3419, 6
        %v3520 = vsel %vm3463, %v3517, %v3519
        %v3523 = vadd.f32 %v3512, %v3518
        %v3524 = vadd.f32 %v3513, %v3520
        %3525 = vst [vmem:[%s257 + $0x70] sm:$0xff] %v3523
        %3526 = vst [vmem:[%s257 + $0x78] sm:$0xff] %v3524
        %v3527 = vld [vmem:[#allocation2 + $0x48] sm:$0xf]
        %v3528 = vld [vmem:[#allocation2 + $0x4c] sm:$0xf]
        %v3529 = vld [vmem:[#allocation2 + $0x50] sm:$0xf]
        %v3530 = vld [vmem:[#allocation2 + $0x54] sm:$0xf]
        %v3531 = vld [vmem:[#allocation2 + $0x58] sm:$0xf]
        %v3532 = vld [vmem:[#allocation2 + $0x5c] sm:$0xf]
        %v3533 = vld [vmem:[#allocation2 + $0x60] sm:$0xf]
        %v3534 = vld [vmem:[#allocation2 + $0x64] sm:$0xf]
        %v3535 = vld [vmem:[#allocation2 + $0x68] sm:$0xf]
        %v3536 = vld [vmem:[#allocation2 + $0x6c] sm:$0xf]
        %v3537 = vld [vmem:[#allocation2 + $0x70] sm:$0xf]
        %v3538 = vld [vmem:[#allocation2 + $0x74] sm:$0xf]
        %v3539 = vld [vmem:[#allocation2 + $0x78] sm:$0xf]
        %v3540 = vld [vmem:[#allocation2 + $0x7c] sm:$0xf]
        %v3541 = vld [vmem:[#allocation2 + $0x80] sm:$0xf]
        %v3542 = vld [vmem:[#allocation2 + $0x84] sm:$0xf]
        %v3543 = vld [vmem:[#allocation2 + $0x88] sm:$0xf]
        %v3544 = vld [vmem:[#allocation2 + $0x8c] sm:$0xf]
        %v3545 = vld [vmem:[#allocation6] sm:$0xf]
        %v3546 = vld [vmem:[#allocation6 + $0x4] sm:$0xf]
        %v3547 = vld [vmem:[#allocation6 + $0x8] sm:$0xf]
        %v3548 = vld [vmem:[#allocation6 + $0xc] sm:$0xf]
        %v3549 = vld [vmem:[#allocation6 + $0x10] sm:$0xf]
        %v3550 = vld [vmem:[#allocation6 + $0x14] sm:$0xf]
        %v3551 = vld [vmem:[#allocation6 + $0x18] sm:$0xf]
        %v3552 = vld [vmem:[#allocation6 + $0x1c] sm:$0xf]
        %v3553 = vld [vmem:[#allocation2 + $0x90] sm:$0x1]
        %v3554 = vld [vmem:[%s1227] sm:$0xf]
        %v3555 = vld [vmem:[%s1227 + $0x4] sm:$0xf]
        %v3556 = vld [vmem:[%s1227 + $0x8] sm:$0xf]
        %v3557 = vld [vmem:[%s1227 + $0xc] sm:$0xf]
        %v3558 = vld [vmem:[%s1227 + $0x10] sm:$0xf]
        %v3559 = vld [vmem:[%s1227 + $0x14] sm:$0xf]
        %v3560 = vld [vmem:[%s1227 + $0x18] sm:$0xf]
        %v3561 = vld [vmem:[%s1227 + $0x1c] sm:$0xf]
        %v3581 = vunpack.c.l.b16 %v3527
        %v3582 = vunpack.c.l.b16 %v3528
        %v3583 = vunpack.c.l.b16 %v3529
        %v3584 = vunpack.c.l.b16 %v3530
        %v3585 = vunpack.c.l.b16 %v3531
        %v3586 = vunpack.c.l.b16 %v3532
        %v3587 = vunpack.c.l.b16 %v3533
        %v3588 = vunpack.c.l.b16 %v3534
        %v3589 = vunpack.c.l.b16 %v3535
        %v3590 = vunpack.c.l.b16 %v3536
        %v3591 = vunpack.c.l.b16 %v3537
        %v3592 = vunpack.c.l.b16 %v3538
        %v3593 = vunpack.c.l.b16 %v3539
        %v3594 = vunpack.c.l.b16 %v3540
        %v3595 = vunpack.c.l.b16 %v3541
        %v3596 = vunpack.c.l.b16 %v3542
        %v3597 = vunpack.c.l.b16 %v3543
        %v3598 = vunpack.c.l.b16 %v3544
        %v3599 = vunpack.c.l.b16 %v3553
        %v3600 = vpack.c.b16 %v3582, %v3581
        %v3601 = vpack.c.b16 %v3584, %v3583
        %v3602 = vpack.c.b16 %v3586, %v3585
        %v3603 = vpack.c.b16 %v3588, %v3587
        %v3604 = vpack.c.b16 %v3590, %v3589
        %v3605 = vpack.c.b16 %v3592, %v3591
        %v3606 = vpack.c.b16 %v3594, %v3593
        %v3607 = vpack.c.b16 %v3596, %v3595
        %v3608 = vpack.c.b16 %v3598, %v3597
        %v3609 = vpack.c.b16 %v3599, %v3599
        %v3611 = vshrl.u32 %v3600, 16
        %v3613 = vshll.u32 %v3600, 16
        %v3615 = vrot.slane %v3613, 1
        %v3616 = vor.u32 %v3611, %v3615
        %v3618 = vshll.u32 %v3601, 16
        %v3620 = vrot.slane %v3618, 1
        %v3621 = vsel %vm1284, %v3616, %v3620
        %v3622 = vshrl.u32 %v3601, 16
        %v3624 = vor.u32 %v3622, %v3620
        %v3626 = vshll.u32 %v3602, 16
        %v3628 = vrot.slane %v3626, 1
        %v3629 = vsel %vm1284, %v3624, %v3628
        %v3630 = vshrl.u32 %v3602, 16
        %v3632 = vor.u32 %v3630, %v3628
        %v3634 = vshll.u32 %v3603, 16
        %v3636 = vrot.slane %v3634, 1
        %v3637 = vsel %vm1284, %v3632, %v3636
        %v3638 = vshrl.u32 %v3603, 16
        %v3640 = vor.u32 %v3638, %v3636
        %v3642 = vshll.u32 %v3604, 16
        %v3644 = vrot.slane %v3642, 1
        %v3645 = vsel %vm1284, %v3640, %v3644
        %v3646 = vshrl.u32 %v3604, 16
        %v3648 = vor.u32 %v3646, %v3644
        %v3650 = vshll.u32 %v3605, 16
        %v3652 = vrot.slane %v3650, 1
        %v3653 = vsel %vm1284, %v3648, %v3652
        %v3654 = vshrl.u32 %v3605, 16
        %v3656 = vor.u32 %v3654, %v3652
        %v3658 = vshll.u32 %v3606, 16
        %v3660 = vrot.slane %v3658, 1
        %v3661 = vsel %vm1284, %v3656, %v3660
        %v3662 = vshrl.u32 %v3606, 16
        %v3664 = vor.u32 %v3662, %v3660
        %v3666 = vshll.u32 %v3607, 16
        %v3668 = vrot.slane %v3666, 1
        %v3669 = vsel %vm1284, %v3664, %v3668
        %v3670 = vshrl.u32 %v3607, 16
        %v3672 = vor.u32 %v3670, %v3668
        %v3674 = vshll.u32 %v3608, 16
        %v3676 = vrot.slane %v3674, 1
        %v3677 = vsel %vm1284, %v3672, %v3676
        %v3678 = vshrl.u32 %v3608, 16
        %v3680 = vor.u32 %v3678, %v3676
        %v3682 = vshll.u32 %v3609, 16
        %v3684 = vrot.slane %v3682, 1
        %v3685 = vsel %vm1284, %v3680, %v3684
        %v3694 = vunpack.c.l.b16 %v3554
        %v3695 = vunpack.c.l.b16 %v3555
        %v3696 = vunpack.c.l.b16 %v3556
        %v3697 = vunpack.c.l.b16 %v3557
        %v3698 = vunpack.c.l.b16 %v3558
        %v3699 = vunpack.c.l.b16 %v3559
        %v3700 = vunpack.c.l.b16 %v3560
        %v3701 = vunpack.c.l.b16 %v3561
        %v3702 = vpack.c.b16 %v3695, %v3694
        %v3703 = vpack.c.b16 %v3697, %v3696
        %v3704 = vpack.c.b16 %v3699, %v3698
        %v3705 = vpack.c.b16 %v3701, %v3700
        %v3711 = vsel %vm1385, %v3621, 0
        %v3714 = vsel %vm1385, %v3629, 0
        %v3717 = vsel %vm1385, %v3637, 0
        %v3720 = vsel %vm1385, %v3645, 0
        %v3723 = vsel %vm1385, %v3653, 0
        %v3726 = vsel %vm1385, %v3661, 0
        %v3729 = vsel %vm1385, %v3669, 0
        %v3732 = vsel %vm1385, %v3677, 0
        %v3735 = vsel %vm1385, %v3685, 0
        %3737 = vmatprep.subr.bf16.mxu0 0
        %3738 = vmatpush1.bf16.msra.mxu0 %v3702
        %3739 = vmatprep.subr.bf16.mxu0 0
        %3740 = vmatpush1.bf16.msra.mxu0 %v3703
        %3741 = vmatprep.subr.bf16.mxu0 0
        %3742 = vmatpush1.bf16.msra.mxu0 %v3704
        %3743 = vmatprep.subr.bf16.mxu0 0
        %3744 = vmatpush1.bf16.msra.mxu0 %v3705
        %3745 = vmatprep.subr.bf16.mxu0 0
        %3746 = vmatpush1.bf16.msra.mxu0 0
        %3747 = vmatprep.subr.bf16.mxu0 0
        %3748 = vmatpush1.bf16.msra.mxu0 0
        %3749 = vmatprep.subr.bf16.mxu0 0
        %3750 = vmatpush1.bf16.msra.mxu0 0
        %3751 = vmatprep.subr.bf16.mxu0 0
        %3752 = vmatpush1.bf16.msra.mxu0 0
        %3753 = vmatprep.subr.bf16.mxu0 0
        %3754 = vmatpush1.bf16.msra.mxu0 0
        %3755 = vmatprep.subr.bf16.mxu0 0
        %3756 = vmatpush1.bf16.msra.mxu0 0
        %3757 = vmatprep.subr.bf16.mxu0 0
        %3758 = vmatpush1.bf16.msra.mxu0 0
        %3759 = vmatprep.subr.bf16.mxu0 0
        %3760 = vmatpush1.bf16.msra.mxu0 0
        %3761 = vmatprep.subr.bf16.mxu0 0
        %3762 = vmatpush1.bf16.msra.mxu0 0
        %3763 = vmatprep.subr.bf16.mxu0 0
        %3764 = vmatpush1.bf16.msra.mxu0 0
        %3765 = vmatprep.subr.bf16.mxu0 0
        %3766 = vmatpush1.bf16.msra.mxu0 0
        %3767 = vmatprep.subr.bf16.mxu0 0
        %3768 = vmatpush1.bf16.msra.mxu0 0
        %3769 = vmatprep.mubr.bf16.mxu0 0
        %3770 = vmatmul.mubr.bf16.gmra.mrb[0].mxu0 %v3711
        %v3771 = vpop.f32.mrb[0].mxu0
        %v3772 = vadd.f32 0.0, %v3771
        %v3773 = vpop.f32.mrb[0].mxu0
        %v3774 = vpop.f32.mrb[0].mxu0
        %v3775 = vadd.f32 0.0, %v3774
        %v3776 = vpop.f32.mrb[0].mxu0
        %3777 = vmatprep.mubr.bf16.mxu0 0
        %3778 = vmatmul.mubr.bf16.gmra.mrb[0].mxu0 %v3714
        %v3779 = vpop.f32.mrb[0].mxu0
        %v3780 = vadd.f32 0.0, %v3779
        %v3781 = vpop.f32.mrb[0].mxu0
        %v3782 = vpop.f32.mrb[0].mxu0
        %v3783 = vadd.f32 0.0, %v3782
        %v3784 = vpop.f32.mrb[0].mxu0
        %3785 = vmatprep.mubr.bf16.mxu0 0
        %3786 = vmatmul.mubr.bf16.gmra.mrb[0].mxu0 %v3717
        %v3787 = vpop.f32.mrb[0].mxu0
        %v3788 = vadd.f32 0.0, %v3787
        %v3789 = vpop.f32.mrb[0].mxu0
        %v3790 = vpop.f32.mrb[0].mxu0
        %v3791 = vadd.f32 0.0, %v3790
        %v3792 = vpop.f32.mrb[0].mxu0
        %3793 = vmatprep.mubr.bf16.mxu0 0
        %3794 = vmatmul.mubr.bf16.gmra.mrb[0].mxu0 %v3720
        %v3795 = vpop.f32.mrb[0].mxu0
        %v3796 = vadd.f32 0.0, %v3795
        %v3797 = vpop.f32.mrb[0].mxu0
        %v3798 = vpop.f32.mrb[0].mxu0
        %v3799 = vadd.f32 0.0, %v3798
        %v3800 = vpop.f32.mrb[0].mxu0
        %3801 = vmatprep.mubr.bf16.mxu0 0
        %3802 = vmatmul.mubr.bf16.gmra.mrb[0].mxu0 %v3723
        %v3803 = vpop.f32.mrb[0].mxu0
        %v3804 = vadd.f32 0.0, %v3803
        %v3805 = vpop.f32.mrb[0].mxu0
        %v3806 = vpop.f32.mrb[0].mxu0
        %v3807 = vadd.f32 0.0, %v3806
        %v3808 = vpop.f32.mrb[0].mxu0
        %3809 = vmatprep.mubr.bf16.mxu0 0
        %3810 = vmatmul.mubr.bf16.gmra.mrb[0].mxu0 %v3726
        %v3811 = vpop.f32.mrb[0].mxu0
        %v3812 = vadd.f32 0.0, %v3811
        %v3813 = vpop.f32.mrb[0].mxu0
        %v3814 = vpop.f32.mrb[0].mxu0
        %v3815 = vadd.f32 0.0, %v3814
        %v3816 = vpop.f32.mrb[0].mxu0
        %3817 = vmatprep.mubr.bf16.mxu0 0
        %3818 = vmatmul.mubr.bf16.gmra.mrb[0].mxu0 %v3729
        %v3819 = vpop.f32.mrb[0].mxu0
        %v3820 = vadd.f32 0.0, %v3819
        %v3821 = vpop.f32.mrb[0].mxu0
        %v3822 = vpop.f32.mrb[0].mxu0
        %v3823 = vadd.f32 0.0, %v3822
        %v3824 = vpop.f32.mrb[0].mxu0
        %3825 = vmatprep.mubr.bf16.mxu0 0
        %3826 = vmatmul.mubr.bf16.gmra.mrb[0].mxu0 %v3732
        %v3827 = vpop.f32.mrb[0].mxu0
        %v3828 = vadd.f32 0.0, %v3827
        %v3829 = vpop.f32.mrb[0].mxu0
        %v3830 = vpop.f32.mrb[0].mxu0
        %v3831 = vadd.f32 0.0, %v3830
        %v3832 = vpop.f32.mrb[0].mxu0
        %3833 = vmatprep.mubr.bf16.mxu0 0
        %3834 = vmatmul.mubr.bf16.gmra.mrb[0].mxu0 %v3735
        %v3835 = vpop.f32.mrb[0].mxu0
        %v3836 = vadd.f32 0.0, %v3835
        %v3837 = vpop.f32.mrb[0].mxu0
        %v3838 = vpop.f32.mrb[0].mxu0
        %v3839 = vadd.f32 0.0, %v3838
        %v3840 = vpop.f32.mrb[0].mxu0
        %3841 = vdwg.mxu0
        %v3850 = vunpack.c.l.b16 %v3545
        %v3851 = vunpack.c.l.b16 %v3546
        %v3852 = vunpack.c.l.b16 %v3547
        %v3853 = vunpack.c.l.b16 %v3548
        %v3854 = vunpack.c.l.b16 %v3549
        %v3855 = vunpack.c.l.b16 %v3550
        %v3856 = vunpack.c.l.b16 %v3551
        %v3857 = vunpack.c.l.b16 %v3552
        %v3858 = vpack.c.b16 %v3851, %v3850
        %v3859 = vpack.c.b16 %v3853, %v3852
        %v3860 = vpack.c.b16 %v3855, %v3854
        %v3861 = vpack.c.b16 %v3857, %v3856
        %v3866 = vsel %vm1385, %v3600, 0
        %v3868 = vsel %vm1385, %v3601, 0
        %v3870 = vsel %vm1385, %v3602, 0
        %v3872 = vsel %vm1385, %v3603, 0
        %v3874 = vsel %vm1385, %v3604, 0
        %v3876 = vsel %vm1385, %v3605, 0
        %v3878 = vsel %vm1385, %v3606, 0
        %v3880 = vsel %vm1385, %v3607, 0
        %v3882 = vsel %vm1385, %v3608, 0
        %3884 = vmatprep.subr.bf16.mxu0 0
        %3885 = vmatpush1.bf16.msra.mxu0 %v3858
        %3886 = vmatprep.subr.bf16.mxu0 0
        %3887 = vmatpush1.bf16.msra.mxu0 %v3859
        %3888 = vmatprep.subr.bf16.mxu0 0
        %3889 = vmatpush1.bf16.msra.mxu0 %v3860
        %3890 = vmatprep.subr.bf16.mxu0 0
        %3891 = vmatpush1.bf16.msra.mxu0 %v3861
        %3892 = vmatprep.subr.bf16.mxu0 0
        %3893 = vmatpush1.bf16.msra.mxu0 0
        %3894 = vmatprep.subr.bf16.mxu0 0
        %3895 = vmatpush1.bf16.msra.mxu0 0
        %3896 = vmatprep.subr.bf16.mxu0 0
        %3897 = vmatpush1.bf16.msra.mxu0 0
        %3898 = vmatprep.subr.bf16.mxu0 0
        %3899 = vmatpush1.bf16.msra.mxu0 0
        %3900 = vmatprep.subr.bf16.mxu0 0
        %3901 = vmatpush1.bf16.msra.mxu0 0
        %3902 = vmatprep.subr.bf16.mxu0 0
        %3903 = vmatpush1.bf16.msra.mxu0 0
        %3904 = vmatprep.subr.bf16.mxu0 0
        %3905 = vmatpush1.bf16.msra.mxu0 0
        %3906 = vmatprep.subr.bf16.mxu0 0
        %3907 = vmatpush1.bf16.msra.mxu0 0
        %3908 = vmatprep.subr.bf16.mxu0 0
        %3909 = vmatpush1.bf16.msra.mxu0 0
        %3910 = vmatprep.subr.bf16.mxu0 0
        %3911 = vmatpush1.bf16.msra.mxu0 0
        %3912 = vmatprep.subr.bf16.mxu0 0
        %3913 = vmatpush1.bf16.msra.mxu0 0
        %3914 = vmatprep.subr.bf16.mxu0 0
        %3915 = vmatpush1.bf16.msra.mxu0 0
        %3916 = vmatprep.mubr.bf16.mxu0 0
        %3917 = vmatmul.mubr.bf16.gmra.mrb[0].mxu0 %v3866
        %v3918 = vpop.f32.mrb[0].mxu0
        %v3919 = vadd.f32 %v3772, %v3918
        %v3920 = vpop.f32.mrb[0].mxu0
        %v3921 = vpop.f32.mrb[0].mxu0
        %v3922 = vadd.f32 %v3775, %v3921
        %v3923 = vpop.f32.mrb[0].mxu0
        %3924 = vmatprep.mubr.bf16.mxu0 0
        %3925 = vmatmul.mubr.bf16.gmra.mrb[0].mxu0 %v3868
        %v3926 = vpop.f32.mrb[0].mxu0
        %v3927 = vadd.f32 %v3780, %v3926
        %v3928 = vpop.f32.mrb[0].mxu0
        %v3929 = vpop.f32.mrb[0].mxu0
        %v3930 = vadd.f32 %v3783, %v3929
        %v3931 = vpop.f32.mrb[0].mxu0
        %3932 = vmatprep.mubr.bf16.mxu0 0
        %3933 = vmatmul.mubr.bf16.gmra.mrb[0].mxu0 %v3870
        %v3934 = vpop.f32.mrb[0].mxu0
        %v3935 = vadd.f32 %v3788, %v3934
        %v3936 = vpop.f32.mrb[0].mxu0
        %v3937 = vpop.f32.mrb[0].mxu0
        %v3938 = vadd.f32 %v3791, %v3937
        %v3939 = vpop.f32.mrb[0].mxu0
        %3940 = vmatprep.mubr.bf16.mxu0 0
        %3941 = vmatmul.mubr.bf16.gmra.mrb[0].mxu0 %v3872
        %v3942 = vpop.f32.mrb[0].mxu0
        %v3943 = vadd.f32 %v3796, %v3942
        %v3944 = vpop.f32.mrb[0].mxu0
        %v3945 = vpop.f32.mrb[0].mxu0
        %v3946 = vadd.f32 %v3799, %v3945
        %v3947 = vpop.f32.mrb[0].mxu0
        %3948 = vmatprep.mubr.bf16.mxu0 0
        %3949 = vmatmul.mubr.bf16.gmra.mrb[0].mxu0 %v3874
        %v3950 = vpop.f32.mrb[0].mxu0
        %v3951 = vadd.f32 %v3804, %v3950
        %v3952 = vpop.f32.mrb[0].mxu0
        %v3953 = vpop.f32.mrb[0].mxu0
        %v3954 = vadd.f32 %v3807, %v3953
        %v3955 = vpop.f32.mrb[0].mxu0
        %3956 = vmatprep.mubr.bf16.mxu0 0
        %3957 = vmatmul.mubr.bf16.gmra.mrb[0].mxu0 %v3876
        %v3958 = vpop.f32.mrb[0].mxu0
        %v3959 = vadd.f32 %v3812, %v3958
        %v3960 = vpop.f32.mrb[0].mxu0
        %v3961 = vpop.f32.mrb[0].mxu0
        %v3962 = vadd.f32 %v3815, %v3961
        %v3963 = vpop.f32.mrb[0].mxu0
        %3964 = vmatprep.mubr.bf16.mxu0 0
        %3965 = vmatmul.mubr.bf16.gmra.mrb[0].mxu0 %v3878
        %v3966 = vpop.f32.mrb[0].mxu0
        %v3967 = vadd.f32 %v3820, %v3966
        %v3968 = vpop.f32.mrb[0].mxu0
        %v3969 = vpop.f32.mrb[0].mxu0
        %v3970 = vadd.f32 %v3823, %v3969
        %v3971 = vpop.f32.mrb[0].mxu0
        %3972 = vmatprep.mubr.bf16.mxu0 0
        %3973 = vmatmul.mubr.bf16.gmra.mrb[0].mxu0 %v3880
        %v3974 = vpop.f32.mrb[0].mxu0
        %v3975 = vadd.f32 %v3828, %v3974
        %v3976 = vpop.f32.mrb[0].mxu0
        %v3977 = vpop.f32.mrb[0].mxu0
        %v3978 = vadd.f32 %v3831, %v3977
        %v3979 = vpop.f32.mrb[0].mxu0
        %3980 = vmatprep.mubr.bf16.mxu0 0
        %3981 = vmatmul.mubr.bf16.gmra.mrb[0].mxu0 %v3882
        %v3982 = vpop.f32.mrb[0].mxu0
        %v3983 = vadd.f32 %v3836, %v3982
        %v3984 = vpop.f32.mrb[0].mxu0
        %v3985 = vpop.f32.mrb[0].mxu0
        %v3986 = vadd.f32 %v3839, %v3985
        %v3987 = vpop.f32.mrb[0].mxu0
        %3988 = vdwg.mxu0
        %v3989 = vld [vmem:[#allocation2 + $0x48] sm:$0xe]
        %v3990 = vld [vmem:[%s1666] sm:$0xf]
        %v3991 = vld [vmem:[%s1666 + $0x4] sm:$0xf]
        %v3992 = vld [vmem:[%s1666 + $0x8] sm:$0xf]
        %v3993 = vld [vmem:[%s1666 + $0xc] sm:$0xf]
        %v3994 = vld [vmem:[%s1666 + $0x10] sm:$0xf]
        %v3995 = vld [vmem:[%s1666 + $0x14] sm:$0xf]
        %v3996 = vld [vmem:[%s1666 + $0x18] sm:$0xf]
        %v3997 = vld [vmem:[%s1666 + $0x1c] sm:$0xf]
        %v3999 = vunpack.c.l.b16 %v3989
        %v4000 = vpack.c.b16 %v3582, %v3999
        %v4001 = vrot.slane %v4000, 1
        %v4002 = vrot.slane %v3601, 1
        %v4003 = vsel %vm1678, %v4001, %v4002
        %v4004 = vrot.slane %v3602, 1
        %v4005 = vsel %vm1678, %v4002, %v4004
        %v4006 = vrot.slane %v3603, 1
        %v4007 = vsel %vm1678, %v4004, %v4006
        %v4008 = vrot.slane %v3604, 1
        %v4009 = vsel %vm1678, %v4006, %v4008
        %v4010 = vrot.slane %v3605, 1
        %v4011 = vsel %vm1678, %v4008, %v4010
        %v4012 = vrot.slane %v3606, 1
        %v4013 = vsel %vm1678, %v4010, %v4012
        %v4014 = vrot.slane %v3607, 1
        %v4015 = vsel %vm1678, %v4012, %v4014
        %v4016 = vrot.slane %v3608, 1
        %v4017 = vsel %vm1678, %v4014, %v4016
        %v4018 = vrot.slane %v3609, 1
        %v4019 = vsel %vm1678, %v4016, %v4018
        %v4028 = vunpack.c.l.b16 %v3990
        %v4029 = vunpack.c.l.b16 %v3991
        %v4030 = vunpack.c.l.b16 %v3992
        %v4031 = vunpack.c.l.b16 %v3993
        %v4032 = vunpack.c.l.b16 %v3994
        %v4033 = vunpack.c.l.b16 %v3995
        %v4034 = vunpack.c.l.b16 %v3996
        %v4035 = vunpack.c.l.b16 %v3997
        %v4036 = vpack.c.b16 %v4029, %v4028
        %v4037 = vpack.c.b16 %v4031, %v4030
        %v4038 = vpack.c.b16 %v4033, %v4032
        %v4039 = vpack.c.b16 %v4035, %v4034
        %v4045 = vsel %vm1385, %v4003, 0
        %v4048 = vsel %vm1385, %v4005, 0
        %v4051 = vsel %vm1385, %v4007, 0
        %v4054 = vsel %vm1385, %v4009, 0
        %v4057 = vsel %vm1385, %v4011, 0
        %v4060 = vsel %vm1385, %v4013, 0
        %v4063 = vsel %vm1385, %v4015, 0
        %v4066 = vsel %vm1385, %v4017, 0
        %v4069 = vsel %vm1385, %v4019, 0
        %4071 = vmatprep.subr.bf16.mxu0 0
        %4072 = vmatpush1.bf16.msra.mxu0 %v4036
        %4073 = vmatprep.subr.bf16.mxu0 0
        %4074 = vmatpush1.bf16.msra.mxu0 %v4037
        %4075 = vmatprep.subr.bf16.mxu0 0
        %4076 = vmatpush1.bf16.msra.mxu0 %v4038
        %4077 = vmatprep.subr.bf16.mxu0 0
        %4078 = vmatpush1.bf16.msra.mxu0 %v4039
        %4079 = vmatprep.subr.bf16.mxu0 0
        %4080 = vmatpush1.bf16.msra.mxu0 0
        %4081 = vmatprep.subr.bf16.mxu0 0
        %4082 = vmatpush1.bf16.msra.mxu0 0
        %4083 = vmatprep.subr.bf16.mxu0 0
        %4084 = vmatpush1.bf16.msra.mxu0 0
        %4085 = vmatprep.subr.bf16.mxu0 0
        %4086 = vmatpush1.bf16.msra.mxu0 0
        %4087 = vmatprep.subr.bf16.mxu0 0
        %4088 = vmatpush1.bf16.msra.mxu0 0
        %4089 = vmatprep.subr.bf16.mxu0 0
        %4090 = vmatpush1.bf16.msra.mxu0 0
        %4091 = vmatprep.subr.bf16.mxu0 0
        %4092 = vmatpush1.bf16.msra.mxu0 0
        %4093 = vmatprep.subr.bf16.mxu0 0
        %4094 = vmatpush1.bf16.msra.mxu0 0
        %4095 = vmatprep.subr.bf16.mxu0 0
        %4096 = vmatpush1.bf16.msra.mxu0 0
        %4097 = vmatprep.subr.bf16.mxu0 0
        %4098 = vmatpush1.bf16.msra.mxu0 0
        %4099 = vmatprep.subr.bf16.mxu0 0
        %4100 = vmatpush1.bf16.msra.mxu0 0
        %4101 = vmatprep.subr.bf16.mxu0 0
        %4102 = vmatpush1.bf16.msra.mxu0 0
        %4103 = vmatprep.mubr.bf16.mxu0 0
        %4104 = vmatmul.mubr.bf16.gmra.mrb[0].mxu0 %v4045
        %v4105 = vpop.f32.mrb[0].mxu0
        %v4106 = vadd.f32 0.0, %v4105
        %v4107 = vpop.f32.mrb[0].mxu0
        %v4108 = vpop.f32.mrb[0].mxu0
        %v4109 = vadd.f32 0.0, %v4108
        %v4110 = vpop.f32.mrb[0].mxu0
        %4111 = vmatprep.mubr.bf16.mxu0 0
        %4112 = vmatmul.mubr.bf16.gmra.mrb[0].mxu0 %v4048
        %v4113 = vpop.f32.mrb[0].mxu0
        %v4114 = vadd.f32 0.0, %v4113
        %v4115 = vpop.f32.mrb[0].mxu0
        %v4116 = vpop.f32.mrb[0].mxu0
        %v4117 = vadd.f32 0.0, %v4116
        %v4118 = vpop.f32.mrb[0].mxu0
        %4119 = vmatprep.mubr.bf16.mxu0 0
        %4120 = vmatmul.mubr.bf16.gmra.mrb[0].mxu0 %v4051
        %v4121 = vpop.f32.mrb[0].mxu0
        %v4122 = vadd.f32 0.0, %v4121
        %v4123 = vpop.f32.mrb[0].mxu0
        %v4124 = vpop.f32.mrb[0].mxu0
        %v4125 = vadd.f32 0.0, %v4124
        %v4126 = vpop.f32.mrb[0].mxu0
        %4127 = vmatprep.mubr.bf16.mxu0 0
        %4128 = vmatmul.mubr.bf16.gmra.mrb[0].mxu0 %v4054
        %v4129 = vpop.f32.mrb[0].mxu0
        %v4130 = vadd.f32 0.0, %v4129
        %v4131 = vpop.f32.mrb[0].mxu0
        %v4132 = vpop.f32.mrb[0].mxu0
        %v4133 = vadd.f32 0.0, %v4132
        %v4134 = vpop.f32.mrb[0].mxu0
        %4135 = vmatprep.mubr.bf16.mxu0 0
        %4136 = vmatmul.mubr.bf16.gmra.mrb[0].mxu0 %v4057
        %v4137 = vpop.f32.mrb[0].mxu0
        %v4138 = vadd.f32 0.0, %v4137
        %v4139 = vpop.f32.mrb[0].mxu0
        %v4140 = vpop.f32.mrb[0].mxu0
        %v4141 = vadd.f32 0.0, %v4140
        %v4142 = vpop.f32.mrb[0].mxu0
        %4143 = vmatprep.mubr.bf16.mxu0 0
        %4144 = vmatmul.mubr.bf16.gmra.mrb[0].mxu0 %v4060
        %v4145 = vpop.f32.mrb[0].mxu0
        %v4146 = vadd.f32 0.0, %v4145
        %v4147 = vpop.f32.mrb[0].mxu0
        %v4148 = vpop.f32.mrb[0].mxu0
        %v4149 = vadd.f32 0.0, %v4148
        %v4150 = vpop.f32.mrb[0].mxu0
        %4151 = vmatprep.mubr.bf16.mxu0 0
        %4152 = vmatmul.mubr.bf16.gmra.mrb[0].mxu0 %v4063
        %v4153 = vpop.f32.mrb[0].mxu0
        %v4154 = vadd.f32 0.0, %v4153
        %v4155 = vpop.f32.mrb[0].mxu0
        %v4156 = vpop.f32.mrb[0].mxu0
        %v4157 = vadd.f32 0.0, %v4156
        %v4158 = vpop.f32.mrb[0].mxu0
        %4159 = vmatprep.mubr.bf16.mxu0 0
        %4160 = vmatmul.mubr.bf16.gmra.mrb[0].mxu0 %v4066
        %v4161 = vpop.f32.mrb[0].mxu0
        %v4162 = vadd.f32 0.0, %v4161
        %v4163 = vpop.f32.mrb[0].mxu0
        %v4164 = vpop.f32.mrb[0].mxu0
        %v4165 = vadd.f32 0.0, %v4164
        %v4166 = vpop.f32.mrb[0].mxu0
        %4167 = vmatprep.mubr.bf16.mxu0 0
        %4168 = vmatmul.mubr.bf16.gmra.mrb[0].mxu0 %v4069
        %v4169 = vpop.f32.mrb[0].mxu0
        %v4170 = vadd.f32 0.0, %v4169
        %v4171 = vpop.f32.mrb[0].mxu0
        %v4172 = vpop.f32.mrb[0].mxu0
        %v4173 = vadd.f32 0.0, %v4172
        %v4174 = vpop.f32.mrb[0].mxu0
        %4175 = vdwg.mxu0
        %v4176 = vadd.f32 %v3919, %v4106
        %v4177 = vadd.f32 %v3922, %v4109
        %v4178 = vadd.f32 %v3927, %v4114
        %v4179 = vadd.f32 %v3930, %v4117
        %v4180 = vadd.f32 %v3935, %v4122
        %v4181 = vadd.f32 %v3938, %v4125
        %v4182 = vadd.f32 %v3943, %v4130
        %v4183 = vadd.f32 %v3946, %v4133
        %v4184 = vadd.f32 %v3951, %v4138
        %v4185 = vadd.f32 %v3954, %v4141
        %v4186 = vadd.f32 %v3959, %v4146
        %v4187 = vadd.f32 %v3962, %v4149
        %v4188 = vadd.f32 %v3967, %v4154
        %v4189 = vadd.f32 %v3970, %v4157
        %v4190 = vadd.f32 %v3975, %v4162
        %v4191 = vadd.f32 %v3978, %v4165
        %v4192 = vadd.f32 %v3983, %v4170
        %v4193 = vadd.f32 %v3986, %v4173
        %v4194 = vld [vmem:[#allocation2 + $0x50] sm:$0xe]
        %v4195 = vld [vmem:[#allocation2 + $0x54] sm:$0xf]
        %v4196 = vld [vmem:[#allocation2 + $0x58] sm:$0xf]
        %v4197 = vld [vmem:[#allocation2 + $0x5c] sm:$0xf]
        %v4198 = vld [vmem:[#allocation2 + $0x60] sm:$0xf]
        %v4199 = vld [vmem:[#allocation2 + $0x64] sm:$0xf]
        %v4200 = vld [vmem:[#allocation2 + $0x68] sm:$0xf]
        %v4201 = vld [vmem:[#allocation2 + $0x6c] sm:$0xf]
        %v4202 = vld [vmem:[#allocation2 + $0x70] sm:$0xf]
        %v4203 = vld [vmem:[#allocation2 + $0x74] sm:$0xf]
        %v4204 = vld [vmem:[#allocation2 + $0x78] sm:$0xf]
        %v4205 = vld [vmem:[#allocation2 + $0x7c] sm:$0xf]
        %v4206 = vld [vmem:[#allocation2 + $0x80] sm:$0xf]
        %v4207 = vld [vmem:[#allocation2 + $0x84] sm:$0xf]
        %v4208 = vld [vmem:[#allocation2 + $0x88] sm:$0xf]
        %v4209 = vld [vmem:[#allocation2 + $0x8c] sm:$0xf]
        %v4210 = vld [vmem:[#allocation2 + $0x90] sm:$0xf]
        %v4211 = vld [vmem:[#allocation2 + $0x94] sm:$0xf]
        %v4212 = vld [vmem:[#allocation2 + $0x98] sm:$0x1]
        %v4213 = vld [vmem:[%s1891] sm:$0xf]
        %v4214 = vld [vmem:[%s1891 + $0x4] sm:$0xf]
        %v4215 = vld [vmem:[%s1891 + $0x8] sm:$0xf]
        %v4216 = vld [vmem:[%s1891 + $0xc] sm:$0xf]
        %v4217 = vld [vmem:[%s1891 + $0x10] sm:$0xf]
        %v4218 = vld [vmem:[%s1891 + $0x14] sm:$0xf]
        %v4219 = vld [vmem:[%s1891 + $0x18] sm:$0xf]
        %v4220 = vld [vmem:[%s1891 + $0x1c] sm:$0xf]
        %v4240 = vunpack.c.l.b16 %v4194
        %v4241 = vunpack.c.l.b16 %v4195
        %v4242 = vunpack.c.l.b16 %v4196
        %v4243 = vunpack.c.l.b16 %v4197
        %v4244 = vunpack.c.l.b16 %v4198
        %v4245 = vunpack.c.l.b16 %v4199
        %v4246 = vunpack.c.l.b16 %v4200
        %v4247 = vunpack.c.l.b16 %v4201
        %v4248 = vunpack.c.l.b16 %v4202
        %v4249 = vunpack.c.l.b16 %v4203
        %v4250 = vunpack.c.l.b16 %v4204
        %v4251 = vunpack.c.l.b16 %v4205
        %v4252 = vunpack.c.l.b16 %v4206
        %v4253 = vunpack.c.l.b16 %v4207
        %v4254 = vunpack.c.l.b16 %v4208
        %v4255 = vunpack.c.l.b16 %v4209
        %v4256 = vunpack.c.l.b16 %v4210
        %v4257 = vunpack.c.l.b16 %v4211
        %v4258 = vunpack.c.l.b16 %v4212
        %v4259 = vpack.c.b16 %v4241, %v4240
        %v4260 = vpack.c.b16 %v4243, %v4242
        %v4261 = vpack.c.b16 %v4245, %v4244
        %v4262 = vpack.c.b16 %v4247, %v4246
        %v4263 = vpack.c.b16 %v4249, %v4248
        %v4264 = vpack.c.b16 %v4251, %v4250
        %v4265 = vpack.c.b16 %v4253, %v4252
        %v4266 = vpack.c.b16 %v4255, %v4254
        %v4267 = vpack.c.b16 %v4257, %v4256
        %v4268 = vpack.c.b16 %v4258, %v4258
        %v4269 = vrot.slane %v4259, 1
        %v4270 = vrot.slane %v4260, 1
        %v4271 = vsel %vm1678, %v4269, %v4270
        %v4272 = vrot.slane %v4261, 1
        %v4273 = vsel %vm1678, %v4270, %v4272
        %v4274 = vrot.slane %v4262, 1
        %v4275 = vsel %vm1678, %v4272, %v4274
        %v4276 = vrot.slane %v4263, 1
        %v4277 = vsel %vm1678, %v4274, %v4276
        %v4278 = vrot.slane %v4264, 1
        %v4279 = vsel %vm1678, %v4276, %v4278
        %v4280 = vrot.slane %v4265, 1
        %v4281 = vsel %vm1678, %v4278, %v4280
        %v4282 = vrot.slane %v4266, 1
        %v4283 = vsel %vm1678, %v4280, %v4282
        %v4284 = vrot.slane %v4267, 1
        %v4285 = vsel %vm1678, %v4282, %v4284
        %v4286 = vrot.slane %v4268, 1
        %v4287 = vsel %vm1678, %v4284, %v4286
        %v4296 = vunpack.c.l.b16 %v4213
        %v4297 = vunpack.c.l.b16 %v4214
        %v4298 = vunpack.c.l.b16 %v4215
        %v4299 = vunpack.c.l.b16 %v4216
        %v4300 = vunpack.c.l.b16 %v4217
        %v4301 = vunpack.c.l.b16 %v4218
        %v4302 = vunpack.c.l.b16 %v4219
        %v4303 = vunpack.c.l.b16 %v4220
        %v4304 = vpack.c.b16 %v4297, %v4296
        %v4305 = vpack.c.b16 %v4299, %v4298
        %v4306 = vpack.c.b16 %v4301, %v4300
        %v4307 = vpack.c.b16 %v4303, %v4302
        %v4313 = vsel %vm1385, %v4271, 0
        %v4316 = vsel %vm1385, %v4273, 0
        %v4319 = vsel %vm1385, %v4275, 0
        %v4322 = vsel %vm1385, %v4277, 0
        %v4325 = vsel %vm1385, %v4279, 0
        %v4328 = vsel %vm1385, %v4281, 0
        %v4331 = vsel %vm1385, %v4283, 0
        %v4334 = vsel %vm1385, %v4285, 0
        %v4337 = vsel %vm1385, %v4287, 0
        %4339 = vmatprep.subr.bf16.mxu0 0
        %4340 = vmatpush1.bf16.msra.mxu0 %v4304
        %4341 = vmatprep.subr.bf16.mxu0 0
        %4342 = vmatpush1.bf16.msra.mxu0 %v4305
        %4343 = vmatprep.subr.bf16.mxu0 0
        %4344 = vmatpush1.bf16.msra.mxu0 %v4306
        %4345 = vmatprep.subr.bf16.mxu0 0
        %4346 = vmatpush1.bf16.msra.mxu0 %v4307
        %4347 = vmatprep.subr.bf16.mxu0 0
        %4348 = vmatpush1.bf16.msra.mxu0 0
        %4349 = vmatprep.subr.bf16.mxu0 0
        %4350 = vmatpush1.bf16.msra.mxu0 0
        %4351 = vmatprep.subr.bf16.mxu0 0
        %4352 = vmatpush1.bf16.msra.mxu0 0
        %4353 = vmatprep.subr.bf16.mxu0 0
        %4354 = vmatpush1.bf16.msra.mxu0 0
        %4355 = vmatprep.subr.bf16.mxu0 0
        %4356 = vmatpush1.bf16.msra.mxu0 0
        %4357 = vmatprep.subr.bf16.mxu0 0
        %4358 = vmatpush1.bf16.msra.mxu0 0
        %4359 = vmatprep.subr.bf16.mxu0 0
        %4360 = vmatpush1.bf16.msra.mxu0 0
        %4361 = vmatprep.subr.bf16.mxu0 0
        %4362 = vmatpush1.bf16.msra.mxu0 0
        %4363 = vmatprep.subr.bf16.mxu0 0
        %4364 = vmatpush1.bf16.msra.mxu0 0
        %4365 = vmatprep.subr.bf16.mxu0 0
        %4366 = vmatpush1.bf16.msra.mxu0 0
        %4367 = vmatprep.subr.bf16.mxu0 0
        %4368 = vmatpush1.bf16.msra.mxu0 0
        %4369 = vmatprep.subr.bf16.mxu0 0
        %4370 = vmatpush1.bf16.msra.mxu0 0
        %4371 = vmatprep.mubr.bf16.mxu0 0
        %4372 = vmatmul.mubr.bf16.gmra.mrb[0].mxu0 %v4313
        %v4373 = vpop.f32.mrb[0].mxu0
        %v4374 = vadd.f32 0.0, %v4373
        %v4375 = vpop.f32.mrb[0].mxu0
        %v4376 = vpop.f32.mrb[0].mxu0
        %v4377 = vadd.f32 0.0, %v4376
        %v4378 = vpop.f32.mrb[0].mxu0
        %4379 = vmatprep.mubr.bf16.mxu0 0
        %4380 = vmatmul.mubr.bf16.gmra.mrb[0].mxu0 %v4316
        %v4381 = vpop.f32.mrb[0].mxu0
        %v4382 = vadd.f32 0.0, %v4381
        %v4383 = vpop.f32.mrb[0].mxu0
        %v4384 = vpop.f32.mrb[0].mxu0
        %v4385 = vadd.f32 0.0, %v4384
        %v4386 = vpop.f32.mrb[0].mxu0
        %4387 = vmatprep.mubr.bf16.mxu0 0
        %4388 = vmatmul.mubr.bf16.gmra.mrb[0].mxu0 %v4319
        %v4389 = vpop.f32.mrb[0].mxu0
        %v4390 = vadd.f32 0.0, %v4389
        %v4391 = vpop.f32.mrb[0].mxu0
        %v4392 = vpop.f32.mrb[0].mxu0
        %v4393 = vadd.f32 0.0, %v4392
        %v4394 = vpop.f32.mrb[0].mxu0
        %4395 = vmatprep.mubr.bf16.mxu0 0
        %4396 = vmatmul.mubr.bf16.gmra.mrb[0].mxu0 %v4322
        %v4397 = vpop.f32.mrb[0].mxu0
        %v4398 = vadd.f32 0.0, %v4397
        %v4399 = vpop.f32.mrb[0].mxu0
        %v4400 = vpop.f32.mrb[0].mxu0
        %v4401 = vadd.f32 0.0, %v4400
        %v4402 = vpop.f32.mrb[0].mxu0
        %4403 = vmatprep.mubr.bf16.mxu0 0
        %4404 = vmatmul.mubr.bf16.gmra.mrb[0].mxu0 %v4325
        %v4405 = vpop.f32.mrb[0].mxu0
        %v4406 = vadd.f32 0.0, %v4405
        %v4407 = vpop.f32.mrb[0].mxu0
        %v4408 = vpop.f32.mrb[0].mxu0
        %v4409 = vadd.f32 0.0, %v4408
        %v4410 = vpop.f32.mrb[0].mxu0
        %4411 = vmatprep.mubr.bf16.mxu0 0
        %4412 = vmatmul.mubr.bf16.gmra.mrb[0].mxu0 %v4328
        %v4413 = vpop.f32.mrb[0].mxu0
        %v4414 = vadd.f32 0.0, %v4413
        %v4415 = vpop.f32.mrb[0].mxu0
        %v4416 = vpop.f32.mrb[0].mxu0
        %v4417 = vadd.f32 0.0, %v4416
        %v4418 = vpop.f32.mrb[0].mxu0
        %4419 = vmatprep.mubr.bf16.mxu0 0
        %4420 = vmatmul.mubr.bf16.gmra.mrb[0].mxu0 %v4331
        %v4421 = vpop.f32.mrb[0].mxu0
        %v4422 = vadd.f32 0.0, %v4421
        %v4423 = vpop.f32.mrb[0].mxu0
        %v4424 = vpop.f32.mrb[0].mxu0
        %v4425 = vadd.f32 0.0, %v4424
        %v4426 = vpop.f32.mrb[0].mxu0
        %4427 = vmatprep.mubr.bf16.mxu0 0
        %4428 = vmatmul.mubr.bf16.gmra.mrb[0].mxu0 %v4334
        %v4429 = vpop.f32.mrb[0].mxu0
        %v4430 = vadd.f32 0.0, %v4429
        %v4431 = vpop.f32.mrb[0].mxu0
        %v4432 = vpop.f32.mrb[0].mxu0
        %v4433 = vadd.f32 0.0, %v4432
        %v4434 = vpop.f32.mrb[0].mxu0
        %4435 = vmatprep.mubr.bf16.mxu0 0
        %4436 = vmatmul.mubr.bf16.gmra.mrb[0].mxu0 %v4337
        %v4437 = vpop.f32.mrb[0].mxu0
        %v4438 = vadd.f32 0.0, %v4437
        %v4439 = vpop.f32.mrb[0].mxu0
        %v4440 = vpop.f32.mrb[0].mxu0
        %v4441 = vadd.f32 0.0, %v4440
        %v4442 = vpop.f32.mrb[0].mxu0
        %4443 = vdwg.mxu0
        %v4444 = vadd.f32 %v4176, %v4374
        %v4445 = vadd.f32 %v4177, %v4377
        %v4446 = vadd.f32 %v4178, %v4382
        %v4447 = vadd.f32 %v4179, %v4385
        %v4448 = vadd.f32 %v4180, %v4390
        %v4449 = vadd.f32 %v4181, %v4393
        %v4450 = vadd.f32 %v4182, %v4398
        %v4451 = vadd.f32 %v4183, %v4401
        %v4452 = vadd.f32 %v4184, %v4406
        %v4453 = vadd.f32 %v4185, %v4409
        %v4454 = vadd.f32 %v4186, %v4414
        %v4455 = vadd.f32 %v4187, %v4417
        %v4456 = vadd.f32 %v4188, %v4422
        %v4457 = vadd.f32 %v4189, %v4425
        %v4458 = vadd.f32 %v4190, %v4430
        %v4459 = vadd.f32 %v4191, %v4433
        %v4460 = vadd.f32 %v4192, %v4438
        %v4461 = vadd.f32 %v4193, %v4441
        %v4462 = vld [vmem:[#allocation2 + $0x98] sm:$0x3]
        %v4463 = vld [vmem:[%s2142] sm:$0xf]
        %v4464 = vld [vmem:[%s2142 + $0x4] sm:$0xf]
        %v4465 = vld [vmem:[%s2142 + $0x8] sm:$0xf]
        %v4466 = vld [vmem:[%s2142 + $0xc] sm:$0xf]
        %v4467 = vld [vmem:[%s2142 + $0x10] sm:$0xf]
        %v4468 = vld [vmem:[%s2142 + $0x14] sm:$0xf]
        %v4469 = vld [vmem:[%s2142 + $0x18] sm:$0xf]
        %v4470 = vld [vmem:[%s2142 + $0x1c] sm:$0xf]
        %v4472 = vunpack.c.l.b16 %v4462
        %v4473 = vpack.c.b16 %v4472, %v4472
        %v4475 = vshrl.u32 %v4259, 16
        %v4477 = vrot.slane %v4475, 1
        %v4478 = vshll.u32 %v4259, 16
        %v4480 = vrot.slane %v4478, 2
        %v4481 = vor.u32 %v4477, %v4480
        %v4483 = vshrl.u32 %v4260, 16
        %v4485 = vrot.slane %v4483, 1
        %v4486 = vshll.u32 %v4260, 16
        %v4488 = vrot.slane %v4486, 2
        %v4489 = vor.u32 %v4485, %v4488
        %v4490 = vsel %vm2154, %v4481, %v4489
        %v4492 = vshrl.u32 %v4261, 16
        %v4494 = vrot.slane %v4492, 1
        %v4495 = vshll.u32 %v4261, 16
        %v4497 = vrot.slane %v4495, 2
        %v4498 = vor.u32 %v4494, %v4497
        %v4499 = vsel %vm2154, %v4489, %v4498
        %v4501 = vshrl.u32 %v4262, 16
        %v4503 = vrot.slane %v4501, 1
        %v4504 = vshll.u32 %v4262, 16
        %v4506 = vrot.slane %v4504, 2
        %v4507 = vor.u32 %v4503, %v4506
        %v4508 = vsel %vm2154, %v4498, %v4507
        %v4510 = vshrl.u32 %v4263, 16
        %v4512 = vrot.slane %v4510, 1
        %v4513 = vshll.u32 %v4263, 16
        %v4515 = vrot.slane %v4513, 2
        %v4516 = vor.u32 %v4512, %v4515
        %v4517 = vsel %vm2154, %v4507, %v4516
        %v4519 = vshrl.u32 %v4264, 16
        %v4521 = vrot.slane %v4519, 1
        %v4522 = vshll.u32 %v4264, 16
        %v4524 = vrot.slane %v4522, 2
        %v4525 = vor.u32 %v4521, %v4524
        %v4526 = vsel %vm2154, %v4516, %v4525
        %v4528 = vshrl.u32 %v4265, 16
        %v4530 = vrot.slane %v4528, 1
        %v4531 = vshll.u32 %v4265, 16
        %v4533 = vrot.slane %v4531, 2
        %v4534 = vor.u32 %v4530, %v4533
        %v4535 = vsel %vm2154, %v4525, %v4534
        %v4537 = vshrl.u32 %v4266, 16
        %v4539 = vrot.slane %v4537, 1
        %v4540 = vshll.u32 %v4266, 16
        %v4542 = vrot.slane %v4540, 2
        %v4543 = vor.u32 %v4539, %v4542
        %v4544 = vsel %vm2154, %v4534, %v4543
        %v4546 = vshrl.u32 %v4267, 16
        %v4548 = vrot.slane %v4546, 1
        %v4549 = vshll.u32 %v4267, 16
        %v4551 = vrot.slane %v4549, 2
        %v4552 = vor.u32 %v4548, %v4551
        %v4553 = vsel %vm2154, %v4543, %v4552
        %v4555 = vshrl.u32 %v4473, 16
        %v4557 = vrot.slane %v4555, 1
        %v4558 = vshll.u32 %v4473, 16
        %v4560 = vrot.slane %v4558, 2
        %v4561 = vor.u32 %v4557, %v4560
        %v4562 = vsel %vm2154, %v4552, %v4561
        %v4571 = vunpack.c.l.b16 %v4463
        %v4572 = vunpack.c.l.b16 %v4464
        %v4573 = vunpack.c.l.b16 %v4465
        %v4574 = vunpack.c.l.b16 %v4466
        %v4575 = vunpack.c.l.b16 %v4467
        %v4576 = vunpack.c.l.b16 %v4468
        %v4577 = vunpack.c.l.b16 %v4469
        %v4578 = vunpack.c.l.b16 %v4470
        %v4579 = vpack.c.b16 %v4572, %v4571
        %v4580 = vpack.c.b16 %v4574, %v4573
        %v4581 = vpack.c.b16 %v4576, %v4575
        %v4582 = vpack.c.b16 %v4578, %v4577
        %v4588 = vsel %vm1385, %v4490, 0
        %v4591 = vsel %vm1385, %v4499, 0
        %v4594 = vsel %vm1385, %v4508, 0
        %v4597 = vsel %vm1385, %v4517, 0
        %v4600 = vsel %vm1385, %v4526, 0
        %v4603 = vsel %vm1385, %v4535, 0
        %v4606 = vsel %vm1385, %v4544, 0
        %v4609 = vsel %vm1385, %v4553, 0
        %v4612 = vsel %vm1385, %v4562, 0
        %4614 = vmatprep.subr.bf16.mxu0 0
        %4615 = vmatpush1.bf16.msra.mxu0 %v4579
        %4616 = vmatprep.subr.bf16.mxu0 0
        %4617 = vmatpush1.bf16.msra.mxu0 %v4580
        %4618 = vmatprep.subr.bf16.mxu0 0
        %4619 = vmatpush1.bf16.msra.mxu0 %v4581
        %4620 = vmatprep.subr.bf16.mxu0 0
        %4621 = vmatpush1.bf16.msra.mxu0 %v4582
        %4622 = vmatprep.subr.bf16.mxu0 0
        %4623 = vmatpush1.bf16.msra.mxu0 0
        %4624 = vmatprep.subr.bf16.mxu0 0
        %4625 = vmatpush1.bf16.msra.mxu0 0
        %4626 = vmatprep.subr.bf16.mxu0 0
        %4627 = vmatpush1.bf16.msra.mxu0 0
        %4628 = vmatprep.subr.bf16.mxu0 0
        %4629 = vmatpush1.bf16.msra.mxu0 0
        %4630 = vmatprep.subr.bf16.mxu0 0
        %4631 = vmatpush1.bf16.msra.mxu0 0
        %4632 = vmatprep.subr.bf16.mxu0 0
        %4633 = vmatpush1.bf16.msra.mxu0 0
        %4634 = vmatprep.subr.bf16.mxu0 0
        %4635 = vmatpush1.bf16.msra.mxu0 0
        %4636 = vmatprep.subr.bf16.mxu0 0
        %4637 = vmatpush1.bf16.msra.mxu0 0
        %4638 = vmatprep.subr.bf16.mxu0 0
        %4639 = vmatpush1.bf16.msra.mxu0 0
        %4640 = vmatprep.subr.bf16.mxu0 0
        %4641 = vmatpush1.bf16.msra.mxu0 0
        %4642 = vmatprep.subr.bf16.mxu0 0
        %4643 = vmatpush1.bf16.msra.mxu0 0
        %4644 = vmatprep.subr.bf16.mxu0 0
        %4645 = vmatpush1.bf16.msra.mxu0 0
        %4646 = vmatprep.mubr.bf16.mxu0 0
        %4647 = vmatmul.mubr.bf16.gmra.mrb[0].mxu0 %v4588
        %v4648 = vpop.f32.mrb[0].mxu0
        %v4649 = vadd.f32 0.0, %v4648
        %v4650 = vpop.f32.mrb[0].mxu0
        %v4651 = vpop.f32.mrb[0].mxu0
        %v4652 = vadd.f32 0.0, %v4651
        %v4653 = vpop.f32.mrb[0].mxu0
        %4654 = vmatprep.mubr.bf16.mxu0 0
        %4655 = vmatmul.mubr.bf16.gmra.mrb[0].mxu0 %v4591
        %v4656 = vpop.f32.mrb[0].mxu0
        %v4657 = vadd.f32 0.0, %v4656
        %v4658 = vpop.f32.mrb[0].mxu0
        %v4659 = vpop.f32.mrb[0].mxu0
        %v4660 = vadd.f32 0.0, %v4659
        %v4661 = vpop.f32.mrb[0].mxu0
        %4662 = vmatprep.mubr.bf16.mxu0 0
        %4663 = vmatmul.mubr.bf16.gmra.mrb[0].mxu0 %v4594
        %v4664 = vpop.f32.mrb[0].mxu0
        %v4665 = vadd.f32 0.0, %v4664
        %v4666 = vpop.f32.mrb[0].mxu0
        %v4667 = vpop.f32.mrb[0].mxu0
        %v4668 = vadd.f32 0.0, %v4667
        %v4669 = vpop.f32.mrb[0].mxu0
        %4670 = vmatprep.mubr.bf16.mxu0 0
        %4671 = vmatmul.mubr.bf16.gmra.mrb[0].mxu0 %v4597
        %v4672 = vpop.f32.mrb[0].mxu0
        %v4673 = vadd.f32 0.0, %v4672
        %v4674 = vpop.f32.mrb[0].mxu0
        %v4675 = vpop.f32.mrb[0].mxu0
        %v4676 = vadd.f32 0.0, %v4675
        %v4677 = vpop.f32.mrb[0].mxu0
        %4678 = vmatprep.mubr.bf16.mxu0 0
        %4679 = vmatmul.mubr.bf16.gmra.mrb[0].mxu0 %v4600
        %v4680 = vpop.f32.mrb[0].mxu0
        %v4681 = vadd.f32 0.0, %v4680
        %v4682 = vpop.f32.mrb[0].mxu0
        %v4683 = vpop.f32.mrb[0].mxu0
        %v4684 = vadd.f32 0.0, %v4683
        %v4685 = vpop.f32.mrb[0].mxu0
        %4686 = vmatprep.mubr.bf16.mxu0 0
        %4687 = vmatmul.mubr.bf16.gmra.mrb[0].mxu0 %v4603
        %v4688 = vpop.f32.mrb[0].mxu0
        %v4689 = vadd.f32 0.0, %v4688
        %v4690 = vpop.f32.mrb[0].mxu0
        %v4691 = vpop.f32.mrb[0].mxu0
        %v4692 = vadd.f32 0.0, %v4691
        %v4693 = vpop.f32.mrb[0].mxu0
        %4694 = vmatprep.mubr.bf16.mxu0 0
        %4695 = vmatmul.mubr.bf16.gmra.mrb[0].mxu0 %v4606
        %v4696 = vpop.f32.mrb[0].mxu0
        %v4697 = vadd.f32 0.0, %v4696
        %v4698 = vpop.f32.mrb[0].mxu0
        %v4699 = vpop.f32.mrb[0].mxu0
        %v4700 = vadd.f32 0.0, %v4699
        %v4701 = vpop.f32.mrb[0].mxu0
        %4702 = vmatprep.mubr.bf16.mxu0 0
        %4703 = vmatmul.mubr.bf16.gmra.mrb[0].mxu0 %v4609
        %v4704 = vpop.f32.mrb[0].mxu0
        %v4705 = vadd.f32 0.0, %v4704
        %v4706 = vpop.f32.mrb[0].mxu0
        %v4707 = vpop.f32.mrb[0].mxu0
        %v4708 = vadd.f32 0.0, %v4707
        %v4709 = vpop.f32.mrb[0].mxu0
        %4710 = vmatprep.mubr.bf16.mxu0 0
        %4711 = vmatmul.mubr.bf16.gmra.mrb[0].mxu0 %v4612
        %v4712 = vpop.f32.mrb[0].mxu0
        %v4713 = vadd.f32 0.0, %v4712
        %v4714 = vpop.f32.mrb[0].mxu0
        %v4715 = vpop.f32.mrb[0].mxu0
        %v4716 = vadd.f32 0.0, %v4715
        %v4717 = vpop.f32.mrb[0].mxu0
        %4718 = vdwg.mxu0
        %v4719 = vadd.f32 %v4444, %v4649
        %v4720 = vadd.f32 %v4445, %v4652
        %v4721 = vadd.f32 %v4446, %v4657
        %v4722 = vadd.f32 %v4447, %v4660
        %v4723 = vadd.f32 %v4448, %v4665
        %v4724 = vadd.f32 %v4449, %v4668
        %v4725 = vadd.f32 %v4450, %v4673
        %v4726 = vadd.f32 %v4451, %v4676
        %v4727 = vadd.f32 %v4452, %v4681
        %v4728 = vadd.f32 %v4453, %v4684
        %v4729 = vadd.f32 %v4454, %v4689
        %v4730 = vadd.f32 %v4455, %v4692
        %v4731 = vadd.f32 %v4456, %v4697
        %v4732 = vadd.f32 %v4457, %v4700
        %v4733 = vadd.f32 %v4458, %v4705
        %v4734 = vadd.f32 %v4459, %v4708
        %v4735 = vadd.f32 %v4460, %v4713
        %v4736 = vadd.f32 %v4461, %v4716
        %v4737 = vld [vmem:[#allocation2 + $0x50] sm:$0xc]
        %v4738 = vld [vmem:[%s2419] sm:$0xf]
        %v4739 = vld [vmem:[%s2419 + $0x4] sm:$0xf]
        %v4740 = vld [vmem:[%s2419 + $0x8] sm:$0xf]
        %v4741 = vld [vmem:[%s2419 + $0xc] sm:$0xf]
        %v4742 = vld [vmem:[%s2419 + $0x10] sm:$0xf]
        %v4743 = vld [vmem:[%s2419 + $0x14] sm:$0xf]
        %v4744 = vld [vmem:[%s2419 + $0x18] sm:$0xf]
        %v4745 = vld [vmem:[%s2419 + $0x1c] sm:$0xf]
        %v4747 = vunpack.c.l.b16 %v4737
        %v4748 = vpack.c.b16 %v4241, %v4747
        %v4749 = vrot.slane %v4748, 2
        %v4750 = vrot.slane %v4260, 2
        %v4751 = vsel %vm2431, %v4749, %v4750
        %v4752 = vrot.slane %v4261, 2
        %v4753 = vsel %vm2431, %v4750, %v4752
        %v4754 = vrot.slane %v4262, 2
        %v4755 = vsel %vm2431, %v4752, %v4754
        %v4756 = vrot.slane %v4263, 2
        %v4757 = vsel %vm2431, %v4754, %v4756
        %v4758 = vrot.slane %v4264, 2
        %v4759 = vsel %vm2431, %v4756, %v4758
        %v4760 = vrot.slane %v4265, 2
        %v4761 = vsel %vm2431, %v4758, %v4760
        %v4762 = vrot.slane %v4266, 2
        %v4763 = vsel %vm2431, %v4760, %v4762
        %v4764 = vrot.slane %v4267, 2
        %v4765 = vsel %vm2431, %v4762, %v4764
        %v4766 = vrot.slane %v4473, 2
        %v4767 = vsel %vm2431, %v4764, %v4766
        %v4776 = vunpack.c.l.b16 %v4738
        %v4777 = vunpack.c.l.b16 %v4739
        %v4778 = vunpack.c.l.b16 %v4740
        %v4779 = vunpack.c.l.b16 %v4741
        %v4780 = vunpack.c.l.b16 %v4742
        %v4781 = vunpack.c.l.b16 %v4743
        %v4782 = vunpack.c.l.b16 %v4744
        %v4783 = vunpack.c.l.b16 %v4745
        %v4784 = vpack.c.b16 %v4777, %v4776
        %v4785 = vpack.c.b16 %v4779, %v4778
        %v4786 = vpack.c.b16 %v4781, %v4780
        %v4787 = vpack.c.b16 %v4783, %v4782
        %v4793 = vsel %vm1385, %v4751, 0
        %v4796 = vsel %vm1385, %v4753, 0
        %v4799 = vsel %vm1385, %v4755, 0
        %v4802 = vsel %vm1385, %v4757, 0
        %v4805 = vsel %vm1385, %v4759, 0
        %v4808 = vsel %vm1385, %v4761, 0
        %v4811 = vsel %vm1385, %v4763, 0
        %v4814 = vsel %vm1385, %v4765, 0
        %v4817 = vsel %vm1385, %v4767, 0
        %4819 = vmatprep.subr.bf16.mxu0 0
        %4820 = vmatpush1.bf16.msra.mxu0 %v4784
        %4821 = vmatprep.subr.bf16.mxu0 0
        %4822 = vmatpush1.bf16.msra.mxu0 %v4785
        %4823 = vmatprep.subr.bf16.mxu0 0
        %4824 = vmatpush1.bf16.msra.mxu0 %v4786
        %4825 = vmatprep.subr.bf16.mxu0 0
        %4826 = vmatpush1.bf16.msra.mxu0 %v4787
        %4827 = vmatprep.subr.bf16.mxu0 0
        %4828 = vmatpush1.bf16.msra.mxu0 0
        %4829 = vmatprep.subr.bf16.mxu0 0
        %4830 = vmatpush1.bf16.msra.mxu0 0
        %4831 = vmatprep.subr.bf16.mxu0 0
        %4832 = vmatpush1.bf16.msra.mxu0 0
        %4833 = vmatprep.subr.bf16.mxu0 0
        %4834 = vmatpush1.bf16.msra.mxu0 0
        %4835 = vmatprep.subr.bf16.mxu0 0
        %4836 = vmatpush1.bf16.msra.mxu0 0
        %4837 = vmatprep.subr.bf16.mxu0 0
        %4838 = vmatpush1.bf16.msra.mxu0 0
        %4839 = vmatprep.subr.bf16.mxu0 0
        %4840 = vmatpush1.bf16.msra.mxu0 0
        %4841 = vmatprep.subr.bf16.mxu0 0
        %4842 = vmatpush1.bf16.msra.mxu0 0
        %4843 = vmatprep.subr.bf16.mxu0 0
        %4844 = vmatpush1.bf16.msra.mxu0 0
        %4845 = vmatprep.subr.bf16.mxu0 0
        %4846 = vmatpush1.bf16.msra.mxu0 0
        %4847 = vmatprep.subr.bf16.mxu0 0
        %4848 = vmatpush1.bf16.msra.mxu0 0
        %4849 = vmatprep.subr.bf16.mxu0 0
        %4850 = vmatpush1.bf16.msra.mxu0 0
        %4851 = vmatprep.mubr.bf16.mxu0 0
        %4852 = vmatmul.mubr.bf16.gmra.mrb[0].mxu0 %v4793
        %v4853 = vpop.f32.mrb[0].mxu0
        %v4854 = vadd.f32 0.0, %v4853
        %v4855 = vpop.f32.mrb[0].mxu0
        %v4856 = vpop.f32.mrb[0].mxu0
        %v4857 = vadd.f32 0.0, %v4856
        %v4858 = vpop.f32.mrb[0].mxu0
        %4859 = vmatprep.mubr.bf16.mxu0 0
        %4860 = vmatmul.mubr.bf16.gmra.mrb[0].mxu0 %v4796
        %v4861 = vpop.f32.mrb[0].mxu0
        %v4862 = vadd.f32 0.0, %v4861
        %v4863 = vpop.f32.mrb[0].mxu0
        %v4864 = vpop.f32.mrb[0].mxu0
        %v4865 = vadd.f32 0.0, %v4864
        %v4866 = vpop.f32.mrb[0].mxu0
        %4867 = vmatprep.mubr.bf16.mxu0 0
        %4868 = vmatmul.mubr.bf16.gmra.mrb[0].mxu0 %v4799
        %v4869 = vpop.f32.mrb[0].mxu0
        %v4870 = vadd.f32 0.0, %v4869
        %v4871 = vpop.f32.mrb[0].mxu0
        %v4872 = vpop.f32.mrb[0].mxu0
        %v4873 = vadd.f32 0.0, %v4872
        %v4874 = vpop.f32.mrb[0].mxu0
        %4875 = vmatprep.mubr.bf16.mxu0 0
        %4876 = vmatmul.mubr.bf16.gmra.mrb[0].mxu0 %v4802
        %v4877 = vpop.f32.mrb[0].mxu0
        %v4878 = vadd.f32 0.0, %v4877
        %v4879 = vpop.f32.mrb[0].mxu0
        %v4880 = vpop.f32.mrb[0].mxu0
        %v4881 = vadd.f32 0.0, %v4880
        %v4882 = vpop.f32.mrb[0].mxu0
        %4883 = vmatprep.mubr.bf16.mxu0 0
        %4884 = vmatmul.mubr.bf16.gmra.mrb[0].mxu0 %v4805
        %v4885 = vpop.f32.mrb[0].mxu0
        %v4886 = vadd.f32 0.0, %v4885
        %v4887 = vpop.f32.mrb[0].mxu0
        %v4888 = vpop.f32.mrb[0].mxu0
        %v4889 = vadd.f32 0.0, %v4888
        %v4890 = vpop.f32.mrb[0].mxu0
        %4891 = vmatprep.mubr.bf16.mxu0 0
        %4892 = vmatmul.mubr.bf16.gmra.mrb[0].mxu0 %v4808
        %v4893 = vpop.f32.mrb[0].mxu0
        %v4894 = vadd.f32 0.0, %v4893
        %v4895 = vpop.f32.mrb[0].mxu0
        %v4896 = vpop.f32.mrb[0].mxu0
        %v4897 = vadd.f32 0.0, %v4896
        %v4898 = vpop.f32.mrb[0].mxu0
        %4899 = vmatprep.mubr.bf16.mxu0 0
        %4900 = vmatmul.mubr.bf16.gmra.mrb[0].mxu0 %v4811
        %v4901 = vpop.f32.mrb[0].mxu0
        %v4902 = vadd.f32 0.0, %v4901
        %v4903 = vpop.f32.mrb[0].mxu0
        %v4904 = vpop.f32.mrb[0].mxu0
        %v4905 = vadd.f32 0.0, %v4904
        %v4906 = vpop.f32.mrb[0].mxu0
        %4907 = vmatprep.mubr.bf16.mxu0 0
        %4908 = vmatmul.mubr.bf16.gmra.mrb[0].mxu0 %v4814
        %v4909 = vpop.f32.mrb[0].mxu0
        %v4910 = vadd.f32 0.0, %v4909
        %v4911 = vpop.f32.mrb[0].mxu0
        %v4912 = vpop.f32.mrb[0].mxu0
        %v4913 = vadd.f32 0.0, %v4912
        %v4914 = vpop.f32.mrb[0].mxu0
        %4915 = vmatprep.mubr.bf16.mxu0 0
        %4916 = vmatmul.mubr.bf16.gmra.mrb[0].mxu0 %v4817
        %v4917 = vpop.f32.mrb[0].mxu0
        %v4918 = vadd.f32 0.0, %v4917
        %v4919 = vpop.f32.mrb[0].mxu0
        %v4920 = vpop.f32.mrb[0].mxu0
        %v4921 = vadd.f32 0.0, %v4920
        %v4922 = vpop.f32.mrb[0].mxu0
        %4923 = vdwg.mxu0
        %v4924 = vadd.f32 %v4719, %v4854
        %v4925 = vadd.f32 %v4720, %v4857
        %v4926 = vadd.f32 %v4721, %v4862
        %v4927 = vadd.f32 %v4722, %v4865
        %v4928 = vadd.f32 %v4723, %v4870
        %v4929 = vadd.f32 %v4724, %v4873
        %v4930 = vadd.f32 %v4725, %v4878
        %v4931 = vadd.f32 %v4726, %v4881
        %v4932 = vadd.f32 %v4727, %v4886
        %v4933 = vadd.f32 %v4728, %v4889
        %v4934 = vadd.f32 %v4729, %v4894
        %v4935 = vadd.f32 %v4730, %v4897
        %v4936 = vadd.f32 %v4731, %v4902
        %v4937 = vadd.f32 %v4732, %v4905
        %v4938 = vadd.f32 %v4733, %v4910
        %v4939 = vadd.f32 %v4734, %v4913
        %v4940 = vadd.f32 %v4735, %v4918
        %v4941 = vadd.f32 %v4736, %v4921
        %v4942 = vld [vmem:[#allocation2 + $0x58] sm:$0xc]
        %v4943 = vld [vmem:[#allocation2 + $0x5c] sm:$0xf]
        %v4944 = vld [vmem:[#allocation2 + $0x60] sm:$0xf]
        %v4945 = vld [vmem:[#allocation2 + $0x64] sm:$0xf]
        %v4946 = vld [vmem:[#allocation2 + $0x68] sm:$0xf]
        %v4947 = vld [vmem:[#allocation2 + $0x6c] sm:$0xf]
        %v4948 = vld [vmem:[#allocation2 + $0x70] sm:$0xf]
        %v4949 = vld [vmem:[#allocation2 + $0x74] sm:$0xf]
        %v4950 = vld [vmem:[#allocation2 + $0x78] sm:$0xf]
        %v4951 = vld [vmem:[#allocation2 + $0x7c] sm:$0xf]
        %v4952 = vld [vmem:[#allocation2 + $0x80] sm:$0xf]
        %v4953 = vld [vmem:[#allocation2 + $0x84] sm:$0xf]
        %v4954 = vld [vmem:[#allocation2 + $0x88] sm:$0xf]
        %v4955 = vld [vmem:[#allocation2 + $0x8c] sm:$0xf]
        %v4956 = vld [vmem:[#allocation2 + $0x90] sm:$0xf]
        %v4957 = vld [vmem:[#allocation2 + $0x94] sm:$0xf]
        %v4958 = vld [vmem:[#allocation2 + $0x98] sm:$0xf]
        %v4959 = vld [vmem:[#allocation2 + $0x9c] sm:$0xf]
        %v4960 = vld [vmem:[#allocation2 + $0xa0] sm:$0x3]
        %v4961 = vld [vmem:[%s2644] sm:$0xf]
        %v4962 = vld [vmem:[%s2644 + $0x4] sm:$0xf]
        %v4963 = vld [vmem:[%s2644 + $0x8] sm:$0xf]
        %v4964 = vld [vmem:[%s2644 + $0xc] sm:$0xf]
        %v4965 = vld [vmem:[%s2644 + $0x10] sm:$0xf]
        %v4966 = vld [vmem:[%s2644 + $0x14] sm:$0xf]
        %v4967 = vld [vmem:[%s2644 + $0x18] sm:$0xf]
        %v4968 = vld [vmem:[%s2644 + $0x1c] sm:$0xf]
        %v4988 = vunpack.c.l.b16 %v4942
        %v4989 = vunpack.c.l.b16 %v4943
        %v4990 = vunpack.c.l.b16 %v4944
        %v4991 = vunpack.c.l.b16 %v4945
        %v4992 = vunpack.c.l.b16 %v4946
        %v4993 = vunpack.c.l.b16 %v4947
        %v4994 = vunpack.c.l.b16 %v4948
        %v4995 = vunpack.c.l.b16 %v4949
        %v4996 = vunpack.c.l.b16 %v4950
        %v4997 = vunpack.c.l.b16 %v4951
        %v4998 = vunpack.c.l.b16 %v4952
        %v4999 = vunpack.c.l.b16 %v4953
        %v5000 = vunpack.c.l.b16 %v4954
        %v5001 = vunpack.c.l.b16 %v4955
        %v5002 = vunpack.c.l.b16 %v4956
        %v5003 = vunpack.c.l.b16 %v4957
        %v5004 = vunpack.c.l.b16 %v4958
        %v5005 = vunpack.c.l.b16 %v4959
        %v5006 = vunpack.c.l.b16 %v4960
        %v5007 = vpack.c.b16 %v4989, %v4988
        %v5008 = vpack.c.b16 %v4991, %v4990
        %v5009 = vpack.c.b16 %v4993, %v4992
        %v5010 = vpack.c.b16 %v4995, %v4994
        %v5011 = vpack.c.b16 %v4997, %v4996
        %v5012 = vpack.c.b16 %v4999, %v4998
        %v5013 = vpack.c.b16 %v5001, %v5000
        %v5014 = vpack.c.b16 %v5003, %v5002
        %v5015 = vpack.c.b16 %v5005, %v5004
        %v5016 = vpack.c.b16 %v5006, %v5006
        %v5017 = vrot.slane %v5007, 2
        %v5018 = vrot.slane %v5008, 2
        %v5019 = vsel %vm2431, %v5017, %v5018
        %v5020 = vrot.slane %v5009, 2
        %v5021 = vsel %vm2431, %v5018, %v5020
        %v5022 = vrot.slane %v5010, 2
        %v5023 = vsel %vm2431, %v5020, %v5022
        %v5024 = vrot.slane %v5011, 2
        %v5025 = vsel %vm2431, %v5022, %v5024
        %v5026 = vrot.slane %v5012, 2
        %v5027 = vsel %vm2431, %v5024, %v5026
        %v5028 = vrot.slane %v5013, 2
        %v5029 = vsel %vm2431, %v5026, %v5028
        %v5030 = vrot.slane %v5014, 2
        %v5031 = vsel %vm2431, %v5028, %v5030
        %v5032 = vrot.slane %v5015, 2
        %v5033 = vsel %vm2431, %v5030, %v5032
        %v5034 = vrot.slane %v5016, 2
        %v5035 = vsel %vm2431, %v5032, %v5034
        %v5044 = vunpack.c.l.b16 %v4961
        %v5045 = vunpack.c.l.b16 %v4962
        %v5046 = vunpack.c.l.b16 %v4963
        %v5047 = vunpack.c.l.b16 %v4964
        %v5048 = vunpack.c.l.b16 %v4965
        %v5049 = vunpack.c.l.b16 %v4966
        %v5050 = vunpack.c.l.b16 %v4967
        %v5051 = vunpack.c.l.b16 %v4968
        %v5052 = vpack.c.b16 %v5045, %v5044
        %v5053 = vpack.c.b16 %v5047, %v5046
        %v5054 = vpack.c.b16 %v5049, %v5048
        %v5055 = vpack.c.b16 %v5051, %v5050
        %v5061 = vsel %vm1385, %v5019, 0
        %v5064 = vsel %vm1385, %v5021, 0
        %v5067 = vsel %vm1385, %v5023, 0
        %v5070 = vsel %vm1385, %v5025, 0
        %v5073 = vsel %vm1385, %v5027, 0
        %v5076 = vsel %vm1385, %v5029, 0
        %v5079 = vsel %vm1385, %v5031, 0
        %v5082 = vsel %vm1385, %v5033, 0
        %v5085 = vsel %vm1385, %v5035, 0
        %5087 = vmatprep.subr.bf16.mxu0 0
        %5088 = vmatpush1.bf16.msra.mxu0 %v5052
        %5089 = vmatprep.subr.bf16.mxu0 0
        %5090 = vmatpush1.bf16.msra.mxu0 %v5053
        %5091 = vmatprep.subr.bf16.mxu0 0
        %5092 = vmatpush1.bf16.msra.mxu0 %v5054
        %5093 = vmatprep.subr.bf16.mxu0 0
        %5094 = vmatpush1.bf16.msra.mxu0 %v5055
        %5095 = vmatprep.subr.bf16.mxu0 0
        %5096 = vmatpush1.bf16.msra.mxu0 0
        %5097 = vmatprep.subr.bf16.mxu0 0
        %5098 = vmatpush1.bf16.msra.mxu0 0
        %5099 = vmatprep.subr.bf16.mxu0 0
        %5100 = vmatpush1.bf16.msra.mxu0 0
        %5101 = vmatprep.subr.bf16.mxu0 0
        %5102 = vmatpush1.bf16.msra.mxu0 0
        %5103 = vmatprep.subr.bf16.mxu0 0
        %5104 = vmatpush1.bf16.msra.mxu0 0
        %5105 = vmatprep.subr.bf16.mxu0 0
        %5106 = vmatpush1.bf16.msra.mxu0 0
        %5107 = vmatprep.subr.bf16.mxu0 0
        %5108 = vmatpush1.bf16.msra.mxu0 0
        %5109 = vmatprep.subr.bf16.mxu0 0
        %5110 = vmatpush1.bf16.msra.mxu0 0
        %5111 = vmatprep.subr.bf16.mxu0 0
        %5112 = vmatpush1.bf16.msra.mxu0 0
        %5113 = vmatprep.subr.bf16.mxu0 0
        %5114 = vmatpush1.bf16.msra.mxu0 0
        %5115 = vmatprep.subr.bf16.mxu0 0
        %5116 = vmatpush1.bf16.msra.mxu0 0
        %5117 = vmatprep.subr.bf16.mxu0 0
        %5118 = vmatpush1.bf16.msra.mxu0 0
        %5119 = vmatprep.mubr.bf16.mxu0 0
        %5120 = vmatmul.mubr.bf16.gmra.mrb[0].mxu0 %v5061
        %v5121 = vpop.f32.mrb[0].mxu0
        %v5122 = vadd.f32 0.0, %v5121
        %v5123 = vpop.f32.mrb[0].mxu0
        %v5124 = vpop.f32.mrb[0].mxu0
        %v5125 = vadd.f32 0.0, %v5124
        %v5126 = vpop.f32.mrb[0].mxu0
        %5127 = vmatprep.mubr.bf16.mxu0 0
        %5128 = vmatmul.mubr.bf16.gmra.mrb[0].mxu0 %v5064
        %v5129 = vpop.f32.mrb[0].mxu0
        %v5130 = vadd.f32 0.0, %v5129
        %v5131 = vpop.f32.mrb[0].mxu0
        %v5132 = vpop.f32.mrb[0].mxu0
        %v5133 = vadd.f32 0.0, %v5132
        %v5134 = vpop.f32.mrb[0].mxu0
        %5135 = vmatprep.mubr.bf16.mxu0 0
        %5136 = vmatmul.mubr.bf16.gmra.mrb[0].mxu0 %v5067
        %v5137 = vpop.f32.mrb[0].mxu0
        %v5138 = vadd.f32 0.0, %v5137
        %v5139 = vpop.f32.mrb[0].mxu0
        %v5140 = vpop.f32.mrb[0].mxu0
        %v5141 = vadd.f32 0.0, %v5140
        %v5142 = vpop.f32.mrb[0].mxu0
        %5143 = vmatprep.mubr.bf16.mxu0 0
        %5144 = vmatmul.mubr.bf16.gmra.mrb[0].mxu0 %v5070
        %v5145 = vpop.f32.mrb[0].mxu0
        %v5146 = vadd.f32 0.0, %v5145
        %v5147 = vpop.f32.mrb[0].mxu0
        %v5148 = vpop.f32.mrb[0].mxu0
        %v5149 = vadd.f32 0.0, %v5148
        %v5150 = vpop.f32.mrb[0].mxu0
        %5151 = vmatprep.mubr.bf16.mxu0 0
        %5152 = vmatmul.mubr.bf16.gmra.mrb[0].mxu0 %v5073
        %v5153 = vpop.f32.mrb[0].mxu0
        %v5154 = vadd.f32 0.0, %v5153
        %v5155 = vpop.f32.mrb[0].mxu0
        %v5156 = vpop.f32.mrb[0].mxu0
        %v5157 = vadd.f32 0.0, %v5156
        %v5158 = vpop.f32.mrb[0].mxu0
        %5159 = vmatprep.mubr.bf16.mxu0 0
        %5160 = vmatmul.mubr.bf16.gmra.mrb[0].mxu0 %v5076
        %v5161 = vpop.f32.mrb[0].mxu0
        %v5162 = vadd.f32 0.0, %v5161
        %v5163 = vpop.f32.mrb[0].mxu0
        %v5164 = vpop.f32.mrb[0].mxu0
        %v5165 = vadd.f32 0.0, %v5164
        %v5166 = vpop.f32.mrb[0].mxu0
        %5167 = vmatprep.mubr.bf16.mxu0 0
        %5168 = vmatmul.mubr.bf16.gmra.mrb[0].mxu0 %v5079
        %v5169 = vpop.f32.mrb[0].mxu0
        %v5170 = vadd.f32 0.0, %v5169
        %v5171 = vpop.f32.mrb[0].mxu0
        %v5172 = vpop.f32.mrb[0].mxu0
        %v5173 = vadd.f32 0.0, %v5172
        %v5174 = vpop.f32.mrb[0].mxu0
        %5175 = vmatprep.mubr.bf16.mxu0 0
        %5176 = vmatmul.mubr.bf16.gmra.mrb[0].mxu0 %v5082
        %v5177 = vpop.f32.mrb[0].mxu0
        %v5178 = vadd.f32 0.0, %v5177
        %v5179 = vpop.f32.mrb[0].mxu0
        %v5180 = vpop.f32.mrb[0].mxu0
        %v5181 = vadd.f32 0.0, %v5180
        %v5182 = vpop.f32.mrb[0].mxu0
        %5183 = vmatprep.mubr.bf16.mxu0 0
        %5184 = vmatmul.mubr.bf16.gmra.mrb[0].mxu0 %v5085
        %v5185 = vpop.f32.mrb[0].mxu0
        %v5186 = vadd.f32 0.0, %v5185
        %v5187 = vpop.f32.mrb[0].mxu0
        %v5188 = vpop.f32.mrb[0].mxu0
        %v5189 = vadd.f32 0.0, %v5188
        %v5190 = vpop.f32.mrb[0].mxu0
        %5191 = vdwg.mxu0
        %v5192 = vadd.f32 %v4924, %v5122
        %v5193 = vadd.f32 %v4925, %v5125
        %v5194 = vadd.f32 %v4926, %v5130
        %v5195 = vadd.f32 %v4927, %v5133
        %v5196 = vadd.f32 %v4928, %v5138
        %v5197 = vadd.f32 %v4929, %v5141
        %v5198 = vadd.f32 %v4930, %v5146
        %v5199 = vadd.f32 %v4931, %v5149
        %v5200 = vadd.f32 %v4932, %v5154
        %v5201 = vadd.f32 %v4933, %v5157
        %v5202 = vadd.f32 %v4934, %v5162
        %v5203 = vadd.f32 %v4935, %v5165
        %v5204 = vadd.f32 %v4936, %v5170
        %v5205 = vadd.f32 %v4937, %v5173
        %v5206 = vadd.f32 %v4938, %v5178
        %v5207 = vadd.f32 %v4939, %v5181
        %v5208 = vadd.f32 %v4940, %v5186
        %v5209 = vadd.f32 %v4941, %v5189
        %v5210 = vld [vmem:[#allocation2 + $0xa0] sm:$0x7]
        %v5211 = vld [vmem:[%s2895] sm:$0xf]
        %v5212 = vld [vmem:[%s2895 + $0x4] sm:$0xf]
        %v5213 = vld [vmem:[%s2895 + $0x8] sm:$0xf]
        %v5214 = vld [vmem:[%s2895 + $0xc] sm:$0xf]
        %v5215 = vld [vmem:[%s2895 + $0x10] sm:$0xf]
        %v5216 = vld [vmem:[%s2895 + $0x14] sm:$0xf]
        %v5217 = vld [vmem:[%s2895 + $0x18] sm:$0xf]
        %v5218 = vld [vmem:[%s2895 + $0x1c] sm:$0xf]
        %v5220 = vunpack.c.l.b16 %v5210
        %v5221 = vpack.c.b16 %v5220, %v5220
        %v5223 = vshrl.u32 %v5007, 16
        %v5225 = vrot.slane %v5223, 2
        %v5226 = vshll.u32 %v5007, 16
        %v5228 = vrot.slane %v5226, 3
        %v5229 = vor.u32 %v5225, %v5228
        %v5231 = vshrl.u32 %v5008, 16
        %v5233 = vrot.slane %v5231, 2
        %v5234 = vshll.u32 %v5008, 16
        %v5236 = vrot.slane %v5234, 3
        %v5237 = vor.u32 %v5233, %v5236
        %v5238 = vsel %vm2907, %v5229, %v5237
        %v5240 = vshrl.u32 %v5009, 16
        %v5242 = vrot.slane %v5240, 2
        %v5243 = vshll.u32 %v5009, 16
        %v5245 = vrot.slane %v5243, 3
        %v5246 = vor.u32 %v5242, %v5245
        %v5247 = vsel %vm2907, %v5237, %v5246
        %v5249 = vshrl.u32 %v5010, 16
        %v5251 = vrot.slane %v5249, 2
        %v5252 = vshll.u32 %v5010, 16
        %v5254 = vrot.slane %v5252, 3
        %v5255 = vor.u32 %v5251, %v5254
        %v5256 = vsel %vm2907, %v5246, %v5255
        %v5258 = vshrl.u32 %v5011, 16
        %v5260 = vrot.slane %v5258, 2
        %v5261 = vshll.u32 %v5011, 16
        %v5263 = vrot.slane %v5261, 3
        %v5264 = vor.u32 %v5260, %v5263
        %v5265 = vsel %vm2907, %v5255, %v5264
        %v5267 = vshrl.u32 %v5012, 16
        %v5269 = vrot.slane %v5267, 2
        %v5270 = vshll.u32 %v5012, 16
        %v5272 = vrot.slane %v5270, 3
        %v5273 = vor.u32 %v5269, %v5272
        %v5274 = vsel %vm2907, %v5264, %v5273
        %v5276 = vshrl.u32 %v5013, 16
        %v5278 = vrot.slane %v5276, 2
        %v5279 = vshll.u32 %v5013, 16
        %v5281 = vrot.slane %v5279, 3
        %v5282 = vor.u32 %v5278, %v5281
        %v5283 = vsel %vm2907, %v5273, %v5282
        %v5285 = vshrl.u32 %v5014, 16
        %v5287 = vrot.slane %v5285, 2
        %v5288 = vshll.u32 %v5014, 16
        %v5290 = vrot.slane %v5288, 3
        %v5291 = vor.u32 %v5287, %v5290
        %v5292 = vsel %vm2907, %v5282, %v5291
        %v5294 = vshrl.u32 %v5015, 16
        %v5296 = vrot.slane %v5294, 2
        %v5297 = vshll.u32 %v5015, 16
        %v5299 = vrot.slane %v5297, 3
        %v5300 = vor.u32 %v5296, %v5299
        %v5301 = vsel %vm2907, %v5291, %v5300
        %v5303 = vshrl.u32 %v5221, 16
        %v5305 = vrot.slane %v5303, 2
        %v5306 = vshll.u32 %v5221, 16
        %v5308 = vrot.slane %v5306, 3
        %v5309 = vor.u32 %v5305, %v5308
        %v5310 = vsel %vm2907, %v5300, %v5309
        %v5319 = vunpack.c.l.b16 %v5211
        %v5320 = vunpack.c.l.b16 %v5212
        %v5321 = vunpack.c.l.b16 %v5213
        %v5322 = vunpack.c.l.b16 %v5214
        %v5323 = vunpack.c.l.b16 %v5215
        %v5324 = vunpack.c.l.b16 %v5216
        %v5325 = vunpack.c.l.b16 %v5217
        %v5326 = vunpack.c.l.b16 %v5218
        %v5327 = vpack.c.b16 %v5320, %v5319
        %v5328 = vpack.c.b16 %v5322, %v5321
        %v5329 = vpack.c.b16 %v5324, %v5323
        %v5330 = vpack.c.b16 %v5326, %v5325
        %v5336 = vsel %vm1385, %v5238, 0
        %v5339 = vsel %vm1385, %v5247, 0
        %v5342 = vsel %vm1385, %v5256, 0
        %v5345 = vsel %vm1385, %v5265, 0
        %v5348 = vsel %vm1385, %v5274, 0
        %v5351 = vsel %vm1385, %v5283, 0
        %v5354 = vsel %vm1385, %v5292, 0
        %v5357 = vsel %vm1385, %v5301, 0
        %v5360 = vsel %vm1385, %v5310, 0
        %5362 = vmatprep.subr.bf16.mxu0 0
        %5363 = vmatpush1.bf16.msra.mxu0 %v5327
        %5364 = vmatprep.subr.bf16.mxu0 0
        %5365 = vmatpush1.bf16.msra.mxu0 %v5328
        %5366 = vmatprep.subr.bf16.mxu0 0
        %5367 = vmatpush1.bf16.msra.mxu0 %v5329
        %5368 = vmatprep.subr.bf16.mxu0 0
        %5369 = vmatpush1.bf16.msra.mxu0 %v5330
        %5370 = vmatprep.subr.bf16.mxu0 0
        %5371 = vmatpush1.bf16.msra.mxu0 0
        %5372 = vmatprep.subr.bf16.mxu0 0
        %5373 = vmatpush1.bf16.msra.mxu0 0
        %5374 = vmatprep.subr.bf16.mxu0 0
        %5375 = vmatpush1.bf16.msra.mxu0 0
        %5376 = vmatprep.subr.bf16.mxu0 0
        %5377 = vmatpush1.bf16.msra.mxu0 0
        %5378 = vmatprep.subr.bf16.mxu0 0
        %5379 = vmatpush1.bf16.msra.mxu0 0
        %5380 = vmatprep.subr.bf16.mxu0 0
        %5381 = vmatpush1.bf16.msra.mxu0 0
        %5382 = vmatprep.subr.bf16.mxu0 0
        %5383 = vmatpush1.bf16.msra.mxu0 0
        %5384 = vmatprep.subr.bf16.mxu0 0
        %5385 = vmatpush1.bf16.msra.mxu0 0
        %5386 = vmatprep.subr.bf16.mxu0 0
        %5387 = vmatpush1.bf16.msra.mxu0 0
        %5388 = vmatprep.subr.bf16.mxu0 0
        %5389 = vmatpush1.bf16.msra.mxu0 0
        %5390 = vmatprep.subr.bf16.mxu0 0
        %5391 = vmatpush1.bf16.msra.mxu0 0
        %5392 = vmatprep.subr.bf16.mxu0 0
        %5393 = vmatpush1.bf16.msra.mxu0 0
        %5394 = vmatprep.mubr.bf16.mxu0 0
        %5395 = vmatmul.mubr.bf16.gmra.mrb[0].mxu0 %v5336
        %v5396 = vpop.f32.mrb[0].mxu0
        %v5397 = vadd.f32 0.0, %v5396
        %v5398 = vpop.f32.mrb[0].mxu0
        %v5399 = vpop.f32.mrb[0].mxu0
        %v5400 = vadd.f32 0.0, %v5399
        %v5401 = vpop.f32.mrb[0].mxu0
        %5402 = vmatprep.mubr.bf16.mxu0 0
        %5403 = vmatmul.mubr.bf16.gmra.mrb[0].mxu0 %v5339
        %v5404 = vpop.f32.mrb[0].mxu0
        %v5405 = vadd.f32 0.0, %v5404
        %v5406 = vpop.f32.mrb[0].mxu0
        %v5407 = vpop.f32.mrb[0].mxu0
        %v5408 = vadd.f32 0.0, %v5407
        %v5409 = vpop.f32.mrb[0].mxu0
        %5410 = vmatprep.mubr.bf16.mxu0 0
        %5411 = vmatmul.mubr.bf16.gmra.mrb[0].mxu0 %v5342
        %v5412 = vpop.f32.mrb[0].mxu0
        %v5413 = vadd.f32 0.0, %v5412
        %v5414 = vpop.f32.mrb[0].mxu0
        %v5415 = vpop.f32.mrb[0].mxu0
        %v5416 = vadd.f32 0.0, %v5415
        %v5417 = vpop.f32.mrb[0].mxu0
        %5418 = vmatprep.mubr.bf16.mxu0 0
        %5419 = vmatmul.mubr.bf16.gmra.mrb[0].mxu0 %v5345
        %v5420 = vpop.f32.mrb[0].mxu0
        %v5421 = vadd.f32 0.0, %v5420
        %v5422 = vpop.f32.mrb[0].mxu0
        %v5423 = vpop.f32.mrb[0].mxu0
        %v5424 = vadd.f32 0.0, %v5423
        %v5425 = vpop.f32.mrb[0].mxu0
        %5426 = vmatprep.mubr.bf16.mxu0 0
        %5427 = vmatmul.mubr.bf16.gmra.mrb[0].mxu0 %v5348
        %v5428 = vpop.f32.mrb[0].mxu0
        %v5429 = vadd.f32 0.0, %v5428
        %v5430 = vpop.f32.mrb[0].mxu0
        %v5431 = vpop.f32.mrb[0].mxu0
        %v5432 = vadd.f32 0.0, %v5431
        %v5433 = vpop.f32.mrb[0].mxu0
        %5434 = vmatprep.mubr.bf16.mxu0 0
        %5435 = vmatmul.mubr.bf16.gmra.mrb[0].mxu0 %v5351
        %v5436 = vpop.f32.mrb[0].mxu0
        %v5437 = vadd.f32 0.0, %v5436
        %v5438 = vpop.f32.mrb[0].mxu0
        %v5439 = vpop.f32.mrb[0].mxu0
        %v5440 = vadd.f32 0.0, %v5439
        %v5441 = vpop.f32.mrb[0].mxu0
        %5442 = vmatprep.mubr.bf16.mxu0 0
        %5443 = vmatmul.mubr.bf16.gmra.mrb[0].mxu0 %v5354
        %v5444 = vpop.f32.mrb[0].mxu0
        %v5445 = vadd.f32 0.0, %v5444
        %v5446 = vpop.f32.mrb[0].mxu0
        %v5447 = vpop.f32.mrb[0].mxu0
        %v5448 = vadd.f32 0.0, %v5447
        %v5449 = vpop.f32.mrb[0].mxu0
        %5450 = vmatprep.mubr.bf16.mxu0 0
        %5451 = vmatmul.mubr.bf16.gmra.mrb[0].mxu0 %v5357
        %v5452 = vpop.f32.mrb[0].mxu0
        %v5453 = vadd.f32 0.0, %v5452
        %v5454 = vpop.f32.mrb[0].mxu0
        %v5455 = vpop.f32.mrb[0].mxu0
        %v5456 = vadd.f32 0.0, %v5455
        %v5457 = vpop.f32.mrb[0].mxu0
        %5458 = vmatprep.mubr.bf16.mxu0 0
        %5459 = vmatmul.mubr.bf16.gmra.mrb[0].mxu0 %v5360
        %v5460 = vpop.f32.mrb[0].mxu0
        %v5461 = vadd.f32 0.0, %v5460
        %v5462 = vpop.f32.mrb[0].mxu0
        %v5463 = vpop.f32.mrb[0].mxu0
        %v5464 = vadd.f32 0.0, %v5463
        %v5465 = vpop.f32.mrb[0].mxu0
        %5466 = vdwg.mxu0
        %v5467 = vadd.f32 %v5192, %v5397
        %v5468 = vadd.f32 %v5193, %v5400
        %v5469 = vadd.f32 %v5194, %v5405
        %v5470 = vadd.f32 %v5195, %v5408
        %v5471 = vadd.f32 %v5196, %v5413
        %v5472 = vadd.f32 %v5197, %v5416
        %v5473 = vadd.f32 %v5198, %v5421
        %v5474 = vadd.f32 %v5199, %v5424
        %v5475 = vadd.f32 %v5200, %v5429
        %v5476 = vadd.f32 %v5201, %v5432
        %v5477 = vadd.f32 %v5202, %v5437
        %v5478 = vadd.f32 %v5203, %v5440
        %v5479 = vadd.f32 %v5204, %v5445
        %v5480 = vadd.f32 %v5205, %v5448
        %v5481 = vadd.f32 %v5206, %v5453
        %v5482 = vadd.f32 %v5207, %v5456
        %v5483 = vadd.f32 %v5208, %v5461
        %v5484 = vadd.f32 %v5209, %v5464
        %v5485 = vld [vmem:[#allocation2 + $0x58] sm:$0x8]
        %v5486 = vld [vmem:[%s3172] sm:$0xf]
        %v5487 = vld [vmem:[%s3172 + $0x4] sm:$0xf]
        %v5488 = vld [vmem:[%s3172 + $0x8] sm:$0xf]
        %v5489 = vld [vmem:[%s3172 + $0xc] sm:$0xf]
        %v5490 = vld [vmem:[%s3172 + $0x10] sm:$0xf]
        %v5491 = vld [vmem:[%s3172 + $0x14] sm:$0xf]
        %v5492 = vld [vmem:[%s3172 + $0x18] sm:$0xf]
        %v5493 = vld [vmem:[%s3172 + $0x1c] sm:$0xf]
        %v5495 = vunpack.c.l.b16 %v5485
        %v5496 = vpack.c.b16 %v4989, %v5495
        %v5497 = vrot.slane %v5496, 3
        %v5498 = vrot.slane %v5008, 3
        %v5499 = vsel %vm3184, %v5497, %v5498
        %v5500 = vrot.slane %v5009, 3
        %v5501 = vsel %vm3184, %v5498, %v5500
        %v5502 = vrot.slane %v5010, 3
        %v5503 = vsel %vm3184, %v5500, %v5502
        %v5504 = vrot.slane %v5011, 3
        %v5505 = vsel %vm3184, %v5502, %v5504
        %v5506 = vrot.slane %v5012, 3
        %v5507 = vsel %vm3184, %v5504, %v5506
        %v5508 = vrot.slane %v5013, 3
        %v5509 = vsel %vm3184, %v5506, %v5508
        %v5510 = vrot.slane %v5014, 3
        %v5511 = vsel %vm3184, %v5508, %v5510
        %v5512 = vrot.slane %v5015, 3
        %v5513 = vsel %vm3184, %v5510, %v5512
        %v5514 = vrot.slane %v5221, 3
        %v5515 = vsel %vm3184, %v5512, %v5514
        %v5524 = vunpack.c.l.b16 %v5486
        %v5525 = vunpack.c.l.b16 %v5487
        %v5526 = vunpack.c.l.b16 %v5488
        %v5527 = vunpack.c.l.b16 %v5489
        %v5528 = vunpack.c.l.b16 %v5490
        %v5529 = vunpack.c.l.b16 %v5491
        %v5530 = vunpack.c.l.b16 %v5492
        %v5531 = vunpack.c.l.b16 %v5493
        %v5532 = vpack.c.b16 %v5525, %v5524
        %v5533 = vpack.c.b16 %v5527, %v5526
        %v5534 = vpack.c.b16 %v5529, %v5528
        %v5535 = vpack.c.b16 %v5531, %v5530
        %v5541 = vsel %vm1385, %v5499, 0
        %v5544 = vsel %vm1385, %v5501, 0
        %v5547 = vsel %vm1385, %v5503, 0
        %v5550 = vsel %vm1385, %v5505, 0
        %v5553 = vsel %vm1385, %v5507, 0
        %v5556 = vsel %vm1385, %v5509, 0
        %v5559 = vsel %vm1385, %v5511, 0
        %v5562 = vsel %vm1385, %v5513, 0
        %v5565 = vsel %vm1385, %v5515, 0
        %5567 = vmatprep.subr.bf16.mxu0 0
        %5568 = vmatpush1.bf16.msra.mxu0 %v5532
        %5569 = vmatprep.subr.bf16.mxu0 0
        %5570 = vmatpush1.bf16.msra.mxu0 %v5533
        %5571 = vmatprep.subr.bf16.mxu0 0
        %5572 = vmatpush1.bf16.msra.mxu0 %v5534
        %5573 = vmatprep.subr.bf16.mxu0 0
        %5574 = vmatpush1.bf16.msra.mxu0 %v5535
        %5575 = vmatprep.subr.bf16.mxu0 0
        %5576 = vmatpush1.bf16.msra.mxu0 0
        %5577 = vmatprep.subr.bf16.mxu0 0
        %5578 = vmatpush1.bf16.msra.mxu0 0
        %5579 = vmatprep.subr.bf16.mxu0 0
        %5580 = vmatpush1.bf16.msra.mxu0 0
        %5581 = vmatprep.subr.bf16.mxu0 0
        %5582 = vmatpush1.bf16.msra.mxu0 0
        %5583 = vmatprep.subr.bf16.mxu0 0
        %5584 = vmatpush1.bf16.msra.mxu0 0
        %5585 = vmatprep.subr.bf16.mxu0 0
        %5586 = vmatpush1.bf16.msra.mxu0 0
        %5587 = vmatprep.subr.bf16.mxu0 0
        %5588 = vmatpush1.bf16.msra.mxu0 0
        %5589 = vmatprep.subr.bf16.mxu0 0
        %5590 = vmatpush1.bf16.msra.mxu0 0
        %5591 = vmatprep.subr.bf16.mxu0 0
        %5592 = vmatpush1.bf16.msra.mxu0 0
        %5593 = vmatprep.subr.bf16.mxu0 0
        %5594 = vmatpush1.bf16.msra.mxu0 0
        %5595 = vmatprep.subr.bf16.mxu0 0
        %5596 = vmatpush1.bf16.msra.mxu0 0
        %5597 = vmatprep.subr.bf16.mxu0 0
        %5598 = vmatpush1.bf16.msra.mxu0 0
        %5599 = vmatprep.mubr.bf16.mxu0 0
        %5600 = vmatmul.mubr.bf16.gmra.mrb[0].mxu0 %v5541
        %v5601 = vpop.f32.mrb[0].mxu0
        %v5602 = vadd.f32 0.0, %v5601
        %v5603 = vpop.f32.mrb[0].mxu0
        %v5604 = vpop.f32.mrb[0].mxu0
        %v5605 = vadd.f32 0.0, %v5604
        %v5606 = vpop.f32.mrb[0].mxu0
        %5607 = vmatprep.mubr.bf16.mxu0 0
        %5608 = vmatmul.mubr.bf16.gmra.mrb[0].mxu0 %v5544
        %v5609 = vpop.f32.mrb[0].mxu0
        %v5610 = vadd.f32 0.0, %v5609
        %v5611 = vpop.f32.mrb[0].mxu0
        %v5612 = vpop.f32.mrb[0].mxu0
        %v5613 = vadd.f32 0.0, %v5612
        %v5614 = vpop.f32.mrb[0].mxu0
        %5615 = vmatprep.mubr.bf16.mxu0 0
        %5616 = vmatmul.mubr.bf16.gmra.mrb[0].mxu0 %v5547
        %v5617 = vpop.f32.mrb[0].mxu0
        %v5618 = vadd.f32 0.0, %v5617
        %v5619 = vpop.f32.mrb[0].mxu0
        %v5620 = vpop.f32.mrb[0].mxu0
        %v5621 = vadd.f32 0.0, %v5620
        %v5622 = vpop.f32.mrb[0].mxu0
        %5623 = vmatprep.mubr.bf16.mxu0 0
        %5624 = vmatmul.mubr.bf16.gmra.mrb[0].mxu0 %v5550
        %v5625 = vpop.f32.mrb[0].mxu0
        %v5626 = vadd.f32 0.0, %v5625
        %v5627 = vpop.f32.mrb[0].mxu0
        %v5628 = vpop.f32.mrb[0].mxu0
        %v5629 = vadd.f32 0.0, %v5628
        %v5630 = vpop.f32.mrb[0].mxu0
        %5631 = vmatprep.mubr.bf16.mxu0 0
        %5632 = vmatmul.mubr.bf16.gmra.mrb[0].mxu0 %v5553
        %v5633 = vpop.f32.mrb[0].mxu0
        %v5634 = vadd.f32 0.0, %v5633
        %v5635 = vpop.f32.mrb[0].mxu0
        %v5636 = vpop.f32.mrb[0].mxu0
        %v5637 = vadd.f32 0.0, %v5636
        %v5638 = vpop.f32.mrb[0].mxu0
        %5639 = vmatprep.mubr.bf16.mxu0 0
        %5640 = vmatmul.mubr.bf16.gmra.mrb[0].mxu0 %v5556
        %v5641 = vpop.f32.mrb[0].mxu0
        %v5642 = vadd.f32 0.0, %v5641
        %v5643 = vpop.f32.mrb[0].mxu0
        %v5644 = vpop.f32.mrb[0].mxu0
        %v5645 = vadd.f32 0.0, %v5644
        %v5646 = vpop.f32.mrb[0].mxu0
        %5647 = vmatprep.mubr.bf16.mxu0 0
        %5648 = vmatmul.mubr.bf16.gmra.mrb[0].mxu0 %v5559
        %v5649 = vpop.f32.mrb[0].mxu0
        %v5650 = vadd.f32 0.0, %v5649
        %v5651 = vpop.f32.mrb[0].mxu0
        %v5652 = vpop.f32.mrb[0].mxu0
        %v5653 = vadd.f32 0.0, %v5652
        %v5654 = vpop.f32.mrb[0].mxu0
        %5655 = vmatprep.mubr.bf16.mxu0 0
        %5656 = vmatmul.mubr.bf16.gmra.mrb[0].mxu0 %v5562
        %v5657 = vpop.f32.mrb[0].mxu0
        %v5658 = vadd.f32 0.0, %v5657
        %v5659 = vpop.f32.mrb[0].mxu0
        %v5660 = vpop.f32.mrb[0].mxu0
        %v5661 = vadd.f32 0.0, %v5660
        %v5662 = vpop.f32.mrb[0].mxu0
        %5663 = vmatprep.mubr.bf16.mxu0 0
        %5664 = vmatmul.mubr.bf16.gmra.mrb[0].mxu0 %v5565
        %v5665 = vpop.f32.mrb[0].mxu0
        %v5666 = vadd.f32 0.0, %v5665
        %v5667 = vpop.f32.mrb[0].mxu0
        %v5668 = vpop.f32.mrb[0].mxu0
        %v5669 = vadd.f32 0.0, %v5668
        %v5670 = vpop.f32.mrb[0].mxu0
        %5671 = vdwg.mxu0
        %v5672 = vadd.f32 %v5467, %v5602
        %v5673 = vadd.f32 %v5468, %v5605
        %v5674 = vadd.f32 %v5469, %v5610
        %v5675 = vadd.f32 %v5470, %v5613
        %v5676 = vadd.f32 %v5471, %v5618
        %v5677 = vadd.f32 %v5472, %v5621
        %v5678 = vadd.f32 %v5473, %v5626
        %v5679 = vadd.f32 %v5474, %v5629
        %v5680 = vadd.f32 %v5475, %v5634
        %v5681 = vadd.f32 %v5476, %v5637
        %v5682 = vadd.f32 %v5477, %v5642
        %v5683 = vadd.f32 %v5478, %v5645
        %v5684 = vadd.f32 %v5479, %v5650
        %v5685 = vadd.f32 %v5480, %v5653
        %v5686 = vadd.f32 %v5481, %v5658
        %v5687 = vadd.f32 %v5482, %v5661
        %v5688 = vadd.f32 %v5483, %v5666
        %v5689 = vadd.f32 %v5484, %v5669
        %v5690 = vadd.f32 %v5672, %v3382
        %v5691 = vadd.f32 %v5673, %v3382
        %v5692 = vadd.f32 %v5674, %v3382
        %v5693 = vadd.f32 %v5675, %v3382
        %v5694 = vadd.f32 %v5676, %v3382
        %v5695 = vadd.f32 %v5677, %v3382
        %v5696 = vadd.f32 %v5678, %v3382
        %v5697 = vadd.f32 %v5679, %v3382
        %v5698 = vadd.f32 %v5680, %v3382
        %v5699 = vadd.f32 %v5681, %v3382
        %v5700 = vadd.f32 %v5682, %v3382
        %v5701 = vadd.f32 %v5683, %v3382
        %v5702 = vadd.f32 %v5684, %v3382
        %v5703 = vadd.f32 %v5685, %v3382
        %v5704 = vadd.f32 %v5686, %v3382
        %v5705 = vadd.f32 %v5687, %v3382
        %v5706 = vadd.f32 %v5688, %v3382
        %v5707 = vadd.f32 %v5689, %v3382
        %v5708 = vmax.f32 %v5690, 0.0
        %v5709 = vmax.f32 %v5691, 0.0
        %v5710 = vmax.f32 %v5692, 0.0
        %v5711 = vmax.f32 %v5693, 0.0
        %v5712 = vmax.f32 %v5694, 0.0
        %v5713 = vmax.f32 %v5695, 0.0
        %v5714 = vmax.f32 %v5696, 0.0
        %v5715 = vmax.f32 %v5697, 0.0
        %v5716 = vmax.f32 %v5698, 0.0
        %v5717 = vmax.f32 %v5699, 0.0
        %v5718 = vmax.f32 %v5700, 0.0
        %v5719 = vmax.f32 %v5701, 0.0
        %v5720 = vmax.f32 %v5702, 0.0
        %v5721 = vmax.f32 %v5703, 0.0
        %v5722 = vmax.f32 %v5704, 0.0
        %v5723 = vmax.f32 %v5705, 0.0
        %v5724 = vmax.f32 %v5706, 0.0
        %v5725 = vmax.f32 %v5707, 0.0
        %v5726 = vld [vmem:[%s227 + $0x80] sm:$0xff]
        %v5727 = vld [vmem:[%s227 + $0x88] sm:$0xff]
        %v5728 = vadd.f32 %v5726, %v5708
        %v5729 = vadd.f32 %v5727, %v5709
        %5730 = vst [vmem:[%s257 + $0x80] sm:$0xff] %v5728
        %5731 = vst [vmem:[%s257 + $0x88] sm:$0xff] %v5729
        %v5732 = vld [vmem:[%s227 + $0x90] sm:$0xff]
        %v5733 = vld [vmem:[%s227 + $0x98] sm:$0xff]
        %v5737 = vrot.slane %v5710, 2
        %v5738 = vrot.slane %v5711, 2
        %v5739 = vsel %vm3431, %v5737, %v5738
        %v5740 = vrot.slane %v5712, 2
        %v5741 = vsel %vm3431, %v5738, %v5740
        %v5744 = vadd.f32 %v5732, %v5739
        %v5745 = vadd.f32 %v5733, %v5741
        %5746 = vst [vmem:[%s257 + $0x90] sm:$0xff] %v5744
        %5747 = vst [vmem:[%s257 + $0x98] sm:$0xff] %v5745
        %v5748 = vld [vmem:[%s227 + $0xa0] sm:$0xff]
        %v5749 = vld [vmem:[%s227 + $0xa8] sm:$0xff]
        %v5752 = vrot.slane %v5712, 4
        %v5753 = vrot.slane %v5713, 4
        %v5754 = vsel %vm3447, %v5752, %v5753
        %v5755 = vrot.slane %v5714, 4
        %v5756 = vsel %vm3447, %v5753, %v5755
        %v5759 = vadd.f32 %v5748, %v5754
        %v5760 = vadd.f32 %v5749, %v5756
        %5761 = vst [vmem:[%s257 + $0xa0] sm:$0xff] %v5759
        %5762 = vst [vmem:[%s257 + $0xa8] sm:$0xff] %v5760
        %v5763 = vld [vmem:[%s227 + $0xb0] sm:$0xff]
        %v5764 = vld [vmem:[%s227 + $0xb8] sm:$0xff]
        %v5767 = vrot.slane %v5714, 6
        %v5768 = vrot.slane %v5715, 6
        %v5769 = vsel %vm3463, %v5767, %v5768
        %v5770 = vrot.slane %v5716, 6
        %v5771 = vsel %vm3463, %v5768, %v5770
        %v5774 = vadd.f32 %v5763, %v5769
        %v5775 = vadd.f32 %v5764, %v5771
        %5776 = vst [vmem:[%s257 + $0xb0] sm:$0xff] %v5774
        %5777 = vst [vmem:[%s257 + $0xb8] sm:$0xff] %v5775
        %v5778 = vld [vmem:[%s227 + $0xc0] sm:$0xff]
        %v5779 = vld [vmem:[%s227 + $0xc8] sm:$0xff]
        %v5780 = vadd.f32 %v5778, %v5717
        %v5781 = vadd.f32 %v5779, %v5718
        %5782 = vst [vmem:[%s257 + $0xc0] sm:$0xff] %v5780
        %5783 = vst [vmem:[%s257 + $0xc8] sm:$0xff] %v5781
        %v5784 = vld [vmem:[%s227 + $0xd0] sm:$0xff]
        %v5785 = vld [vmem:[%s227 + $0xd8] sm:$0xff]
        %v5789 = vrot.slane %v5719, 2
        %v5790 = vrot.slane %v5720, 2
        %v5791 = vsel %vm3431, %v5789, %v5790
        %v5792 = vrot.slane %v5721, 2
        %v5793 = vsel %vm3431, %v5790, %v5792
        %v5796 = vadd.f32 %v5784, %v5791
        %v5797 = vadd.f32 %v5785, %v5793
        %5798 = vst [vmem:[%s257 + $0xd0] sm:$0xff] %v5796
        %5799 = vst [vmem:[%s257 + $0xd8] sm:$0xff] %v5797
        %v5800 = vld [vmem:[%s227 + $0xe0] sm:$0xff]
        %v5801 = vld [vmem:[%s227 + $0xe8] sm:$0xff]
        %v5804 = vrot.slane %v5721, 4
        %v5805 = vrot.slane %v5722, 4
        %v5806 = vsel %vm3447, %v5804, %v5805
        %v5807 = vrot.slane %v5723, 4
        %v5808 = vsel %vm3447, %v5805, %v5807
        %v5811 = vadd.f32 %v5800, %v5806
        %v5812 = vadd.f32 %v5801, %v5808
        %5813 = vst [vmem:[%s257 + $0xe0] sm:$0xff] %v5811
        %5814 = vst [vmem:[%s257 + $0xe8] sm:$0xff] %v5812
        %v5815 = vld [vmem:[%s227 + $0xf0] sm:$0xff]
        %v5816 = vld [vmem:[%s227 + $0xf8] sm:$0xff]
        %v5819 = vrot.slane %v5723, 6
        %v5820 = vrot.slane %v5724, 6
        %v5821 = vsel %vm3463, %v5819, %v5820
        %v5822 = vrot.slane %v5725, 6
        %v5823 = vsel %vm3463, %v5820, %v5822
        %v5826 = vadd.f32 %v5815, %v5821
        %v5827 = vadd.f32 %v5816, %v5823
        %5828 = vst [vmem:[%s257 + $0xf0] sm:$0xff] %v5826
        %5829 = vst [vmem:[%s257 + $0xf8] sm:$0xff] %v5827
        %s5830 = sand.u32 %s141, 1
        %s5831 = scalar_lea.sflag [#allocation5], %s5830
        %s5832 = sand.u32 %s141, 1
        %s5833 = smul.addr %s5832, 256
        %s5834 = scalar_lea.vmem [#allocation8], %s5833
        // Predicated region
        $region49: #{resblock_2d_forward.1} parent=39 // pred_check
          %p5835 = pneg %p151
        $region50: #{resblock_2d_forward.1} parent=39 // pred_check_branch
          %5837 = sbr.rel (%p5835) target = $region52
        $region51: #{resblock_2d_forward.1} parent=39 // pred_region
          %s5839 = ssub.s32 4096, 4096
          %5840 = vsyncadd %s5831, %s5839
          %s5841 = smul.addr %s23, 32
          %s5842 = smul.addr %s5841, 128
          %s5843 = scalar_lea.hbm %s5, %s5842
          %s5844 = sshll.u32 %s5834, 4
          %s5845 = int_to_ptr.vmem [resolvable:$true] %s5844
          %5850 = dma.vmem_to_hbm [thread:$0]  %s5845, 4096, %s5843, %s5831, 128, 128, 8
        $region52: #{resblock_2d_forward.1} parent=39 // pred_fallthru
          _
      $region40: #{resblock_2d_forward.1} parent=5 // pred_fallthru
        _
      %p5851 = scmp.le.s32.totalorder 2, %s18
      // Predicated region
      $region53: #{resblock_2d_forward.1} parent=5 // pred_check
        %p5852 = pneg %p5851
      $region54: #{resblock_2d_forward.1} parent=5 // pred_check_branch
        %5854 = sbr.rel (%p5852) target = $region56
      $region55: #{resblock_2d_forward.1} parent=5 // pred_region
        %s5855 = ssub.s32 %s18, 2
        // Predicated region
        $region57: #{resblock_2d_forward.1} parent=55 // pred_check
          %p5856 = pneg %p157
        $region58: #{resblock_2d_forward.1} parent=55 // pred_check_branch
          %5858 = sbr.rel (%p5856) target = $region60
        $region59: #{resblock_2d_forward.1} parent=55 // pred_region
          %s5859 = sand.u32 %s142, 1
          %s5860 = scalar_lea.sflag [#allocation5], %s5859
          %s5861 = sand.u32 %s142, 1
          %s5862 = smul.addr %s5861, 256
          %s5863 = scalar_lea.vmem [#allocation8], %s5862
          %5864 = dma.done %s5860, 4096
        $region60: #{resblock_2d_forward.1} parent=55 // pred_fallthru
          _
      $region56: #{resblock_2d_forward.1} parent=5 // pred_fallthru
        _
    $region6: #{resblock_2d_forward.1} parent=1 // loop_footer
      %s22 = sadd.s32 1, %s18
    $region7: #{resblock_2d_forward.1} parent=1 // loop_footer_branch
      %17 = sbr.rel target = $region3
    $region8: #{resblock_2d_forward.1} parent=1 // loop_exit
      _
    %5865 = vsyncpa [#allocation4], 1
    %s5866 = scalar_lea.sflag [#allocation4], 1
    %5867 = vsyncpa %s5866, 1
    %5868 = vsyncpa [#allocation7], 1
    %5869 = vsyncpa [#allocation5], 1
    %s5870 = scalar_lea.sflag [#allocation5], 1
    %5871 = vsyncpa %s5870, 1

</llo_original>
